<compile_context>
chip_gen: v7x
topology: tpu7x:2x2x1
jax: 0.10.0
libtpu: 0.0.40
codegen_flags: <defaults>
</compile_context>

<pallas_src>
import functools

import jax
import jax.numpy as jnp
from jax import lax
from jax.experimental import pallas as pl
from jax.experimental.pallas import tpu as pltpu


def _fast_recip(d):
    # EUP approximate reciprocal + one Newton step (rel. err ~1e-7); keeps the
    # divide off the VALU slot while staying accurate enough for f32 checks.
    r = pl.reciprocal(d, approx=True)
    return r * (2.0 - d * r)


def _erf(z):
    # Abramowitz & Stegun 7.1.26 rational approximation (|err| < 1.5e-7),
    # built only from ops that lower cleanly in Mosaic (exp/abs/mul/add).
    p = 0.3275911
    a1, a2, a3, a4, a5 = (0.254829592, -0.284496736, 1.421413741,
                          -1.453152027, 1.061405429)
    s = jnp.where(z >= 0.0, 1.0, -1.0)
    az = jnp.abs(z)
    t = _fast_recip(1.0 + p * az)
    poly = t * (a1 + t * (a2 + t * (a3 + t * (a4 + t * a5))))
    return s * (1.0 - poly * jnp.exp(-az * az))


def _gelu_exact(v):
    # exact (erf-based) GELU, as used by BertIntermediate's "gelu"
    return 0.5 * v * (1.0 + _erf(v * 0.7071067811865476))


def trans_attention_kernel(x_ref, mu_ref, wvT_ref, bv_ref, wiT_ref, bi_ref,
                           woT_ref, bo_ref, gamma_ref, beta_ref, o_ref,
                           xv_ref, mc_ref, *, num_heads, eps):
    f32 = jnp.float32
    L, E = x_ref.shape[1], x_ref.shape[2]
    TL = o_ref.shape[1]                 # query-row block size
    K = num_heads
    EOK = E // K
    mm = wvT_ref.dtype                  # matmul operand dtype (f32 or bf16)
    inv_e = 1.0 / E

    xk = x_ref[0].astype(f32)           # (L, E) keys/values (full sequence)
    lb = pl.program_id(1)
    start = pl.multiple_of(lb * TL, TL)
    xq = x_ref[0, pl.ds(start, TL), :].astype(f32)   # (TL, E) query rows

    dn = (((1,), (1,)), ((), ()))       # contract last dims: A @ B^T on the MXU

    # ---- per-batch quantities: computed once per batch (lb == 0), cached ---
    @pl.when(lb == 0)
    def _():
        # value projection (MXU), stashed in VMEM scratch for per-head views
        xv = jnp.dot(xk.astype(mm), wvT_ref[...],
                     preferred_element_type=f32) + bv_ref[...]
        xv_ref[...] = xv.astype(xv_ref.dtype)
        # l'-dependent score correction (softmax shift-invariance drops the
        # row-constant ||x_l + mu_k||^2 term):
        #   Mc[k, l'] = (2/E) * mu_k . x_l' - (1/E) * ||x_l'||^2
        M = lax.dot_general(mu_ref[...], xk, dn,
                            preferred_element_type=f32)                 # (K, L)
        cn = lax.dot_general(jnp.ones((1, E), f32), xk * xk, dn,
                             preferred_element_type=f32)                # (1, L)
        mc_ref[...] = (2.0 * inv_e) * M - inv_e * cn

    # ---- translation-attention scores via Gram-matrix expansion ------------
    # f32 operands for G (scores are differences of large dot products).
    G = lax.dot_general(xq, xk, dn, preferred_element_type=f32)         # (TL, L)
    G2 = (2.0 * inv_e) * G                                              # hoisted
    Mc = mc_ref[...]                                                    # (K, L)

    # Static loop over heads: each head's (TL, L) score/prob tensors die within
    # the iteration; only (TL, EOK) head outputs stay live for the concat.
    heads = []
    for k in range(K):
        s = G2 + Mc[k:k + 1, :]                                         # (TL, L)
        s = s - jnp.max(s, axis=-1, keepdims=True)
        p = jnp.exp(s)                                                  # unnormalized
        denom = jnp.sum(p, axis=-1, keepdims=True)                      # (TL, 1)
        head = jnp.dot(p.astype(mm), xv_ref[:, k * EOK:(k + 1) * EOK],
                       preferred_element_type=f32)                      # (TL, EOK)
        # deferred softmax normalisation on the small (TL, EOK) output
        heads.append(head * _fast_recip(denom))
    xsel = jnp.concatenate(heads, axis=-1)                              # (TL, E)
    x1 = xq + xsel                      # residual (f32)

    # ---- feed-forward: BertIntermediate (Linear + exact GELU) + BertOutput -
    inter = _gelu_exact(jnp.dot(x1.astype(mm), wiT_ref[...],
                                preferred_element_type=f32) + bi_ref[...])
    ffn = jnp.dot(inter.astype(mm), woT_ref[...],
                  preferred_element_type=f32) + bo_ref[...]
    h = ffn + x1                        # residual (pre-LayerNorm)

    mean = jnp.mean(h, axis=-1, keepdims=True)
    cen = h - mean
    var = jnp.mean(cen * cen, axis=-1, keepdims=True)
    y = cen * lax.rsqrt(var + eps) * gamma_ref[...] + beta_ref[...]
    o_ref[0] = y.astype(o_ref.dtype)


def _default_block_l(L):
    if L <= 256:
        return L
    # largest divisor of L that is <= 256 and a multiple of 8
    for cand in range(256, 7, -8):
        if L % cand == 0:
            return cand
    return L


def trans_attention(x, mu, wv, bv, wi, bi, wo, bo, gamma, beta, *,
                    num_heads, eps=1e-12, block_l=None,
                    matmul_dtype=jnp.bfloat16):
    B, L, E = x.shape
    I = wi.shape[0]
    K = num_heads
    assert E % K == 0, "hidden_size must be divisible by num_heads"

    if block_l is None:
        block_l = _default_block_l(L)
    block_l = min(block_l, L)
    assert L % block_l == 0, "block_l must divide L"
    n_lb = L // block_l
    if n_lb > 1:
        assert block_l % 8 == 0, "block_l must be a multiple of 8 when tiling L"

    mm = jnp.dtype(matmul_dtype)
    # Pre-transpose (and cast) weights once on the host side: the kernel then
    # issues plain x @ W matmuls with no in-kernel transposes.
    wvT = wv.T.astype(mm)               # (E, E)
    wiT = wi.T.astype(mm)               # (E, I)
    woT = wo.T.astype(mm)               # (I, E)
    mu32 = mu.astype(jnp.float32)       # (K, E)  score path stays f32
    bv2 = bv.reshape(1, E).astype(jnp.float32)
    bi2 = bi.reshape(1, I).astype(jnp.float32)
    bo2 = bo.reshape(1, E).astype(jnp.float32)
    g2 = gamma.reshape(1, E).astype(jnp.float32)
    b2 = beta.reshape(1, E).astype(jnp.float32)

    kernel = functools.partial(trans_attention_kernel, num_heads=K, eps=eps)

    xb = jnp.dtype(x.dtype).itemsize
    # VMEM estimate (generous: worst-case double-buffered weights + headroom
    # for in-flight temporaries), capped below the physical per-core VMEM.
    est = (2 * L * E * xb                           # keys/values input block
           + 2 * block_l * E * xb                   # output block
           + 2 * (E * E + E * I + I * E) * mm.itemsize
           + 2 * (K * E + 3 * E + I + E) * 4        # mu, biases, gamma/beta
           + L * E * mm.itemsize                    # xv scratch
           + max(8, K) * max(128, L) * 4            # Mc scratch (padded)
           + 4 * block_l * max(128, L) * 4          # live score/prob temps
           + 2 * block_l * I * 4                    # intermediate/GELU temps
           + 6 * block_l * E * 4)                   # xq/xsel/x1/ffn/LN temps
    try:
        phys = int(pltpu.get_tpu_info().vmem_capacity_bytes)
    except Exception:
        phys = 64 * 1024 * 1024                     # v7x per-core (worst case)
    vmem_limit = min(int(0.75 * phys), max(32 * 1024 * 1024, int(1.25 * est)))

    cost = pl.CostEstimate(
        flops=int(B * (2 * L * E * E          # value projection (once / batch)
                       + 2 * K * E * L        # mu @ x^T
                       + 2 * L * E            # column norms
                       + 4 * L * L * E        # Gram + att@V over all blocks
                       + 4 * L * E * I)),     # FFN (both dense layers)
        transcendentals=int(B * (K * L * L + L * I)),
        bytes_accessed=int(2 * B * L * E * xb
                           + (wvT.size + wiT.size + woT.size) * mm.itemsize
                           + (mu32.size + bv2.size + bi2.size + bo2.size
                              + g2.size + b2.size) * 4))

    def run(weight_pipeline_mode):
        def whole(a):
            if weight_pipeline_mode is None:
                return pl.BlockSpec(a.shape, lambda b, lb: (0, 0))
            return pl.BlockSpec(a.shape, lambda b, lb: (0, 0),
                                pipeline_mode=weight_pipeline_mode)

        return pl.pallas_call(
            kernel,
            out_shape=jax.ShapeDtypeStruct((B, L, E), x.dtype),
            grid_spec=pltpu.PrefetchScalarGridSpec(
                num_scalar_prefetch=0,
                grid=(B, n_lb),
                in_specs=[
                    # x serves both as keys/values and as the query source
                    # (query rows are sliced in-kernel); the block index is
                    # constant across lb so it is DMA'd once per batch elem.
                    pl.BlockSpec((1, L, E), lambda b, lb: (b, 0, 0)),
                    whole(mu32), whole(wvT), whole(bv2),
                    whole(wiT), whole(bi2), whole(woT), whole(bo2),
                    whole(g2), whole(b2),
                ],
                out_specs=pl.BlockSpec((1, block_l, E),
                                       lambda b, lb: (b, lb, 0)),
                scratch_shapes=[
                    pltpu.VMEM((L, E), mm),            # cached value projection
                    pltpu.VMEM((K, L), jnp.float32),   # cached score correction
                ],
            ),
            compiler_params=pltpu.CompilerParams(
                # lb must stay serial ("arbitrary") so the per-batch xv/Mc
                # scratch cache is valid; B is sharded across TensorCores.
                dimension_semantics=("parallel", "arbitrary"),
                vmem_limit_bytes=vmem_limit),
            cost_estimate=cost,
        )(x, mu32, wvT, bv2, wiT, bi2, woT, bo2, g2, b2)

    try:
        # Single-buffer the constant-index weight/bias inputs: halves their
        # VMEM residency (matters on v7x's 64 MiB VMEM, harmless elsewhere).
        return run(pl.Buffered(1))
    except Exception:
        # Fallback for jax versions without BlockSpec pipeline_mode support.
        return run(None)


def trans_attention_ref(x, mu, wv, bv, wi, bi, wo, bo, gamma, beta,
                        *, num_heads, eps=1e-12):
    """Pure-JAX mirror of the PyTorch forward (for correctness checking)."""
    B, L, E = x.shape
    K = num_heads
    EOK = E // K
    xq = x[:, :, None, :] + mu[None, None, :, :]             # (B, L, K, E)
    xd = xq[:, :, :, None, :] - x[:, None, None, :, :]       # (B, L, K, L, E)
    nmsq = -jnp.mean(xd * xd, axis=-1)                       # (B, L, K, L)
    att = jax.nn.softmax(nmsq, axis=-1)
    att = jnp.transpose(att, (0, 2, 1, 3)).reshape(B * K, L, L)
    xv = (x @ wv.T + bv).reshape(B, L, K, EOK)
    xv = jnp.transpose(xv, (0, 2, 1, 3)).reshape(B * K, L, EOK)
    xsel = (att @ xv).reshape(B, K, L, EOK)
    xsel = jnp.transpose(xsel, (0, 2, 1, 3)).reshape(B, L, E)
    x1 = x + xsel
    inter = jax.nn.gelu(x1 @ wi.T + bi, approximate=False)
    ffn = inter @ wo.T + bo
    h = ffn + x1
    mean = h.mean(-1, keepdims=True)
    var = ((h - mean) ** 2).mean(-1, keepdims=True)
    return (h - mean) / jnp.sqrt(var + eps) * gamma + beta


if __name__ == "__main__":
    def build(key, B, L, E, K, I):
        ks = jax.random.split(key, 10)
        x = jax.random.normal(ks[0], (B, L, E), jnp.float32)
        mu = 0.1 * jax.random.normal(ks[1], (K, E), jnp.float32)    # (1,K,E) param, squeezed
        wv = 0.1 * jax.random.normal(ks[2], (E, E), jnp.float32)    # val.weight
        bv = 0.1 * jax.random.normal(ks[3], (E,), jnp.float32)      # val.bias
        wi = 0.1 * jax.random.normal(ks[4], (I, E), jnp.float32)    # intermediate.dense.weight
        bi = 0.1 * jax.random.normal(ks[5], (I,), jnp.float32)
        wo = 0.1 * jax.random.normal(ks[6], (E, I), jnp.float32)    # output.dense.weight
        bo = 0.1 * jax.random.normal(ks[7], (E,), jnp.float32)
        gamma = 1.0 + 0.1 * jax.random.normal(ks[8], (E,), jnp.float32)
        beta = 0.1 * jax.random.normal(ks[9], (E,), jnp.float32)
        return (x, mu, wv, bv, wi, bi, wo, bo, gamma, beta)

    # Case 1: small module shapes, f32 MXU operands (tight check).
    B, L, E, K = 2, 8, 32, 4
    args = build(jax.random.PRNGKey(0), B, L, E, K, 2 * E)
    ref = trans_attention_ref(*args, num_heads=K)
    out_f32 = jax.block_until_ready(
        trans_attention(*args, num_heads=K, matmul_dtype=jnp.float32))
    assert out_f32.shape == (B, L, E)
    assert jnp.allclose(out_f32, ref, atol=5e-3, rtol=5e-3), (
        f"f32 max abs err {jnp.max(jnp.abs(out_f32 - ref))}")

    # Case 2: same inputs, bf16 MXU operands + f32 accumulation (looser check).
    out_bf16 = jax.block_until_ready(
        trans_attention(*args, num_heads=K, matmul_dtype=jnp.bfloat16))
    assert jnp.allclose(out_bf16, ref, atol=5e-2, rtol=5e-2), (
        f"bf16 max abs err {jnp.max(jnp.abs(out_bf16 - ref))}")

    # Case 3: exercise the query-row (L) grid axis + per-batch xv/Mc caching:
    # L=16 tiled into blocks of 8 (n_lb=2).
    B, L, E, K = 2, 16, 32, 4
    args = build(jax.random.PRNGKey(1), B, L, E, K, 2 * E)
    ref = trans_attention_ref(*args, num_heads=K)
    out_tiled = jax.block_until_ready(
        trans_attention(*args, num_heads=K, matmul_dtype=jnp.float32,
                        block_l=8))
    assert jnp.allclose(out_tiled, ref, atol=5e-3, rtol=5e-3), (
        f"tiled max abs err {jnp.max(jnp.abs(out_tiled - ref))}")

    # Case 4: tiled + bf16 operands (production-like path, looser check).
    out_tiled_bf16 = jax.block_until_ready(
        trans_attention(*args, num_heads=K, matmul_dtype=jnp.bfloat16,
                        block_l=8))
    assert jnp.allclose(out_tiled_bf16, ref, atol=5e-2, rtol=5e-2), (
        f"tiled bf16 max abs err {jnp.max(jnp.abs(out_tiled_bf16 - ref))}")

    print("KERNEL_OK")
</pallas_src>

<mosaic_0001>
module attributes {stable_mosaic.version = 11 : i64} {
  func.func @trans_attention_kernel(%arg0: i32, %arg1: i32, %arg2: memref<1x8x32xf32, #tpu.memory_space<vmem>>, %arg3: memref<4x32xf32, #tpu.memory_space<vmem>>, %arg4: memref<32x32xf32, #tpu.memory_space<vmem>>, %arg5: memref<1x32xf32, #tpu.memory_space<vmem>>, %arg6: memref<32x64xf32, #tpu.memory_space<vmem>>, %arg7: memref<1x64xf32, #tpu.memory_space<vmem>>, %arg8: memref<64x32xf32, #tpu.memory_space<vmem>>, %arg9: memref<1x32xf32, #tpu.memory_space<vmem>>, %arg10: memref<1x32xf32, #tpu.memory_space<vmem>>, %arg11: memref<1x32xf32, #tpu.memory_space<vmem>>, %arg12: memref<1x8x32xf32, #tpu.memory_space<vmem>>, %arg13: memref<8x32xf32, #tpu.memory_space<vmem>>, %arg14: memref<4x8xf32, #tpu.memory_space<vmem>>) attributes {dimension_semantics = [#tpu.dimension_semantics<parallel>, #tpu.dimension_semantics<arbitrary>], iteration_bounds = array<i64: 2, 1>, scalar_prefetch = 0 : i64, scratch_operands = 2 : i64, tpu.core_type = #tpu.core_type<tc>, window_params = [{transform_indices = @transform_0, window_bounds = array<i64: 1, 8, 32>}, {pipeline_mode = #tpu.pipeline_mode<synchronous>, transform_indices = @transform_1, window_bounds = array<i64: 4, 32>}, {pipeline_mode = #tpu.pipeline_mode<synchronous>, transform_indices = @transform_2, window_bounds = array<i64: 32, 32>}, {pipeline_mode = #tpu.pipeline_mode<synchronous>, transform_indices = @transform_3, window_bounds = array<i64: 1, 32>}, {pipeline_mode = #tpu.pipeline_mode<synchronous>, transform_indices = @transform_4, window_bounds = array<i64: 32, 64>}, {pipeline_mode = #tpu.pipeline_mode<synchronous>, transform_indices = @transform_5, window_bounds = array<i64: 1, 64>}, {pipeline_mode = #tpu.pipeline_mode<synchronous>, transform_indices = @transform_6, window_bounds = array<i64: 64, 32>}, {pipeline_mode = #tpu.pipeline_mode<synchronous>, transform_indices = @transform_7, window_bounds = array<i64: 1, 32>}, {pipeline_mode = #tpu.pipeline_mode<synchronous>, transform_indices = @transform_8, window_bounds = array<i64: 1, 32>}, {pipeline_mode = #tpu.pipeline_mode<synchronous>, transform_indices = @transform_9, window_bounds = array<i64: 1, 32>}, {transform_indices = @transform_10, window_bounds = array<i64: 1, 8, 32>}]} {
    %c0 = arith.constant 0 : index
    %c0_0 = arith.constant 0 : index
    %c0_1 = arith.constant 0 : index
    %0 = vector.load %arg2[%c0, %c0_0, %c0_1] : memref<1x8x32xf32, #tpu.memory_space<vmem>>, vector<1x8x32xf32>
    %1 = vector.shape_cast %0 : vector<1x8x32xf32> to vector<8x32xf32>
    %c8_i32 = arith.constant 8 : i32
    %2 = arith.muli %arg1, %c8_i32 : i32
    %3 = tpu.assume_multiple %2, 8 : i32
    %c0_2 = arith.constant 0 : index
    %4 = arith.index_cast %3 : i32 to index
    %c0_3 = arith.constant 0 : index
    %5 = vector.load %arg2[%c0_2, %4, %c0_3] : memref<1x8x32xf32, #tpu.memory_space<vmem>>, vector<1x8x32xf32>
    %6 = vector.shape_cast %5 : vector<1x8x32xf32> to vector<8x32xf32>
    %c0_i32 = arith.constant 0 : i32
    %7 = arith.cmpi eq, %arg1, %c0_i32 : i32
    %8 = arith.extui %7 : i1 to i32
    %c0_i32_4 = arith.constant 0 : i32
    %9 = arith.cmpi ne, %8, %c0_i32_4 : i32
    scf.if %9 {
      %c0_67 = arith.constant 0 : index
      %c0_68 = arith.constant 0 : index
      %172 = vector.load %arg4[%c0_67, %c0_68] : memref<32x32xf32, #tpu.memory_space<vmem>>, vector<32x32xf32>
      %cst_69 = arith.constant dense<0.000000e+00> : vector<8x32xf32>
      %173 = tpu.matmul %1, %172, %cst_69 {dimension_numbers = #tpu.dot_dimension_numbers<[1], [0], [0], [1], [0, 0, 1, 1], [], []>} : vector<8x32xf32>, vector<32x32xf32>, vector<8x32xf32> -> vector<8x32xf32>
      %c0_70 = arith.constant 0 : index
      %c0_71 = arith.constant 0 : index
      %174 = vector.load %arg5[%c0_70, %c0_71] : memref<1x32xf32, #tpu.memory_space<vmem>>, vector<1x32xf32>
      %175 = vector.broadcast %174 : vector<1x32xf32> to vector<8x32xf32>
      %176 = arith.addf %173, %175 : vector<8x32xf32>
      %c0_72 = arith.constant 0 : index
      %c0_73 = arith.constant 0 : index
      %177 = vector.load %arg13[%c0_72, %c0_73] : memref<8x32xf32, #tpu.memory_space<vmem>>, vector<8x32xf32>
      tpu.vector_store %arg13[%c0_72, %c0_73], %176 {strides = array<i32>} : memref<8x32xf32, #tpu.memory_space<vmem>>, vector<8x32xf32>,
      %c0_74 = arith.constant 0 : index
      %c0_75 = arith.constant 0 : index
      %178 = vector.load %arg3[%c0_74, %c0_75] : memref<4x32xf32, #tpu.memory_space<vmem>>, vector<4x32xf32>
      %cst_76 = arith.constant dense<0.000000e+00> : vector<4x8xf32>
      %179 = tpu.matmul %178, %1, %cst_76 {dimension_numbers = #tpu.dot_dimension_numbers<[1], [1], [0], [0], [0, 0, 1, 0], [], []>} : vector<4x32xf32>, vector<8x32xf32>, vector<4x8xf32> -> vector<4x8xf32>
      %cst_77 = arith.constant 1.000000e+00 : f32
      %180 = vector.broadcast %cst_77 : f32 to vector<1x32xf32>
      %181 = arith.mulf %1, %1 : vector<8x32xf32>
      %cst_78 = arith.constant dense<0.000000e+00> : vector<1x8xf32>
      %182 = tpu.matmul %180, %181, %cst_78 {dimension_numbers = #tpu.dot_dimension_numbers<[1], [1], [0], [0], [0, 0, 1, 0], [], []>} : vector<1x32xf32>, vector<8x32xf32>, vector<1x8xf32> -> vector<1x8xf32>
      %cst_79 = arith.constant 6.250000e-02 : f32
      %183 = vector.broadcast %cst_79 : f32 to vector<4x8xf32>
      %184 = arith.mulf %183, %179 : vector<4x8xf32>
      %cst_80 = arith.constant 3.125000e-02 : f32
      %185 = vector.broadcast %cst_80 : f32 to vector<1x8xf32>
      %186 = arith.mulf %185, %182 : vector<1x8xf32>
      %187 = vector.broadcast %186 : vector<1x8xf32> to vector<4x8xf32>
      %188 = arith.subf %184, %187 : vector<4x8xf32>
      %c0_81 = arith.constant 0 : index
      %c0_82 = arith.constant 0 : index
      %189 = vector.load %arg14[%c0_81, %c0_82] : memref<4x8xf32, #tpu.memory_space<vmem>>, vector<4x8xf32>
      tpu.vector_store %arg14[%c0_81, %c0_82], %188 {strides = array<i32>} : memref<4x8xf32, #tpu.memory_space<vmem>>, vector<4x8xf32>,
    } else {
    }
    %cst = arith.constant dense<0.000000e+00> : vector<8x8xf32>
    %10 = tpu.matmul %6, %1, %cst {dimension_numbers = #tpu.dot_dimension_numbers<[1], [1], [0], [0], [0, 0, 1, 0], [], []>} : vector<8x32xf32>, vector<8x32xf32>, vector<8x8xf32> -> vector<8x8xf32>
    %cst_5 = arith.constant 6.250000e-02 : f32
    %11 = vector.broadcast %cst_5 : f32 to vector<8x8xf32>
    %12 = arith.mulf %11, %10 : vector<8x8xf32>
    %c0_6 = arith.constant 0 : index
    %c0_7 = arith.constant 0 : index
    %13 = vector.load %arg14[%c0_6, %c0_7] : memref<4x8xf32, #tpu.memory_space<vmem>>, vector<4x8xf32>
    %14 = vector.extract_strided_slice %13 {offsets = [0, 0], sizes = [1, 8], strides = [1, 1]} : vector<4x8xf32> to vector<1x8xf32>
    %15 = vector.broadcast %14 : vector<1x8xf32> to vector<8x8xf32>
    %16 = arith.addf %12, %15 : vector<8x8xf32>
    %cst_8 = arith.constant dense<0xFF800000> : vector<8xf32>
    %17 = vector.multi_reduction <maximumf>, %16, %cst_8 [1] : vector<8x8xf32> to vector<8xf32>
    %18 = vector.shape_cast %17 : vector<8xf32> to vector<8x1xf32>
    %19 = vector.broadcast %18 : vector<8x1xf32> to vector<8x8xf32>
    %20 = arith.subf %16, %19 : vector<8x8xf32>
    %21 = math.exp %20 : vector<8x8xf32>
    %cst_9 = arith.constant dense<0.000000e+00> : vector<8xf32>
    %22 = vector.multi_reduction <add>, %21, %cst_9 [1] : vector<8x8xf32> to vector<8xf32>
    %23 = vector.shape_cast %22 : vector<8xf32> to vector<8x1xf32>
    %c0_10 = arith.constant 0 : index
    %c0_11 = arith.constant 0 : index
    %24 = vector.load %arg13[%c0_10, %c0_11] : memref<8x32xf32, #tpu.memory_space<vmem>>, vector<8x8xf32>
    %cst_12 = arith.constant dense<0.000000e+00> : vector<8x8xf32>
    %25 = tpu.matmul %21, %24, %cst_12 {dimension_numbers = #tpu.dot_dimension_numbers<[1], [0], [0], [1], [0, 0, 1, 1], [], []>} : vector<8x8xf32>, vector<8x8xf32>, vector<8x8xf32> -> vector<8x8xf32>
    %26 = tpu.reciprocal %23 {approx = true} : vector<8x1xf32> -> vector<8x1xf32>
    %27 = arith.mulf %23, %26 : vector<8x1xf32>
    %cst_13 = arith.constant 2.000000e+00 : f32
    %28 = vector.broadcast %cst_13 : f32 to vector<8x1xf32>
    %29 = arith.subf %28, %27 : vector<8x1xf32>
    %30 = arith.mulf %26, %29 : vector<8x1xf32>
    %31 = vector.broadcast %30 : vector<8x1xf32> to vector<8x8xf32>
    %32 = arith.mulf %25, %31 : vector<8x8xf32>
    %33 = vector.extract_strided_slice %13 {offsets = [1, 0], sizes = [1, 8], strides = [1, 1]} : vector<4x8xf32> to vector<1x8xf32>
    %34 = vector.broadcast %33 : vector<1x8xf32> to vector<8x8xf32>
    %35 = arith.addf %12, %34 : vector<8x8xf32>
    %cst_14 = arith.constant dense<0xFF800000> : vector<8xf32>
    %36 = vector.multi_reduction <maximumf>, %35, %cst_14 [1] : vector<8x8xf32> to vector<8xf32>
    %37 = vector.shape_cast %36 : vector<8xf32> to vector<8x1xf32>
    %38 = vector.broadcast %37 : vector<8x1xf32> to vector<8x8xf32>
    %39 = arith.subf %35, %38 : vector<8x8xf32>
    %40 = math.exp %39 : vector<8x8xf32>
    %cst_15 = arith.constant dense<0.000000e+00> : vector<8xf32>
    %41 = vector.multi_reduction <add>, %40, %cst_15 [1] : vector<8x8xf32> to vector<8xf32>
    %42 = vector.shape_cast %41 : vector<8xf32> to vector<8x1xf32>
    %c0_16 = arith.constant 0 : index
    %c8 = arith.constant 8 : index
    %43 = vector.load %arg13[%c0_16, %c8] : memref<8x32xf32, #tpu.memory_space<vmem>>, vector<8x8xf32>
    %cst_17 = arith.constant dense<0.000000e+00> : vector<8x8xf32>
    %44 = tpu.matmul %40, %43, %cst_17 {dimension_numbers = #tpu.dot_dimension_numbers<[1], [0], [0], [1], [0, 0, 1, 1], [], []>} : vector<8x8xf32>, vector<8x8xf32>, vector<8x8xf32> -> vector<8x8xf32>
    %45 = tpu.reciprocal %42 {approx = true} : vector<8x1xf32> -> vector<8x1xf32>
    %46 = arith.mulf %42, %45 : vector<8x1xf32>
    %cst_18 = arith.constant 2.000000e+00 : f32
    %47 = vector.broadcast %cst_18 : f32 to vector<8x1xf32>
    %48 = arith.subf %47, %46 : vector<8x1xf32>
    %49 = arith.mulf %45, %48 : vector<8x1xf32>
    %50 = vector.broadcast %49 : vector<8x1xf32> to vector<8x8xf32>
    %51 = arith.mulf %44, %50 : vector<8x8xf32>
    %52 = vector.extract_strided_slice %13 {offsets = [2, 0], sizes = [1, 8], strides = [1, 1]} : vector<4x8xf32> to vector<1x8xf32>
    %53 = vector.broadcast %52 : vector<1x8xf32> to vector<8x8xf32>
    %54 = arith.addf %12, %53 : vector<8x8xf32>
    %cst_19 = arith.constant dense<0xFF800000> : vector<8xf32>
    %55 = vector.multi_reduction <maximumf>, %54, %cst_19 [1] : vector<8x8xf32> to vector<8xf32>
    %56 = vector.shape_cast %55 : vector<8xf32> to vector<8x1xf32>
    %57 = vector.broadcast %56 : vector<8x1xf32> to vector<8x8xf32>
    %58 = arith.subf %54, %57 : vector<8x8xf32>
    %59 = math.exp %58 : vector<8x8xf32>
    %cst_20 = arith.constant dense<0.000000e+00> : vector<8xf32>
    %60 = vector.multi_reduction <add>, %59, %cst_20 [1] : vector<8x8xf32> to vector<8xf32>
    %61 = vector.shape_cast %60 : vector<8xf32> to vector<8x1xf32>
    %c0_21 = arith.constant 0 : index
    %c16 = arith.constant 16 : index
    %62 = vector.load %arg13[%c0_21, %c16] : memref<8x32xf32, #tpu.memory_space<vmem>>, vector<8x8xf32>
    %cst_22 = arith.constant dense<0.000000e+00> : vector<8x8xf32>
    %63 = tpu.matmul %59, %62, %cst_22 {dimension_numbers = #tpu.dot_dimension_numbers<[1], [0], [0], [1], [0, 0, 1, 1], [], []>} : vector<8x8xf32>, vector<8x8xf32>, vector<8x8xf32> -> vector<8x8xf32>
    %64 = tpu.reciprocal %61 {approx = true} : vector<8x1xf32> -> vector<8x1xf32>
    %65 = arith.mulf %61, %64 : vector<8x1xf32>
    %cst_23 = arith.constant 2.000000e+00 : f32
    %66 = vector.broadcast %cst_23 : f32 to vector<8x1xf32>
    %67 = arith.subf %66, %65 : vector<8x1xf32>
    %68 = arith.mulf %64, %67 : vector<8x1xf32>
    %69 = vector.broadcast %68 : vector<8x1xf32> to vector<8x8xf32>
    %70 = arith.mulf %63, %69 : vector<8x8xf32>
    %71 = vector.extract_strided_slice %13 {offsets = [3, 0], sizes = [1, 8], strides = [1, 1]} : vector<4x8xf32> to vector<1x8xf32>
    %72 = vector.broadcast %71 : vector<1x8xf32> to vector<8x8xf32>
    %73 = arith.addf %12, %72 : vector<8x8xf32>
    %cst_24 = arith.constant dense<0xFF800000> : vector<8xf32>
    %74 = vector.multi_reduction <maximumf>, %73, %cst_24 [1] : vector<8x8xf32> to vector<8xf32>
    %75 = vector.shape_cast %74 : vector<8xf32> to vector<8x1xf32>
    %76 = vector.broadcast %75 : vector<8x1xf32> to vector<8x8xf32>
    %77 = arith.subf %73, %76 : vector<8x8xf32>
    %78 = math.exp %77 : vector<8x8xf32>
    %cst_25 = arith.constant dense<0.000000e+00> : vector<8xf32>
    %79 = vector.multi_reduction <add>, %78, %cst_25 [1] : vector<8x8xf32> to vector<8xf32>
    %80 = vector.shape_cast %79 : vector<8xf32> to vector<8x1xf32>
    %c0_26 = arith.constant 0 : index
    %c24 = arith.constant 24 : index
    %81 = vector.load %arg13[%c0_26, %c24] : memref<8x32xf32, #tpu.memory_space<vmem>>, vector<8x8xf32>
    %cst_27 = arith.constant dense<0.000000e+00> : vector<8x8xf32>
    %82 = tpu.matmul %78, %81, %cst_27 {dimension_numbers = #tpu.dot_dimension_numbers<[1], [0], [0], [1], [0, 0, 1, 1], [], []>} : vector<8x8xf32>, vector<8x8xf32>, vector<8x8xf32> -> vector<8x8xf32>
    %83 = tpu.reciprocal %80 {approx = true} : vector<8x1xf32> -> vector<8x1xf32>
    %84 = arith.mulf %80, %83 : vector<8x1xf32>
    %cst_28 = arith.constant 2.000000e+00 : f32
    %85 = vector.broadcast %cst_28 : f32 to vector<8x1xf32>
    %86 = arith.subf %85, %84 : vector<8x1xf32>
    %87 = arith.mulf %83, %86 : vector<8x1xf32>
    %88 = vector.broadcast %87 : vector<8x1xf32> to vector<8x8xf32>
    %89 = arith.mulf %82, %88 : vector<8x8xf32>
    %90 = tpu.concatenate %32, %51, %70, %89 in 1 : vector<8x8xf32>, vector<8x8xf32>, vector<8x8xf32>, vector<8x8xf32> -> vector<8x32xf32>
    %91 = arith.addf %6, %90 : vector<8x32xf32>
    %c0_29 = arith.constant 0 : index
    %c0_30 = arith.constant 0 : index
    %92 = vector.load %arg6[%c0_29, %c0_30] : memref<32x64xf32, #tpu.memory_space<vmem>>, vector<32x64xf32>
    %cst_31 = arith.constant dense<0.000000e+00> : vector<8x64xf32>
    %93 = tpu.matmul %91, %92, %cst_31 {dimension_numbers = #tpu.dot_dimension_numbers<[1], [0], [0], [1], [0, 0, 1, 1], [], []>} : vector<8x32xf32>, vector<32x64xf32>, vector<8x64xf32> -> vector<8x64xf32>
    %c0_32 = arith.constant 0 : index
    %c0_33 = arith.constant 0 : index
    %94 = vector.load %arg7[%c0_32, %c0_33] : memref<1x64xf32, #tpu.memory_space<vmem>>, vector<1x64xf32>
    %95 = vector.broadcast %94 : vector<1x64xf32> to vector<8x64xf32>
    %96 = arith.addf %93, %95 : vector<8x64xf32>
    %cst_34 = arith.constant 5.000000e-01 : f32
    %97 = vector.broadcast %cst_34 : f32 to vector<8x64xf32>
    %98 = arith.mulf %97, %96 : vector<8x64xf32>
    %cst_35 = arith.constant 0.707106769 : f32
    %99 = vector.broadcast %cst_35 : f32 to vector<8x64xf32>
    %100 = arith.mulf %96, %99 : vector<8x64xf32>
    %cst_36 = arith.constant 0.000000e+00 : f32
    %101 = vector.broadcast %cst_36 : f32 to vector<8x64xf32>
    %102 = arith.cmpf oge, %100, %101 : vector<8x64xf32>
    %cst_37 = arith.constant 1.000000e+00 : f32
    %cst_38 = arith.constant -1.000000e+00 : f32
    %103 = vector.broadcast %cst_37 : f32 to vector<8x64xf32>
    %104 = vector.broadcast %cst_38 : f32 to vector<8x64xf32>
    %105 = arith.select %102, %103, %104 : vector<8x64xi1>, vector<8x64xf32>
    %106 = math.absf %100 : vector<8x64xf32>
    %cst_39 = arith.constant 0.327591091 : f32
    %107 = vector.broadcast %cst_39 : f32 to vector<8x64xf32>
    %108 = arith.mulf %107, %106 : vector<8x64xf32>
    %cst_40 = arith.constant 1.000000e+00 : f32
    %109 = vector.broadcast %cst_40 : f32 to vector<8x64xf32>
    %110 = arith.addf %109, %108 : vector<8x64xf32>
    %111 = tpu.reciprocal %110 {approx = true} : vector<8x64xf32> -> vector<8x64xf32>
    %112 = arith.mulf %110, %111 : vector<8x64xf32>
    %cst_41 = arith.constant 2.000000e+00 : f32
    %113 = vector.broadcast %cst_41 : f32 to vector<8x64xf32>
    %114 = arith.subf %113, %112 : vector<8x64xf32>
    %115 = arith.mulf %111, %114 : vector<8x64xf32>
    %cst_42 = arith.constant 1.06140542 : f32
    %116 = vector.broadcast %cst_42 : f32 to vector<8x64xf32>
    %117 = arith.mulf %115, %116 : vector<8x64xf32>
    %cst_43 = arith.constant -1.45315206 : f32
    %118 = vector.broadcast %cst_43 : f32 to vector<8x64xf32>
    %119 = arith.addf %118, %117 : vector<8x64xf32>
    %120 = arith.mulf %115, %119 : vector<8x64xf32>
    %cst_44 = arith.constant 1.42141378 : f32
    %121 = vector.broadcast %cst_44 : f32 to vector<8x64xf32>
    %122 = arith.addf %121, %120 : vector<8x64xf32>
    %123 = arith.mulf %115, %122 : vector<8x64xf32>
    %cst_45 = arith.constant -0.284496725 : f32
    %124 = vector.broadcast %cst_45 : f32 to vector<8x64xf32>
    %125 = arith.addf %124, %123 : vector<8x64xf32>
    %126 = arith.mulf %115, %125 : vector<8x64xf32>
    %cst_46 = arith.constant 0.254829586 : f32
    %127 = vector.broadcast %cst_46 : f32 to vector<8x64xf32>
    %128 = arith.addf %127, %126 : vector<8x64xf32>
    %129 = arith.mulf %115, %128 : vector<8x64xf32>
    %cst_47 = arith.constant 0.000000e+00 : f32
    %130 = vector.broadcast %cst_47 : f32 to vector<8x64xf32>
    %131 = arith.subf %130, %106 : vector<8x64xf32>
    %132 = arith.mulf %131, %106 : vector<8x64xf32>
    %133 = math.exp %132 : vector<8x64xf32>
    %134 = arith.mulf %129, %133 : vector<8x64xf32>
    %cst_48 = arith.constant 1.000000e+00 : f32
    %135 = vector.broadcast %cst_48 : f32 to vector<8x64xf32>
    %136 = arith.subf %135, %134 : vector<8x64xf32>
    %137 = arith.mulf %105, %136 : vector<8x64xf32>
    %cst_49 = arith.constant 1.000000e+00 : f32
    %138 = vector.broadcast %cst_49 : f32 to vector<8x64xf32>
    %139 = arith.addf %138, %137 : vector<8x64xf32>
    %140 = arith.mulf %98, %139 : vector<8x64xf32>
    %c0_50 = arith.constant 0 : index
    %c0_51 = arith.constant 0 : index
    %141 = vector.load %arg8[%c0_50, %c0_51] : memref<64x32xf32, #tpu.memory_space<vmem>>, vector<64x32xf32>
    %cst_52 = arith.constant dense<0.000000e+00> : vector<8x32xf32>
    %142 = tpu.matmul %140, %141, %cst_52 {dimension_numbers = #tpu.dot_dimension_numbers<[1], [0], [0], [1], [0, 0, 1, 1], [], []>} : vector<8x64xf32>, vector<64x32xf32>, vector<8x32xf32> -> vector<8x32xf32>
    %c0_53 = arith.constant 0 : index
    %c0_54 = arith.constant 0 : index
    %143 = vector.load %arg9[%c0_53, %c0_54] : memref<1x32xf32, #tpu.memory_space<vmem>>, vector<1x32xf32>
    %144 = vector.broadcast %143 : vector<1x32xf32> to vector<8x32xf32>
    %145 = arith.addf %142, %144 : vector<8x32xf32>
    %146 = arith.addf %145, %91 : vector<8x32xf32>
    %cst_55 = arith.constant dense<0.000000e+00> : vector<8xf32>
    %147 = vector.multi_reduction <add>, %146, %cst_55 [1] : vector<8x32xf32> to vector<8xf32>
    %148 = vector.shape_cast %147 : vector<8xf32> to vector<8x1xf32>
    %cst_56 = arith.constant 3.200000e+01 : f32
    %149 = vector.broadcast %cst_56 : f32 to vector<8x1xf32>
    %150 = arith.divf %148, %149 : vector<8x1xf32>
    %151 = vector.broadcast %150 : vector<8x1xf32> to vector<8x32xf32>
    %152 = arith.subf %146, %151 : vector<8x32xf32>
    %153 = arith.mulf %152, %152 : vector<8x32xf32>
    %cst_57 = arith.constant dense<0.000000e+00> : vector<8xf32>
    %154 = vector.multi_reduction <add>, %153, %cst_57 [1] : vector<8x32xf32> to vector<8xf32>
    %155 = vector.shape_cast %154 : vector<8xf32> to vector<8x1xf32>
    %cst_58 = arith.constant 3.200000e+01 : f32
    %156 = vector.broadcast %cst_58 : f32 to vector<8x1xf32>
    %157 = arith.divf %155, %156 : vector<8x1xf32>
    %cst_59 = arith.constant 9.99999996E-13 : f32
    %158 = vector.broadcast %cst_59 : f32 to vector<8x1xf32>
    %159 = arith.addf %157, %158 : vector<8x1xf32>
    %160 = math.rsqrt %159 : vector<8x1xf32>
    %161 = vector.broadcast %160 : vector<8x1xf32> to vector<8x32xf32>
    %162 = arith.mulf %152, %161 : vector<8x32xf32>
    %c0_60 = arith.constant 0 : index
    %c0_61 = arith.constant 0 : index
    %163 = vector.load %arg10[%c0_60, %c0_61] : memref<1x32xf32, #tpu.memory_space<vmem>>, vector<1x32xf32>
    %164 = vector.broadcast %163 : vector<1x32xf32> to vector<8x32xf32>
    %165 = arith.mulf %162, %164 : vector<8x32xf32>
    %c0_62 = arith.constant 0 : index
    %c0_63 = arith.constant 0 : index
    %166 = vector.load %arg11[%c0_62, %c0_63] : memref<1x32xf32, #tpu.memory_space<vmem>>, vector<1x32xf32>
    %167 = vector.broadcast %166 : vector<1x32xf32> to vector<8x32xf32>
    %168 = arith.addf %165, %167 : vector<8x32xf32>
    %c0_64 = arith.constant 0 : index
    %c0_65 = arith.constant 0 : index
    %c0_66 = arith.constant 0 : index
    %169 = vector.load %arg12[%c0_64, %c0_65, %c0_66] : memref<1x8x32xf32, #tpu.memory_space<vmem>>, vector<1x8x32xf32>
    %170 = vector.shape_cast %169 : vector<1x8x32xf32> to vector<8x32xf32>
    %171 = vector.shape_cast %168 : vector<8x32xf32> to vector<1x8x32xf32>
    tpu.vector_store %arg12[%c0_64, %c0_65, %c0_66], %171 {strides = array<i32>} : memref<1x8x32xf32, #tpu.memory_space<vmem>>, vector<1x8x32xf32>,
    return
  }
  func.func @transform_0(%arg0: i32, %arg1: i32) -> (i32, i32, i32) {
    %c0_i32 = arith.constant 0 : i32
    %c0_i32_0 = arith.constant 0 : i32
    %c0_i32_1 = arith.constant 0 : i32
    return %arg0, %c0_i32, %c0_i32_0 : i32, i32, i32
  }
  func.func @transform_1(%arg0: i32, %arg1: i32) -> (i32, i32) {
    %c0_i32 = arith.constant 0 : i32
    %c0_i32_0 = arith.constant 0 : i32
    %c0_i32_1 = arith.constant 0 : i32
    return %c0_i32, %c0_i32_0 : i32, i32
  }
  func.func @transform_2(%arg0: i32, %arg1: i32) -> (i32, i32) {
    %c0_i32 = arith.constant 0 : i32
    %c0_i32_0 = arith.constant 0 : i32
    %c0_i32_1 = arith.constant 0 : i32
    return %c0_i32, %c0_i32_0 : i32, i32
  }
  func.func @transform_3(%arg0: i32, %arg1: i32) -> (i32, i32) {
    %c0_i32 = arith.constant 0 : i32
    %c0_i32_0 = arith.constant 0 : i32
    %c0_i32_1 = arith.constant 0 : i32
    return %c0_i32, %c0_i32_0 : i32, i32
  }
  func.func @transform_4(%arg0: i32, %arg1: i32) -> (i32, i32) {
    %c0_i32 = arith.constant 0 : i32
    %c0_i32_0 = arith.constant 0 : i32
    %c0_i32_1 = arith.constant 0 : i32
    return %c0_i32, %c0_i32_0 : i32, i32
  }
  func.func @transform_5(%arg0: i32, %arg1: i32) -> (i32, i32) {
    %c0_i32 = arith.constant 0 : i32
    %c0_i32_0 = arith.constant 0 : i32
    %c0_i32_1 = arith.constant 0 : i32
    return %c0_i32, %c0_i32_0 : i32, i32
  }
  func.func @transform_6(%arg0: i32, %arg1: i32) -> (i32, i32) {
    %c0_i32 = arith.constant 0 : i32
    %c0_i32_0 = arith.constant 0 : i32
    %c0_i32_1 = arith.constant 0 : i32
    return %c0_i32, %c0_i32_0 : i32, i32
  }
  func.func @transform_7(%arg0: i32, %arg1: i32) -> (i32, i32) {
    %c0_i32 = arith.constant 0 : i32
    %c0_i32_0 = arith.constant 0 : i32
    %c0_i32_1 = arith.constant 0 : i32
    return %c0_i32, %c0_i32_0 : i32, i32
  }
  func.func @transform_8(%arg0: i32, %arg1: i32) -> (i32, i32) {
    %c0_i32 = arith.constant 0 : i32
    %c0_i32_0 = arith.constant 0 : i32
    %c0_i32_1 = arith.constant 0 : i32
    return %c0_i32, %c0_i32_0 : i32, i32
  }
  func.func @transform_9(%arg0: i32, %arg1: i32) -> (i32, i32) {
    %c0_i32 = arith.constant 0 : i32
    %c0_i32_0 = arith.constant 0 : i32
    %c0_i32_1 = arith.constant 0 : i32
    return %c0_i32, %c0_i32_0 : i32, i32
  }
  func.func @transform_10(%arg0: i32, %arg1: i32) -> (i32, i32, i32) {
    %c0_i32 = arith.constant 0 : i32
    %c0_i32_0 = arith.constant 0 : i32
    return %arg0, %arg1, %c0_i32 : i32, i32, i32
  }
}

module attributes {stable_mosaic.version = 11 : i64} {
  func.func @trans_attention_kernel(%arg0: i32, %arg1: i32, %arg2: memref<1x8x32xf32, #tpu.memory_space<vmem>>, %arg3: memref<4x32xf32, #tpu.memory_space<vmem>>, %arg4: memref<32x32xf32, #tpu.memory_space<vmem>>, %arg5: memref<1x32xf32, #tpu.memory_space<vmem>>, %arg6: memref<32x64xf32, #tpu.memory_space<vmem>>, %arg7: memref<1x64xf32, #tpu.memory_space<vmem>>, %arg8: memref<64x32xf32, #tpu.memory_space<vmem>>, %arg9: memref<1x32xf32, #tpu.memory_space<vmem>>, %arg10: memref<1x32xf32, #tpu.memory_space<vmem>>, %arg11: memref<1x32xf32, #tpu.memory_space<vmem>>, %arg12: memref<1x8x32xf32, #tpu.memory_space<vmem>>, %arg13: memref<8x32xf32, #tpu.memory_space<vmem>>, %arg14: memref<4x8xf32, #tpu.memory_space<vmem>>) attributes {dimension_semantics = [#tpu.dimension_semantics<parallel>, #tpu.dimension_semantics<arbitrary>], iteration_bounds = array<i64: 2, 1>, scalar_prefetch = 0 : i64, scratch_operands = 2 : i64, tpu.core_type = #tpu.core_type<tc>, window_params = [{transform_indices = @transform_0, window_bounds = array<i64: 1, 8, 32>}, {pipeline_mode = #tpu.pipeline_mode<synchronous>, transform_indices = @transform_1, window_bounds = array<i64: 4, 32>}, {pipeline_mode = #tpu.pipeline_mode<synchronous>, transform_indices = @transform_2, window_bounds = array<i64: 32, 32>}, {pipeline_mode = #tpu.pipeline_mode<synchronous>, transform_indices = @transform_3, window_bounds = array<i64: 1, 32>}, {pipeline_mode = #tpu.pipeline_mode<synchronous>, transform_indices = @transform_4, window_bounds = array<i64: 32, 64>}, {pipeline_mode = #tpu.pipeline_mode<synchronous>, transform_indices = @transform_5, window_bounds = array<i64: 1, 64>}, {pipeline_mode = #tpu.pipeline_mode<synchronous>, transform_indices = @transform_6, window_bounds = array<i64: 64, 32>}, {pipeline_mode = #tpu.pipeline_mode<synchronous>, transform_indices = @transform_7, window_bounds = array<i64: 1, 32>}, {pipeline_mode = #tpu.pipeline_mode<synchronous>, transform_indices = @transform_8, window_bounds = array<i64: 1, 32>}, {pipeline_mode = #tpu.pipeline_mode<synchronous>, transform_indices = @transform_9, window_bounds = array<i64: 1, 32>}, {transform_indices = @transform_10, window_bounds = array<i64: 1, 8, 32>}]} {
    %c0 = arith.constant 0 : index
    %c0_0 = arith.constant 0 : index
    %c0_1 = arith.constant 0 : index
    %0 = vector.load %arg2[%c0, %c0_0, %c0_1] : memref<1x8x32xf32, #tpu.memory_space<vmem>>, vector<1x8x32xf32>
    %1 = vector.shape_cast %0 : vector<1x8x32xf32> to vector<8x32xf32>
    %c8_i32 = arith.constant 8 : i32
    %2 = arith.muli %arg1, %c8_i32 : i32
    %3 = tpu.assume_multiple %2, 8 : i32
    %c0_2 = arith.constant 0 : index
    %4 = arith.index_cast %3 : i32 to index
    %c0_3 = arith.constant 0 : index
    %5 = vector.load %arg2[%c0_2, %4, %c0_3] : memref<1x8x32xf32, #tpu.memory_space<vmem>>, vector<1x8x32xf32>
    %6 = vector.shape_cast %5 : vector<1x8x32xf32> to vector<8x32xf32>
    %c0_i32 = arith.constant 0 : i32
    %7 = arith.cmpi eq, %arg1, %c0_i32 : i32
    %8 = arith.extui %7 : i1 to i32
    %c0_i32_4 = arith.constant 0 : i32
    %9 = arith.cmpi ne, %8, %c0_i32_4 : i32
    scf.if %9 {
      %c0_67 = arith.constant 0 : index
      %c0_68 = arith.constant 0 : index
      %172 = vector.load %arg4[%c0_67, %c0_68] : memref<32x32xf32, #tpu.memory_space<vmem>>, vector<32x32xf32>
      %cst_69 = arith.constant dense<0.000000e+00> : vector<8x32xf32>
      %173 = tpu.matmul %1, %172, %cst_69 {dimension_numbers = #tpu.dot_dimension_numbers<[1], [0], [0], [1], [0, 0, 1, 1], [], []>} : vector<8x32xf32>, vector<32x32xf32>, vector<8x32xf32> -> vector<8x32xf32>
      %c0_70 = arith.constant 0 : index
      %c0_71 = arith.constant 0 : index
      %174 = vector.load %arg5[%c0_70, %c0_71] : memref<1x32xf32, #tpu.memory_space<vmem>>, vector<1x32xf32>
      %175 = vector.broadcast %174 : vector<1x32xf32> to vector<8x32xf32>
      %176 = arith.addf %173, %175 : vector<8x32xf32>
      %c0_72 = arith.constant 0 : index
      %c0_73 = arith.constant 0 : index
      %177 = vector.load %arg13[%c0_72, %c0_73] : memref<8x32xf32, #tpu.memory_space<vmem>>, vector<8x32xf32>
      tpu.vector_store %arg13[%c0_72, %c0_73], %176 {strides = array<i32>} : memref<8x32xf32, #tpu.memory_space<vmem>>, vector<8x32xf32>,
      %c0_74 = arith.constant 0 : index
      %c0_75 = arith.constant 0 : index
      %178 = vector.load %arg3[%c0_74, %c0_75] : memref<4x32xf32, #tpu.memory_space<vmem>>, vector<4x32xf32>
      %cst_76 = arith.constant dense<0.000000e+00> : vector<4x8xf32>
      %179 = tpu.matmul %178, %1, %cst_76 {dimension_numbers = #tpu.dot_dimension_numbers<[1], [1], [0], [0], [0, 0, 1, 0], [], []>} : vector<4x32xf32>, vector<8x32xf32>, vector<4x8xf32> -> vector<4x8xf32>
      %cst_77 = arith.constant 1.000000e+00 : f32
      %180 = vector.broadcast %cst_77 : f32 to vector<1x32xf32>
      %181 = arith.mulf %1, %1 : vector<8x32xf32>
      %cst_78 = arith.constant dense<0.000000e+00> : vector<1x8xf32>
      %182 = tpu.matmul %180, %181, %cst_78 {dimension_numbers = #tpu.dot_dimension_numbers<[1], [1], [0], [0], [0, 0, 1, 0], [], []>} : vector<1x32xf32>, vector<8x32xf32>, vector<1x8xf32> -> vector<1x8xf32>
      %cst_79 = arith.constant 6.250000e-02 : f32
      %183 = vector.broadcast %cst_79 : f32 to vector<4x8xf32>
      %184 = arith.mulf %183, %179 : vector<4x8xf32>
      %cst_80 = arith.constant 3.125000e-02 : f32
      %185 = vector.broadcast %cst_80 : f32 to vector<1x8xf32>
      %186 = arith.mulf %185, %182 : vector<1x8xf32>
      %187 = vector.broadcast %186 : vector<1x8xf32> to vector<4x8xf32>
      %188 = arith.subf %184, %187 : vector<4x8xf32>
      %c0_81 = arith.constant 0 : index
      %c0_82 = arith.constant 0 : index
      %189 = vector.load %arg14[%c0_81, %c0_82] : memref<4x8xf32, #tpu.memory_space<vmem>>, vector<4x8xf32>
      tpu.vector_store %arg14[%c0_81, %c0_82], %188 {strides = array<i32>} : memref<4x8xf32, #tpu.memory_space<vmem>>, vector<4x8xf32>,
    } else {
    }
    %cst = arith.constant dense<0.000000e+00> : vector<8x8xf32>
    %10 = tpu.matmul %6, %1, %cst {dimension_numbers = #tpu.dot_dimension_numbers<[1], [1], [0], [0], [0, 0, 1, 0], [], []>} : vector<8x32xf32>, vector<8x32xf32>, vector<8x8xf32> -> vector<8x8xf32>
    %cst_5 = arith.constant 6.250000e-02 : f32
    %11 = vector.broadcast %cst_5 : f32 to vector<8x8xf32>
    %12 = arith.mulf %11, %10 : vector<8x8xf32>
    %c0_6 = arith.constant 0 : index
    %c0_7 = arith.constant 0 : index
    %13 = vector.load %arg14[%c0_6, %c0_7] : memref<4x8xf32, #tpu.memory_space<vmem>>, vector<4x8xf32>
    %14 = vector.extract_strided_slice %13 {offsets = [0, 0], sizes = [1, 8], strides = [1, 1]} : vector<4x8xf32> to vector<1x8xf32>
    %15 = vector.broadcast %14 : vector<1x8xf32> to vector<8x8xf32>
    %16 = arith.addf %12, %15 : vector<8x8xf32>
    %cst_8 = arith.constant dense<0xFF800000> : vector<8xf32>
    %17 = vector.multi_reduction <maximumf>, %16, %cst_8 [1] : vector<8x8xf32> to vector<8xf32>
    %18 = vector.shape_cast %17 : vector<8xf32> to vector<8x1xf32>
    %19 = vector.broadcast %18 : vector<8x1xf32> to vector<8x8xf32>
    %20 = arith.subf %16, %19 : vector<8x8xf32>
    %21 = math.exp %20 : vector<8x8xf32>
    %cst_9 = arith.constant dense<0.000000e+00> : vector<8xf32>
    %22 = vector.multi_reduction <add>, %21, %cst_9 [1] : vector<8x8xf32> to vector<8xf32>
    %23 = vector.shape_cast %22 : vector<8xf32> to vector<8x1xf32>
    %c0_10 = arith.constant 0 : index
    %c0_11 = arith.constant 0 : index
    %24 = vector.load %arg13[%c0_10, %c0_11] : memref<8x32xf32, #tpu.memory_space<vmem>>, vector<8x8xf32>
    %cst_12 = arith.constant dense<0.000000e+00> : vector<8x8xf32>
    %25 = tpu.matmul %21, %24, %cst_12 {dimension_numbers = #tpu.dot_dimension_numbers<[1], [0], [0], [1], [0, 0, 1, 1], [], []>} : vector<8x8xf32>, vector<8x8xf32>, vector<8x8xf32> -> vector<8x8xf32>
    %26 = tpu.reciprocal %23 {approx = true} : vector<8x1xf32> -> vector<8x1xf32>
    %27 = arith.mulf %23, %26 : vector<8x1xf32>
    %cst_13 = arith.constant 2.000000e+00 : f32
    %28 = vector.broadcast %cst_13 : f32 to vector<8x1xf32>
    %29 = arith.subf %28, %27 : vector<8x1xf32>
    %30 = arith.mulf %26, %29 : vector<8x1xf32>
    %31 = vector.broadcast %30 : vector<8x1xf32> to vector<8x8xf32>
    %32 = arith.mulf %25, %31 : vector<8x8xf32>
    %33 = vector.extract_strided_slice %13 {offsets = [1, 0], sizes = [1, 8], strides = [1, 1]} : vector<4x8xf32> to vector<1x8xf32>
    %34 = vector.broadcast %33 : vector<1x8xf32> to vector<8x8xf32>
    %35 = arith.addf %12, %34 : vector<8x8xf32>
    %cst_14 = arith.constant dense<0xFF800000> : vector<8xf32>
    %36 = vector.multi_reduction <maximumf>, %35, %cst_14 [1] : vector<8x8xf32> to vector<8xf32>
    %37 = vector.shape_cast %36 : vector<8xf32> to vector<8x1xf32>
    %38 = vector.broadcast %37 : vector<8x1xf32> to vector<8x8xf32>
    %39 = arith.subf %35, %38 : vector<8x8xf32>
    %40 = math.exp %39 : vector<8x8xf32>
    %cst_15 = arith.constant dense<0.000000e+00> : vector<8xf32>
    %41 = vector.multi_reduction <add>, %40, %cst_15 [1] : vector<8x8xf32> to vector<8xf32>
    %42 = vector.shape_cast %41 : vector<8xf32> to vector<8x1xf32>
    %c0_16 = arith.constant 0 : index
    %c8 = arith.constant 8 : index
    %43 = vector.load %arg13[%c0_16, %c8] : memref<8x32xf32, #tpu.memory_space<vmem>>, vector<8x8xf32>
    %cst_17 = arith.constant dense<0.000000e+00> : vector<8x8xf32>
    %44 = tpu.matmul %40, %43, %cst_17 {dimension_numbers = #tpu.dot_dimension_numbers<[1], [0], [0], [1], [0, 0, 1, 1], [], []>} : vector<8x8xf32>, vector<8x8xf32>, vector<8x8xf32> -> vector<8x8xf32>
    %45 = tpu.reciprocal %42 {approx = true} : vector<8x1xf32> -> vector<8x1xf32>
    %46 = arith.mulf %42, %45 : vector<8x1xf32>
    %cst_18 = arith.constant 2.000000e+00 : f32
    %47 = vector.broadcast %cst_18 : f32 to vector<8x1xf32>
    %48 = arith.subf %47, %46 : vector<8x1xf32>
    %49 = arith.mulf %45, %48 : vector<8x1xf32>
    %50 = vector.broadcast %49 : vector<8x1xf32> to vector<8x8xf32>
    %51 = arith.mulf %44, %50 : vector<8x8xf32>
    %52 = vector.extract_strided_slice %13 {offsets = [2, 0], sizes = [1, 8], strides = [1, 1]} : vector<4x8xf32> to vector<1x8xf32>
    %53 = vector.broadcast %52 : vector<1x8xf32> to vector<8x8xf32>
    %54 = arith.addf %12, %53 : vector<8x8xf32>
    %cst_19 = arith.constant dense<0xFF800000> : vector<8xf32>
    %55 = vector.multi_reduction <maximumf>, %54, %cst_19 [1] : vector<8x8xf32> to vector<8xf32>
    %56 = vector.shape_cast %55 : vector<8xf32> to vector<8x1xf32>
    %57 = vector.broadcast %56 : vector<8x1xf32> to vector<8x8xf32>
    %58 = arith.subf %54, %57 : vector<8x8xf32>
    %59 = math.exp %58 : vector<8x8xf32>
    %cst_20 = arith.constant dense<0.000000e+00> : vector<8xf32>
    %60 = vector.multi_reduction <add>, %59, %cst_20 [1] : vector<8x8xf32> to vector<8xf32>
    %61 = vector.shape_cast %60 : vector<8xf32> to vector<8x1xf32>
    %c0_21 = arith.constant 0 : index
    %c16 = arith.constant 16 : index
    %62 = vector.load %arg13[%c0_21, %c16] : memref<8x32xf32, #tpu.memory_space<vmem>>, vector<8x8xf32>
    %cst_22 = arith.constant dense<0.000000e+00> : vector<8x8xf32>
    %63 = tpu.matmul %59, %62, %cst_22 {dimension_numbers = #tpu.dot_dimension_numbers<[1], [0], [0], [1], [0, 0, 1, 1], [], []>} : vector<8x8xf32>, vector<8x8xf32>, vector<8x8xf32> -> vector<8x8xf32>
    %64 = tpu.reciprocal %61 {approx = true} : vector<8x1xf32> -> vector<8x1xf32>
    %65 = arith.mulf %61, %64 : vector<8x1xf32>
    %cst_23 = arith.constant 2.000000e+00 : f32
    %66 = vector.broadcast %cst_23 : f32 to vector<8x1xf32>
    %67 = arith.subf %66, %65 : vector<8x1xf32>
    %68 = arith.mulf %64, %67 : vector<8x1xf32>
    %69 = vector.broadcast %68 : vector<8x1xf32> to vector<8x8xf32>
    %70 = arith.mulf %63, %69 : vector<8x8xf32>
    %71 = vector.extract_strided_slice %13 {offsets = [3, 0], sizes = [1, 8], strides = [1, 1]} : vector<4x8xf32> to vector<1x8xf32>
    %72 = vector.broadcast %71 : vector<1x8xf32> to vector<8x8xf32>
    %73 = arith.addf %12, %72 : vector<8x8xf32>
    %cst_24 = arith.constant dense<0xFF800000> : vector<8xf32>
    %74 = vector.multi_reduction <maximumf>, %73, %cst_24 [1] : vector<8x8xf32> to vector<8xf32>
    %75 = vector.shape_cast %74 : vector<8xf32> to vector<8x1xf32>
    %76 = vector.broadcast %75 : vector<8x1xf32> to vector<8x8xf32>
    %77 = arith.subf %73, %76 : vector<8x8xf32>
    %78 = math.exp %77 : vector<8x8xf32>
    %cst_25 = arith.constant dense<0.000000e+00> : vector<8xf32>
    %79 = vector.multi_reduction <add>, %78, %cst_25 [1] : vector<8x8xf32> to vector<8xf32>
    %80 = vector.shape_cast %79 : vector<8xf32> to vector<8x1xf32>
    %c0_26 = arith.constant 0 : index
    %c24 = arith.constant 24 : index
    %81 = vector.load %arg13[%c0_26, %c24] : memref<8x32xf32, #tpu.memory_space<vmem>>, vector<8x8xf32>
    %cst_27 = arith.constant dense<0.000000e+00> : vector<8x8xf32>
    %82 = tpu.matmul %78, %81, %cst_27 {dimension_numbers = #tpu.dot_dimension_numbers<[1], [0], [0], [1], [0, 0, 1, 1], [], []>} : vector<8x8xf32>, vector<8x8xf32>, vector<8x8xf32> -> vector<8x8xf32>
    %83 = tpu.reciprocal %80 {approx = true} : vector<8x1xf32> -> vector<8x1xf32>
    %84 = arith.mulf %80, %83 : vector<8x1xf32>
    %cst_28 = arith.constant 2.000000e+00 : f32
    %85 = vector.broadcast %cst_28 : f32 to vector<8x1xf32>
    %86 = arith.subf %85, %84 : vector<8x1xf32>
    %87 = arith.mulf %83, %86 : vector<8x1xf32>
    %88 = vector.broadcast %87 : vector<8x1xf32> to vector<8x8xf32>
    %89 = arith.mulf %82, %88 : vector<8x8xf32>
    %90 = tpu.concatenate %32, %51, %70, %89 in 1 : vector<8x8xf32>, vector<8x8xf32>, vector<8x8xf32>, vector<8x8xf32> -> vector<8x32xf32>
    %91 = arith.addf %6, %90 : vector<8x32xf32>
    %c0_29 = arith.constant 0 : index
    %c0_30 = arith.constant 0 : index
    %92 = vector.load %arg6[%c0_29, %c0_30] : memref<32x64xf32, #tpu.memory_space<vmem>>, vector<32x64xf32>
    %cst_31 = arith.constant dense<0.000000e+00> : vector<8x64xf32>
    %93 = tpu.matmul %91, %92, %cst_31 {dimension_numbers = #tpu.dot_dimension_numbers<[1], [0], [0], [1], [0, 0, 1, 1], [], []>} : vector<8x32xf32>, vector<32x64xf32>, vector<8x64xf32> -> vector<8x64xf32>
    %c0_32 = arith.constant 0 : index
    %c0_33 = arith.constant 0 : index
    %94 = vector.load %arg7[%c0_32, %c0_33] : memref<1x64xf32, #tpu.memory_space<vmem>>, vector<1x64xf32>
    %95 = vector.broadcast %94 : vector<1x64xf32> to vector<8x64xf32>
    %96 = arith.addf %93, %95 : vector<8x64xf32>
    %cst_34 = arith.constant 5.000000e-01 : f32
    %97 = vector.broadcast %cst_34 : f32 to vector<8x64xf32>
    %98 = arith.mulf %97, %96 : vector<8x64xf32>
    %cst_35 = arith.constant 0.707106769 : f32
    %99 = vector.broadcast %cst_35 : f32 to vector<8x64xf32>
    %100 = arith.mulf %96, %99 : vector<8x64xf32>
    %cst_36 = arith.constant 0.000000e+00 : f32
    %101 = vector.broadcast %cst_36 : f32 to vector<8x64xf32>
    %102 = arith.cmpf oge, %100, %101 : vector<8x64xf32>
    %cst_37 = arith.constant 1.000000e+00 : f32
    %cst_38 = arith.constant -1.000000e+00 : f32
    %103 = vector.broadcast %cst_37 : f32 to vector<8x64xf32>
    %104 = vector.broadcast %cst_38 : f32 to vector<8x64xf32>
    %105 = arith.select %102, %103, %104 : vector<8x64xi1>, vector<8x64xf32>
    %106 = math.absf %100 : vector<8x64xf32>
    %cst_39 = arith.constant 0.327591091 : f32
    %107 = vector.broadcast %cst_39 : f32 to vector<8x64xf32>
    %108 = arith.mulf %107, %106 : vector<8x64xf32>
    %cst_40 = arith.constant 1.000000e+00 : f32
    %109 = vector.broadcast %cst_40 : f32 to vector<8x64xf32>
    %110 = arith.addf %109, %108 : vector<8x64xf32>
    %111 = tpu.reciprocal %110 {approx = true} : vector<8x64xf32> -> vector<8x64xf32>
    %112 = arith.mulf %110, %111 : vector<8x64xf32>
    %cst_41 = arith.constant 2.000000e+00 : f32
    %113 = vector.broadcast %cst_41 : f32 to vector<8x64xf32>
    %114 = arith.subf %113, %112 : vector<8x64xf32>
    %115 = arith.mulf %111, %114 : vector<8x64xf32>
    %cst_42 = arith.constant 1.06140542 : f32
    %116 = vector.broadcast %cst_42 : f32 to vector<8x64xf32>
    %117 = arith.mulf %115, %116 : vector<8x64xf32>
    %cst_43 = arith.constant -1.45315206 : f32
    %118 = vector.broadcast %cst_43 : f32 to vector<8x64xf32>
    %119 = arith.addf %118, %117 : vector<8x64xf32>
    %120 = arith.mulf %115, %119 : vector<8x64xf32>
    %cst_44 = arith.constant 1.42141378 : f32
    %121 = vector.broadcast %cst_44 : f32 to vector<8x64xf32>
    %122 = arith.addf %121, %120 : vector<8x64xf32>
    %123 = arith.mulf %115, %122 : vector<8x64xf32>
    %cst_45 = arith.constant -0.284496725 : f32
    %124 = vector.broadcast %cst_45 : f32 to vector<8x64xf32>
    %125 = arith.addf %124, %123 : vector<8x64xf32>
    %126 = arith.mulf %115, %125 : vector<8x64xf32>
    %cst_46 = arith.constant 0.254829586 : f32
    %127 = vector.broadcast %cst_46 : f32 to vector<8x64xf32>
    %128 = arith.addf %127, %126 : vector<8x64xf32>
    %129 = arith.mulf %115, %128 : vector<8x64xf32>
    %cst_47 = arith.constant 0.000000e+00 : f32
    %130 = vector.broadcast %cst_47 : f32 to vector<8x64xf32>
    %131 = arith.subf %130, %106 : vector<8x64xf32>
    %132 = arith.mulf %131, %106 : vector<8x64xf32>
    %133 = math.exp %132 : vector<8x64xf32>
    %134 = arith.mulf %129, %133 : vector<8x64xf32>
    %cst_48 = arith.constant 1.000000e+00 : f32
    %135 = vector.broadcast %cst_48 : f32 to vector<8x64xf32>
    %136 = arith.subf %135, %134 : vector<8x64xf32>
    %137 = arith.mulf %105, %136 : vector<8x64xf32>
    %cst_49 = arith.constant 1.000000e+00 : f32
    %138 = vector.broadcast %cst_49 : f32 to vector<8x64xf32>
    %139 = arith.addf %138, %137 : vector<8x64xf32>
    %140 = arith.mulf %98, %139 : vector<8x64xf32>
    %c0_50 = arith.constant 0 : index
    %c0_51 = arith.constant 0 : index
    %141 = vector.load %arg8[%c0_50, %c0_51] : memref<64x32xf32, #tpu.memory_space<vmem>>, vector<64x32xf32>
    %cst_52 = arith.constant dense<0.000000e+00> : vector<8x32xf32>
    %142 = tpu.matmul %140, %141, %cst_52 {dimension_numbers = #tpu.dot_dimension_numbers<[1], [0], [0], [1], [0, 0, 1, 1], [], []>} : vector<8x64xf32>, vector<64x32xf32>, vector<8x32xf32> -> vector<8x32xf32>
    %c0_53 = arith.constant 0 : index
    %c0_54 = arith.constant 0 : index
    %143 = vector.load %arg9[%c0_53, %c0_54] : memref<1x32xf32, #tpu.memory_space<vmem>>, vector<1x32xf32>
    %144 = vector.broadcast %143 : vector<1x32xf32> to vector<8x32xf32>
    %145 = arith.addf %142, %144 : vector<8x32xf32>
    %146 = arith.addf %145, %91 : vector<8x32xf32>
    %cst_55 = arith.constant dense<0.000000e+00> : vector<8xf32>
    %147 = vector.multi_reduction <add>, %146, %cst_55 [1] : vector<8x32xf32> to vector<8xf32>
    %148 = vector.shape_cast %147 : vector<8xf32> to vector<8x1xf32>
    %cst_56 = arith.constant 3.200000e+01 : f32
    %149 = vector.broadcast %cst_56 : f32 to vector<8x1xf32>
    %150 = arith.divf %148, %149 : vector<8x1xf32>
    %151 = vector.broadcast %150 : vector<8x1xf32> to vector<8x32xf32>
    %152 = arith.subf %146, %151 : vector<8x32xf32>
    %153 = arith.mulf %152, %152 : vector<8x32xf32>
    %cst_57 = arith.constant dense<0.000000e+00> : vector<8xf32>
    %154 = vector.multi_reduction <add>, %153, %cst_57 [1] : vector<8x32xf32> to vector<8xf32>
    %155 = vector.shape_cast %154 : vector<8xf32> to vector<8x1xf32>
    %cst_58 = arith.constant 3.200000e+01 : f32
    %156 = vector.broadcast %cst_58 : f32 to vector<8x1xf32>
    %157 = arith.divf %155, %156 : vector<8x1xf32>
    %cst_59 = arith.constant 9.99999996E-13 : f32
    %158 = vector.broadcast %cst_59 : f32 to vector<8x1xf32>
    %159 = arith.addf %157, %158 : vector<8x1xf32>
    %160 = math.rsqrt %159 : vector<8x1xf32>
    %161 = vector.broadcast %160 : vector<8x1xf32> to vector<8x32xf32>
    %162 = arith.mulf %152, %161 : vector<8x32xf32>
    %c0_60 = arith.constant 0 : index
    %c0_61 = arith.constant 0 : index
    %163 = vector.load %arg10[%c0_60, %c0_61] : memref<1x32xf32, #tpu.memory_space<vmem>>, vector<1x32xf32>
    %164 = vector.broadcast %163 : vector<1x32xf32> to vector<8x32xf32>
    %165 = arith.mulf %162, %164 : vector<8x32xf32>
    %c0_62 = arith.constant 0 : index
    %c0_63 = arith.constant 0 : index
    %166 = vector.load %arg11[%c0_62, %c0_63] : memref<1x32xf32, #tpu.memory_space<vmem>>, vector<1x32xf32>
    %167 = vector.broadcast %166 : vector<1x32xf32> to vector<8x32xf32>
    %168 = arith.addf %165, %167 : vector<8x32xf32>
    %c0_64 = arith.constant 0 : index
    %c0_65 = arith.constant 0 : index
    %c0_66 = arith.constant 0 : index
    %169 = vector.load %arg12[%c0_64, %c0_65, %c0_66] : memref<1x8x32xf32, #tpu.memory_space<vmem>>, vector<1x8x32xf32>
    %170 = vector.shape_cast %169 : vector<1x8x32xf32> to vector<8x32xf32>
    %171 = vector.shape_cast %168 : vector<8x32xf32> to vector<1x8x32xf32>
    tpu.vector_store %arg12[%c0_64, %c0_65, %c0_66], %171 {strides = array<i32>} : memref<1x8x32xf32, #tpu.memory_space<vmem>>, vector<1x8x32xf32>,
    return
  }
  func.func @transform_0(%arg0: i32, %arg1: i32) -> (i32, i32, i32) {
    %c0_i32 = arith.constant 0 : i32
    %c0_i32_0 = arith.constant 0 : i32
    %c0_i32_1 = arith.constant 0 : i32
    return %arg0, %c0_i32, %c0_i32_0 : i32, i32, i32
  }
  func.func @transform_1(%arg0: i32, %arg1: i32) -> (i32, i32) {
    %c0_i32 = arith.constant 0 : i32
    %c0_i32_0 = arith.constant 0 : i32
    %c0_i32_1 = arith.constant 0 : i32
    return %c0_i32, %c0_i32_0 : i32, i32
  }
  func.func @transform_2(%arg0: i32, %arg1: i32) -> (i32, i32) {
    %c0_i32 = arith.constant 0 : i32
    %c0_i32_0 = arith.constant 0 : i32
    %c0_i32_1 = arith.constant 0 : i32
    return %c0_i32, %c0_i32_0 : i32, i32
  }
  func.func @transform_3(%arg0: i32, %arg1: i32) -> (i32, i32) {
    %c0_i32 = arith.constant 0 : i32
    %c0_i32_0 = arith.constant 0 : i32
    %c0_i32_1 = arith.constant 0 : i32
    return %c0_i32, %c0_i32_0 : i32, i32
  }
  func.func @transform_4(%arg0: i32, %arg1: i32) -> (i32, i32) {
    %c0_i32 = arith.constant 0 : i32
    %c0_i32_0 = arith.constant 0 : i32
    %c0_i32_1 = arith.constant 0 : i32
    return %c0_i32, %c0_i32_0 : i32, i32
  }
  func.func @transform_5(%arg0: i32, %arg1: i32) -> (i32, i32) {
    %c0_i32 = arith.constant 0 : i32
    %c0_i32_0 = arith.constant 0 : i32
    %c0_i32_1 = arith.constant 0 : i32
    return %c0_i32, %c0_i32_0 : i32, i32
  }
  func.func @transform_6(%arg0: i32, %arg1: i32) -> (i32, i32) {
    %c0_i32 = arith.constant 0 : i32
    %c0_i32_0 = arith.constant 0 : i32
    %c0_i32_1 = arith.constant 0 : i32
    return %c0_i32, %c0_i32_0 : i32, i32
  }
  func.func @transform_7(%arg0: i32, %arg1: i32) -> (i32, i32) {
    %c0_i32 = arith.constant 0 : i32
    %c0_i32_0 = arith.constant 0 : i32
    %c0_i32_1 = arith.constant 0 : i32
    return %c0_i32, %c0_i32_0 : i32, i32
  }
  func.func @transform_8(%arg0: i32, %arg1: i32) -> (i32, i32) {
    %c0_i32 = arith.constant 0 : i32
    %c0_i32_0 = arith.constant 0 : i32
    %c0_i32_1 = arith.constant 0 : i32
    return %c0_i32, %c0_i32_0 : i32, i32
  }
  func.func @transform_9(%arg0: i32, %arg1: i32) -> (i32, i32) {
    %c0_i32 = arith.constant 0 : i32
    %c0_i32_0 = arith.constant 0 : i32
    %c0_i32_1 = arith.constant 0 : i32
    return %c0_i32, %c0_i32_0 : i32, i32
  }
  func.func @transform_10(%arg0: i32, %arg1: i32) -> (i32, i32, i32) {
    %c0_i32 = arith.constant 0 : i32
    %c0_i32_0 = arith.constant 0 : i32
    return %arg0, %arg1, %c0_i32 : i32, i32, i32
  }
}

</mosaic_0001>

<llo_original>
// kernel: tpu_custom_call.1
$region0: #{tpu_custom_call.1}
  #allocation0 [shape = 'u32[]', space=smem, size = 0x4, offset = 0x4, fixed_abs, tag = 'smem constant byte address 0x4 - core index']
  #allocation1 [shape = 'u32[144,128]{1,0:T(1,128)}', space=vmem, size = 0x12000, scoped, tag = 'internal scratch']
  #allocation2 [shape = 'f32[8,32]{1,0:T(8,128)}', space=vmem, size = 0x1000, scoped, tag = 'scratch operand']
  #allocation3 [shape = 'f32[4,8]{1,0:T(4,128)}', space=vmem, size = 0x800, scoped, tag = 'scratch operand']
  %s0 = inlined_call_operand.vmem [shape: f32[2,8,32], index: 0, kind: input, shape index: {}]
  %s1 = inlined_call_operand.vmem [shape: f32[4,32], index: 1, kind: input, shape index: {}]
  %s2 = inlined_call_operand.vmem [shape: f32[32,32], index: 2, kind: input, shape index: {}]
  %s3 = inlined_call_operand.vmem [shape: f32[1,32], index: 3, kind: input, shape index: {}]
  %s4 = inlined_call_operand.vmem [shape: f32[32,64], index: 4, kind: input, shape index: {}]
  %s5 = inlined_call_operand.vmem [shape: f32[1,64], index: 5, kind: input, shape index: {}]
  %s6 = inlined_call_operand.vmem [shape: f32[64,32], index: 6, kind: input, shape index: {}]
  %s7 = inlined_call_operand.vmem [shape: f32[1,32], index: 7, kind: input, shape index: {}]
  %s8 = inlined_call_operand.vmem [shape: f32[1,32], index: 8, kind: input, shape index: {}]
  %s9 = inlined_call_operand.vmem [shape: f32[1,32], index: 9, kind: input, shape index: {}]
  %s10 = inlined_call_operand.hbm [shape: f32[2,8,32], index: 10, kind: output, shape index: {}]
  %s11 = sld [smem:[#allocation0]]
  $region77: #{tpu_custom_call.1} parent=0
    _
  %s13 = ssub.s32 1, %s11
  %s14 = scalar_select 0, %s13, %s11
  $region1: #{tpu_custom_call.1} parent=0
    #allocation4 [shape = 'u8[8192]{0}', space=vmem, size = 0x2000, scoped, tag = 'output window, operand 0']
    #allocation5 [shape = 's32[2]{0}', space=sflag, size = 0x8, scoped, tag = 'scoped memory for tpu_custom_call.1']
    %15 = vsyncpa [#allocation5], 0
    %s16 = scalar_lea.sflag [#allocation5], 1
    %17 = vsyncpa %s16, 0
    loop: start=0, step=1, limit=4
    $region2: #{tpu_custom_call.1} parent=1 // loop_pre_header
      _
    $region3: #{tpu_custom_call.1} parent=1 // loop_header
      %s19 = sphi 0, %s23
      %p20 = scmp.ge.s32.totalorder %s19, 4
      %s26 = sphi 0, %s38
      %s27 = sphi 0, %s34
      %s28 = sphi 0, %s26
      %s29 = sphi 0, %s27
      %s30 = sphi 0, %s28
      %s31 = sphi 0, %s29
      %s41 = sphi 0, %s43
      %s44 = sphi 0, %s41
      %s45 = sphi 0, %s44
      %s61 = sphi 0, %s45
      %s65 = sphi 0, %s65
      %s67 = sphi 0, %s65
      %s68 = sphi 0, %s67
      %s82 = sphi 0, %s68
      %s86 = sphi 0, %s86
      %s88 = sphi 0, %s86
      %s89 = sphi 0, %s88
      %s103 = sphi 0, %s89
      %s107 = sphi 0, %s107
      %s109 = sphi 0, %s107
      %s110 = sphi 0, %s109
      %s124 = sphi 0, %s110
      %s128 = sphi 0, %s128
      %s130 = sphi 0, %s128
      %s131 = sphi 0, %s130
      %s145 = sphi 0, %s131
      %s149 = sphi 0, %s149
      %s151 = sphi 0, %s149
      %s152 = sphi 0, %s151
      %s166 = sphi 0, %s152
      %s170 = sphi 0, %s170
      %s172 = sphi 0, %s170
      %s173 = sphi 0, %s172
      %s187 = sphi 0, %s173
      %s191 = sphi 0, %s191
      %s193 = sphi 0, %s191
      %s194 = sphi 0, %s193
      %s208 = sphi 0, %s194
      %s212 = sphi 0, %s212
      %s214 = sphi 0, %s212
      %s215 = sphi 0, %s214
      %s229 = sphi 0, %s215
      %s233 = sphi 0, %s233
      %s235 = sphi 0, %s233
      %s236 = sphi 0, %s235
      %s250 = sphi 0, %s236
      %s258 = sphi 0, %s260
      %s261 = sphi 0, %s258
      %s262 = sphi 0, %s261
      %s278 = sphi 0, %s262
    $region4: #{tpu_custom_call.1} parent=1 // loop_header_branch
      %22 = sbr.rel (%p20) target = $region8
    $region5: #{tpu_custom_call.1} parent=1 // loop_body
      %s24 = ssub.s32 %s19, 1
      %s25 = ssub.s32 %s19, 2
      %s32 = sadd.s32 1, %s27
      %p33 = scmp.ge.s32.totalorder %s32, 1
      %s34 = scalar_select %p33, 0, %s32
      %s35 = sadd.s32 1, %s26
      %s36 = scalar_select %p33, %s35, %s26
      %p37 = scmp.ge.s32.totalorder %s36, 2
      %s38 = scalar_select %p37, 0, %s36
      %s39 = ssub.s32 %s26, %s38
      %p40 = scmp.eq.s32.totalorder %s39, 0
      %s42 = sadd.s32 %s41, 1
      %s43 = scalar_select %p40, %s41, %s42
      %p46 = pneg %p40
      %p47 = scmp.eq.s32.totalorder %s19, 1
      %p48 = por %p46, %p47
      %p49 = scmp.ne.s32.totalorder %s41, %s44
      %p50 = scmp.eq.s32.totalorder %s19, 0
      %p51 = por %p49, %p50
      %p52 = scmp.ne.s32.totalorder %s41, %s44
      %p53 = scmp.eq.s32.totalorder %s24, 1
      %p54 = por %p52, %p53
      %p55 = scmp.ne.s32.totalorder %s44, %s45
      %p56 = scmp.eq.s32.totalorder %s24, 0
      %p57 = por %p55, %p56
      %p58 = scmp.ne.s32.totalorder %s44, %s45
      %p59 = scmp.eq.s32.totalorder %s25, 1
      %p60 = por %p58, %p59
      %p62 = scmp.ne.s32.totalorder %s45, %s61
      %p63 = scmp.eq.s32.totalorder %s25, 0
      %p64 = por %p62, %p63
      %s66 = sadd.s32 %s65, 1
      %p69 = scmp.eq.s32.totalorder %s19, 1
      %p70 = scmp.ne.s32.totalorder %s65, %s67
      %p71 = scmp.eq.s32.totalorder %s19, 0
      %p72 = por %p70, %p71
      %p73 = scmp.ne.s32.totalorder %s65, %s67
      %p74 = scmp.eq.s32.totalorder %s24, 1
      %p75 = por %p73, %p74
      %p76 = scmp.ne.s32.totalorder %s67, %s68
      %p77 = scmp.eq.s32.totalorder %s24, 0
      %p78 = por %p76, %p77
      %p79 = scmp.ne.s32.totalorder %s67, %s68
      %p80 = scmp.eq.s32.totalorder %s25, 1
      %p81 = por %p79, %p80
      %p83 = scmp.ne.s32.totalorder %s68, %s82
      %p84 = scmp.eq.s32.totalorder %s25, 0
      %p85 = por %p83, %p84
      %s87 = sadd.s32 %s86, 1
      %p90 = scmp.eq.s32.totalorder %s19, 1
      %p91 = scmp.ne.s32.totalorder %s86, %s88
      %p92 = scmp.eq.s32.totalorder %s19, 0
      %p93 = por %p91, %p92
      %p94 = scmp.ne.s32.totalorder %s86, %s88
      %p95 = scmp.eq.s32.totalorder %s24, 1
      %p96 = por %p94, %p95
      %p97 = scmp.ne.s32.totalorder %s88, %s89
      %p98 = scmp.eq.s32.totalorder %s24, 0
      %p99 = por %p97, %p98
      %p100 = scmp.ne.s32.totalorder %s88, %s89
      %p101 = scmp.eq.s32.totalorder %s25, 1
      %p102 = por %p100, %p101
      %p104 = scmp.ne.s32.totalorder %s89, %s103
      %p105 = scmp.eq.s32.totalorder %s25, 0
      %p106 = por %p104, %p105
      %s108 = sadd.s32 %s107, 1
      %p111 = scmp.eq.s32.totalorder %s19, 1
      %p112 = scmp.ne.s32.totalorder %s107, %s109
      %p113 = scmp.eq.s32.totalorder %s19, 0
      %p114 = por %p112, %p113
      %p115 = scmp.ne.s32.totalorder %s107, %s109
      %p116 = scmp.eq.s32.totalorder %s24, 1
      %p117 = por %p115, %p116
      %p118 = scmp.ne.s32.totalorder %s109, %s110
      %p119 = scmp.eq.s32.totalorder %s24, 0
      %p120 = por %p118, %p119
      %p121 = scmp.ne.s32.totalorder %s109, %s110
      %p122 = scmp.eq.s32.totalorder %s25, 1
      %p123 = por %p121, %p122
      %p125 = scmp.ne.s32.totalorder %s110, %s124
      %p126 = scmp.eq.s32.totalorder %s25, 0
      %p127 = por %p125, %p126
      %s129 = sadd.s32 %s128, 1
      %p132 = scmp.eq.s32.totalorder %s19, 1
      %p133 = scmp.ne.s32.totalorder %s128, %s130
      %p134 = scmp.eq.s32.totalorder %s19, 0
      %p135 = por %p133, %p134
      %p136 = scmp.ne.s32.totalorder %s128, %s130
      %p137 = scmp.eq.s32.totalorder %s24, 1
      %p138 = por %p136, %p137
      %p139 = scmp.ne.s32.totalorder %s130, %s131
      %p140 = scmp.eq.s32.totalorder %s24, 0
      %p141 = por %p139, %p140
      %p142 = scmp.ne.s32.totalorder %s130, %s131
      %p143 = scmp.eq.s32.totalorder %s25, 1
      %p144 = por %p142, %p143
      %p146 = scmp.ne.s32.totalorder %s131, %s145
      %p147 = scmp.eq.s32.totalorder %s25, 0
      %p148 = por %p146, %p147
      %s150 = sadd.s32 %s149, 1
      %p153 = scmp.eq.s32.totalorder %s19, 1
      %p154 = scmp.ne.s32.totalorder %s149, %s151
      %p155 = scmp.eq.s32.totalorder %s19, 0
      %p156 = por %p154, %p155
      %p157 = scmp.ne.s32.totalorder %s149, %s151
      %p158 = scmp.eq.s32.totalorder %s24, 1
      %p159 = por %p157, %p158
      %p160 = scmp.ne.s32.totalorder %s151, %s152
      %p161 = scmp.eq.s32.totalorder %s24, 0
      %p162 = por %p160, %p161
      %p163 = scmp.ne.s32.totalorder %s151, %s152
      %p164 = scmp.eq.s32.totalorder %s25, 1
      %p165 = por %p163, %p164
      %p167 = scmp.ne.s32.totalorder %s152, %s166
      %p168 = scmp.eq.s32.totalorder %s25, 0
      %p169 = por %p167, %p168
      %s171 = sadd.s32 %s170, 1
      %p174 = scmp.eq.s32.totalorder %s19, 1
      %p175 = scmp.ne.s32.totalorder %s170, %s172
      %p176 = scmp.eq.s32.totalorder %s19, 0
      %p177 = por %p175, %p176
      %p178 = scmp.ne.s32.totalorder %s170, %s172
      %p179 = scmp.eq.s32.totalorder %s24, 1
      %p180 = por %p178, %p179
      %p181 = scmp.ne.s32.totalorder %s172, %s173
      %p182 = scmp.eq.s32.totalorder %s24, 0
      %p183 = por %p181, %p182
      %p184 = scmp.ne.s32.totalorder %s172, %s173
      %p185 = scmp.eq.s32.totalorder %s25, 1
      %p186 = por %p184, %p185
      %p188 = scmp.ne.s32.totalorder %s173, %s187
      %p189 = scmp.eq.s32.totalorder %s25, 0
      %p190 = por %p188, %p189
      %s192 = sadd.s32 %s191, 1
      %p195 = scmp.eq.s32.totalorder %s19, 1
      %p196 = scmp.ne.s32.totalorder %s191, %s193
      %p197 = scmp.eq.s32.totalorder %s19, 0
      %p198 = por %p196, %p197
      %p199 = scmp.ne.s32.totalorder %s191, %s193
      %p200 = scmp.eq.s32.totalorder %s24, 1
      %p201 = por %p199, %p200
      %p202 = scmp.ne.s32.totalorder %s193, %s194
      %p203 = scmp.eq.s32.totalorder %s24, 0
      %p204 = por %p202, %p203
      %p205 = scmp.ne.s32.totalorder %s193, %s194
      %p206 = scmp.eq.s32.totalorder %s25, 1
      %p207 = por %p205, %p206
      %p209 = scmp.ne.s32.totalorder %s194, %s208
      %p210 = scmp.eq.s32.totalorder %s25, 0
      %p211 = por %p209, %p210
      %s213 = sadd.s32 %s212, 1
      %p216 = scmp.eq.s32.totalorder %s19, 1
      %p217 = scmp.ne.s32.totalorder %s212, %s214
      %p218 = scmp.eq.s32.totalorder %s19, 0
      %p219 = por %p217, %p218
      %p220 = scmp.ne.s32.totalorder %s212, %s214
      %p221 = scmp.eq.s32.totalorder %s24, 1
      %p222 = por %p220, %p221
      %p223 = scmp.ne.s32.totalorder %s214, %s215
      %p224 = scmp.eq.s32.totalorder %s24, 0
      %p225 = por %p223, %p224
      %p226 = scmp.ne.s32.totalorder %s214, %s215
      %p227 = scmp.eq.s32.totalorder %s25, 1
      %p228 = por %p226, %p227
      %p230 = scmp.ne.s32.totalorder %s215, %s229
      %p231 = scmp.eq.s32.totalorder %s25, 0
      %p232 = por %p230, %p231
      %s234 = sadd.s32 %s233, 1
      %p237 = scmp.eq.s32.totalorder %s19, 1
      %p238 = scmp.ne.s32.totalorder %s233, %s235
      %p239 = scmp.eq.s32.totalorder %s19, 0
      %p240 = por %p238, %p239
      %p241 = scmp.ne.s32.totalorder %s233, %s235
      %p242 = scmp.eq.s32.totalorder %s24, 1
      %p243 = por %p241, %p242
      %p244 = scmp.ne.s32.totalorder %s235, %s236
      %p245 = scmp.eq.s32.totalorder %s24, 0
      %p246 = por %p244, %p245
      %p247 = scmp.ne.s32.totalorder %s235, %s236
      %p248 = scmp.eq.s32.totalorder %s25, 1
      %p249 = por %p247, %p248
      %p251 = scmp.ne.s32.totalorder %s236, %s250
      %p252 = scmp.eq.s32.totalorder %s25, 0
      %p253 = por %p251, %p252
      %s254 = ssub.s32 %s26, %s38
      %s255 = ssub.s32 %s27, %s34
      %s256 = sor.u32 %s254, %s255
      %p257 = scmp.eq.s32.totalorder %s256, 0
      %s259 = sadd.s32 %s258, 1
      %s260 = scalar_select %p257, %s258, %s259
      %p263 = pneg %p257
      %p264 = scmp.eq.s32.totalorder %s19, 1
      %p265 = por %p263, %p264
      %p266 = scmp.ne.s32.totalorder %s258, %s261
      %p267 = scmp.eq.s32.totalorder %s19, 0
      %p268 = por %p266, %p267
      %p269 = scmp.ne.s32.totalorder %s258, %s261
      %p270 = scmp.eq.s32.totalorder %s24, 1
      %p271 = por %p269, %p270
      %p272 = scmp.ne.s32.totalorder %s261, %s262
      %p273 = scmp.eq.s32.totalorder %s24, 0
      %p274 = por %p272, %p273
      %p275 = scmp.ne.s32.totalorder %s261, %s262
      %p276 = scmp.eq.s32.totalorder %s25, 1
      %p277 = por %p275, %p276
      %p279 = scmp.ne.s32.totalorder %s262, %s278
      %p280 = scmp.eq.s32.totalorder %s25, 0
      %p281 = por %p279, %p280
      %p282 = scmp.le.s32.totalorder 1, %s19
      %p283 = scmp.lt.s32.totalorder %s19, 3
      %p284 = pnand %p282, %p283
      %p285 = pneg %p284
      // Predicated region
      $region9: #{tpu_custom_call.1} parent=5 // pred_check
        _
      $region10: #{tpu_custom_call.1} parent=5 // pred_check_branch
        %287 = sbr.rel (%p284) target = $region12
      $region11: #{tpu_custom_call.1} parent=5 // pred_region
        %s288 = ssub.s32 %s19, 1
        // Predicated region
        $region13: #{tpu_custom_call.1} parent=11 // pred_check
          %p289 = pneg %p78
        $region14: #{tpu_custom_call.1} parent=11 // pred_check_branch
          %291 = sbr.rel (%p289) target = $region16
        $region15: #{tpu_custom_call.1} parent=11 // pred_region
          _
        $region16: #{tpu_custom_call.1} parent=11 // pred_fallthru
          _
        // Predicated region
        $region17: #{tpu_custom_call.1} parent=11 // pred_check
          %p292 = pneg %p99
        $region18: #{tpu_custom_call.1} parent=11 // pred_check_branch
          %294 = sbr.rel (%p292) target = $region20
        $region19: #{tpu_custom_call.1} parent=11 // pred_region
          _
        $region20: #{tpu_custom_call.1} parent=11 // pred_fallthru
          _
        // Predicated region
        $region21: #{tpu_custom_call.1} parent=11 // pred_check
          %p295 = pneg %p120
        $region22: #{tpu_custom_call.1} parent=11 // pred_check_branch
          %297 = sbr.rel (%p295) target = $region24
        $region23: #{tpu_custom_call.1} parent=11 // pred_region
          _
        $region24: #{tpu_custom_call.1} parent=11 // pred_fallthru
          _
        // Predicated region
        $region25: #{tpu_custom_call.1} parent=11 // pred_check
          %p298 = pneg %p141
        $region26: #{tpu_custom_call.1} parent=11 // pred_check_branch
          %300 = sbr.rel (%p298) target = $region28
        $region27: #{tpu_custom_call.1} parent=11 // pred_region
          _
        $region28: #{tpu_custom_call.1} parent=11 // pred_fallthru
          _
        // Predicated region
        $region29: #{tpu_custom_call.1} parent=11 // pred_check
          %p301 = pneg %p162
        $region30: #{tpu_custom_call.1} parent=11 // pred_check_branch
          %303 = sbr.rel (%p301) target = $region32
        $region31: #{tpu_custom_call.1} parent=11 // pred_region
          _
        $region32: #{tpu_custom_call.1} parent=11 // pred_fallthru
          _
        // Predicated region
        $region33: #{tpu_custom_call.1} parent=11 // pred_check
          %p304 = pneg %p183
        $region34: #{tpu_custom_call.1} parent=11 // pred_check_branch
          %306 = sbr.rel (%p304) target = $region36
        $region35: #{tpu_custom_call.1} parent=11 // pred_region
          _
        $region36: #{tpu_custom_call.1} parent=11 // pred_fallthru
          _
        // Predicated region
        $region37: #{tpu_custom_call.1} parent=11 // pred_check
          %p307 = pneg %p204
        $region38: #{tpu_custom_call.1} parent=11 // pred_check_branch
          %309 = sbr.rel (%p307) target = $region40
        $region39: #{tpu_custom_call.1} parent=11 // pred_region
          _
        $region40: #{tpu_custom_call.1} parent=11 // pred_fallthru
          _
        // Predicated region
        $region41: #{tpu_custom_call.1} parent=11 // pred_check
          %p310 = pneg %p225
        $region42: #{tpu_custom_call.1} parent=11 // pred_check_branch
          %312 = sbr.rel (%p310) target = $region44
        $region43: #{tpu_custom_call.1} parent=11 // pred_region
          _
        $region44: #{tpu_custom_call.1} parent=11 // pred_fallthru
          _
        // Predicated region
        $region45: #{tpu_custom_call.1} parent=11 // pred_check
          %p313 = pneg %p246
        $region46: #{tpu_custom_call.1} parent=11 // pred_check_branch
          %315 = sbr.rel (%p313) target = $region48
        $region47: #{tpu_custom_call.1} parent=11 // pred_region
          _
        $region48: #{tpu_custom_call.1} parent=11 // pred_fallthru
          _
      $region12: #{tpu_custom_call.1} parent=5 // pred_fallthru
        _
      %p316 = scmp.lt.s32.totalorder %s19, 2
      // Predicated region
      $region49: #{tpu_custom_call.1} parent=5 // pred_check
        %p317 = pneg %p316
      $region50: #{tpu_custom_call.1} parent=5 // pred_check_branch
        %319 = sbr.rel (%p317) target = $region52
      $region51: #{tpu_custom_call.1} parent=5 // pred_region
        // Predicated region
        $region53: #{tpu_custom_call.1} parent=51 // pred_check
          %p320 = pneg %p51
        $region54: #{tpu_custom_call.1} parent=51 // pred_check_branch
          %322 = sbr.rel (%p320) target = $region56
        $region55: #{tpu_custom_call.1} parent=51 // pred_region
          %p323 = scmp.lt.s32.totalorder %s26, 1
          %s324 = scalar_select %p323, %s26, 1
          %s325 = smul.addr %s324, 8
          %s326 = scalar_lea.vmem %s0, %s325
        $region56: #{tpu_custom_call.1} parent=51 // pred_fallthru
          _
      $region52: #{tpu_custom_call.1} parent=5 // pred_fallthru
        _
      %p327 = scmp.le.s32.totalorder 1, %s19
      %p328 = scmp.lt.s32.totalorder %s19, 3
      %p329 = pnand %p327, %p328
      %p330 = pneg %p329
      // Predicated region
      $region57: #{tpu_custom_call.1} parent=5 // pred_check
        _
      $region58: #{tpu_custom_call.1} parent=5 // pred_check_branch
        %332 = sbr.rel (%p329) target = $region60
      $region59: #{tpu_custom_call.1} parent=5 // pred_region
        %s333 = ssub.s32 %s19, 1
        %p334 = scmp.lt.s32.totalorder %s28, 1
        %s335 = scalar_select %p334, %s28, 1
        %s336 = smul.addr %s335, 8
        %s337 = scalar_lea.vmem %s0, %s336
        %p338 = pneg %p57
        %p339 = pneg %p54
        %p340 = pneg %p78
        %p341 = pneg %p75
        %p342 = pneg %p99
        %p343 = pneg %p96
        %p344 = pneg %p120
        %p345 = pneg %p117
        %p346 = pneg %p141
        %p347 = pneg %p138
        %p348 = pneg %p162
        %p349 = pneg %p159
        %p350 = pneg %p183
        %p351 = pneg %p180
        %p352 = pneg %p204
        %p353 = pneg %p201
        %p354 = pneg %p225
        %p355 = pneg %p222
        %p356 = pneg %p246
        %p357 = pneg %p243
        %p358 = pneg %p274
        %p359 = pneg %p271
        %s360 = sand.u32 %s261, 1
        %s361 = scalar_lea.sflag [#allocation5], %s360
        %s362 = sand.u32 %s261, 1
        %s363 = smul.addr %s362, 8
        %s364 = scalar_lea.vmem [#allocation4], %s363
        %p365 = scmp.lt.s32.totalorder %s28, 1
        %s366 = scalar_select %p365, %s28, 1
        %s367 = smul.addr %s366, 8
        %s368 = scalar_lea.vmem %s0, %s367
        %v369 = vld [vmem:[%s368] sm:$0xff]
        %s370 = smul.u32 %s29, 8
        %s371 = scalar_lea.vmem %s368, %s370
        %v372 = vld [vmem:[%s371] sm:$0xff]
        %p373 = scmp.eq.s32.totalorder %s29, 0
        // Predicated region
        $region61: #{tpu_custom_call.1} parent=59 // pred_check
          %p374 = pneg %p373
        $region62: #{tpu_custom_call.1} parent=59 // pred_check_branch
          %376 = sbr.rel (%p374) target = $region64
        $region63: #{tpu_custom_call.1} parent=59 // pred_region
          %v377 = vld [vmem:[%s2] sm:$0xff]
          %v378 = vld [vmem:[%s2 + $0x8] sm:$0xff]
          %v379 = vld [vmem:[%s2 + $0x10] sm:$0xff]
          %v380 = vld [vmem:[%s2 + $0x18] sm:$0xff]
          %v381 = vld [vmem:[%s3] sm:$0x1]
          %v383 = vlaneseq
          %v384 = vshrl.u32 %v383, 7
          %v385 = vsub.s32 0, %v384
          %v386 = vrot.slane %v381, %v385
          %vm388 = vcmask 261120
          %v390 = vsel %vm388, %v369, 0
          %392 = vmatprep.subr.mxu0 0.0
          %393 = vmatpush1.msra.mxu0 %v377
          %394 = vmatprep.subr.mxu0 0.0
          %395 = vmatpush1.msra.mxu0 %v378
          %396 = vmatprep.subr.mxu0 0.0
          %397 = vmatpush1.msra.mxu0 %v379
          %398 = vmatprep.subr.mxu0 0.0
          %399 = vmatpush1.msra.mxu0 %v380
          %400 = vmatprep.subr.mxu0 0.0
          %401 = vmatpush1.msra.mxu0 0.0
          %402 = vmatprep.subr.mxu0 0.0
          %403 = vmatpush1.msra.mxu0 0.0
          %404 = vmatprep.subr.mxu0 0.0
          %405 = vmatpush1.msra.mxu0 0.0
          %406 = vmatprep.subr.mxu0 0.0
          %407 = vmatpush1.msra.mxu0 0.0
          %408 = vmatprep.subr.mxu0 0.0
          %409 = vmatpush1.msra.mxu0 0.0
          %410 = vmatprep.subr.mxu0 0.0
          %411 = vmatpush1.msra.mxu0 0.0
          %412 = vmatprep.subr.mxu0 0.0
          %413 = vmatpush1.msra.mxu0 0.0
          %414 = vmatprep.subr.mxu0 0.0
          %415 = vmatpush1.msra.mxu0 0.0
          %416 = vmatprep.subr.mxu0 0.0
          %417 = vmatpush1.msra.mxu0 0.0
          %418 = vmatprep.subr.mxu0 0.0
          %419 = vmatpush1.msra.mxu0 0.0
          %420 = vmatprep.subr.mxu0 0.0
          %421 = vmatpush1.msra.mxu0 0.0
          %422 = vmatprep.subr.mxu0 0.0
          %423 = vmatpush1.msra.mxu0 0.0
          %424 = vmatprep.subr.mxu0 0.0
          %425 = vmatpush1.msra.mxu0 0.0
          %426 = vmatprep.subr.mxu0 0.0
          %427 = vmatpush1.msra.mxu0 0.0
          %428 = vmatprep.subr.mxu0 0.0
          %429 = vmatpush1.msra.mxu0 0.0
          %430 = vmatprep.subr.mxu0 0.0
          %431 = vmatpush1.msra.mxu0 0.0
          %432 = vmatprep.subr.mxu0 0.0
          %433 = vmatpush1.msra.mxu0 0.0
          %434 = vmatprep.subr.mxu0 0.0
          %435 = vmatpush1.msra.mxu0 0.0
          %436 = vmatprep.subr.mxu0 0.0
          %437 = vmatpush1.msra.mxu0 0.0
          %438 = vmatprep.subr.mxu0 0.0
          %439 = vmatpush1.msra.mxu0 0.0
          %440 = vmatprep.subr.mxu0 0.0
          %441 = vmatpush1.msra.mxu0 0.0
          %442 = vmatprep.subr.mxu0 0.0
          %443 = vmatpush1.msra.mxu0 0.0
          %444 = vmatprep.subr.mxu0 0.0
          %445 = vmatpush1.msra.mxu0 0.0
          %446 = vmatprep.subr.mxu0 0.0
          %447 = vmatpush1.msra.mxu0 0.0
          %448 = vmatprep.subr.mxu0 0.0
          %449 = vmatpush1.msra.mxu0 0.0
          %450 = vmatprep.subr.mxu0 0.0
          %451 = vmatpush1.msra.mxu0 0.0
          %452 = vmatprep.subr.mxu0 0.0
          %453 = vmatpush1.msra.mxu0 0.0
          %454 = vmatprep.subr.mxu0 0.0
          %455 = vmatpush1.msra.mxu0 0.0
          %456 = vmatprep.mubr.f32.mxu0 0.0
          %457 = vmatmul.mubr.f32.gmra.mrb[0].mxu0 %v390
          %v458 = vpop.f32.mrb[0].mxu0
          %v459 = vadd.f32 %v386, %v458
          %v460 = vpop.f32.mrb[0].mxu0
          %461 = vdwg.mxu0
          %462 = vst.msk [vmem:[#allocation2] sm:$0xff] %vm388, %v459
          %v463 = vld [vmem:[%s1] sm:$0xf]
          %v465 = vsel %vm388, %v463, 0
          %467 = vmatprep.subr.mxu0 0.0
          %468 = vmatpush1.xpose.msra.mxu0 %v390
          %469 = vmatprep.subr.mxu0 0.0
          %470 = vmatpush1.xpose.msra.mxu0 0.0
          %471 = vmatprep.subr.mxu0 0.0
          %472 = vmatpush1.xpose.msra.mxu0 0.0
          %473 = vmatprep.subr.mxu0 0.0
          %474 = vmatpush1.xpose.msra.mxu0 0.0
          %475 = vmatprep.subr.mxu0 0.0
          %476 = vmatpush1.xpose.msra.mxu0 0.0
          %477 = vmatprep.subr.mxu0 0.0
          %478 = vmatpush1.xpose.msra.mxu0 0.0
          %479 = vmatprep.subr.mxu0 0.0
          %480 = vmatpush1.xpose.msra.mxu0 0.0
          %481 = vmatprep.subr.mxu0 0.0
          %482 = vmatpush1.xpose.msra.mxu0 0.0
          %483 = vmatprep.subr.mxu0 0.0
          %484 = vmatpush1.xpose.msra.mxu0 0.0
          %485 = vmatprep.subr.mxu0 0.0
          %486 = vmatpush1.xpose.msra.mxu0 0.0
          %487 = vmatprep.subr.mxu0 0.0
          %488 = vmatpush1.xpose.msra.mxu0 0.0
          %489 = vmatprep.subr.mxu0 0.0
          %490 = vmatpush1.xpose.msra.mxu0 0.0
          %491 = vmatprep.subr.mxu0 0.0
          %492 = vmatpush1.xpose.msra.mxu0 0.0
          %493 = vmatprep.subr.mxu0 0.0
          %494 = vmatpush1.xpose.msra.mxu0 0.0
          %495 = vmatprep.subr.mxu0 0.0
          %496 = vmatpush1.xpose.msra.mxu0 0.0
          %497 = vmatprep.subr.mxu0 0.0
          %498 = vmatpush1.xpose.msra.mxu0 0.0
          %499 = vmatprep.subr.mxu0 0.0
          %500 = vmatpush1.xpose.msra.mxu0 0.0
          %501 = vmatprep.subr.mxu0 0.0
          %502 = vmatpush1.xpose.msra.mxu0 0.0
          %503 = vmatprep.subr.mxu0 0.0
          %504 = vmatpush1.xpose.msra.mxu0 0.0
          %505 = vmatprep.subr.mxu0 0.0
          %506 = vmatpush1.xpose.msra.mxu0 0.0
          %507 = vmatprep.subr.mxu0 0.0
          %508 = vmatpush1.xpose.msra.mxu0 0.0
          %509 = vmatprep.subr.mxu0 0.0
          %510 = vmatpush1.xpose.msra.mxu0 0.0
          %511 = vmatprep.subr.mxu0 0.0
          %512 = vmatpush1.xpose.msra.mxu0 0.0
          %513 = vmatprep.subr.mxu0 0.0
          %514 = vmatpush1.xpose.msra.mxu0 0.0
          %515 = vmatprep.subr.mxu0 0.0
          %516 = vmatpush1.xpose.msra.mxu0 0.0
          %517 = vmatprep.subr.mxu0 0.0
          %518 = vmatpush1.xpose.msra.mxu0 0.0
          %519 = vmatprep.subr.mxu0 0.0
          %520 = vmatpush1.xpose.msra.mxu0 0.0
          %521 = vmatprep.subr.mxu0 0.0
          %522 = vmatpush1.xpose.msra.mxu0 0.0
          %523 = vmatprep.subr.mxu0 0.0
          %524 = vmatpush1.xpose.msra.mxu0 0.0
          %525 = vmatprep.subr.mxu0 0.0
          %526 = vmatpush1.xpose.msra.mxu0 0.0
          %527 = vmatprep.subr.mxu0 0.0
          %528 = vmatpush1.xpose.msra.mxu0 0.0
          %529 = vmatprep.subr.mxu0 0.0
          %530 = vmatpush1.xpose.msra.mxu0 0.0
          %531 = vmatprep.mubr.f32.mxu0 0.0
          %532 = vmatmul.mubr.f32.gmra.mrb[0].mxu0 %v465
          %v533 = vpop.f32.mrb[0].mxu0
          %v534 = vadd.f32 0.0, %v533
          %v535 = vpop.f32.mrb[0].mxu0
          %536 = vdwg.mxu0
          %v537 = vmul.f32 %v369, %v369
          %v539 = vsel %vm388, 1.0, 0
          %v542 = vsel %vm388, %v537, 0
          %544 = vmatprep.subr.mxu0 0.0
          %545 = vmatpush1.xpose.msra.mxu0 %v542
          %546 = vmatprep.subr.mxu0 0.0
          %547 = vmatpush1.xpose.msra.mxu0 0.0
          %548 = vmatprep.subr.mxu0 0.0
          %549 = vmatpush1.xpose.msra.mxu0 0.0
          %550 = vmatprep.subr.mxu0 0.0
          %551 = vmatpush1.xpose.msra.mxu0 0.0
          %552 = vmatprep.subr.mxu0 0.0
          %553 = vmatpush1.xpose.msra.mxu0 0.0
          %554 = vmatprep.subr.mxu0 0.0
          %555 = vmatpush1.xpose.msra.mxu0 0.0
          %556 = vmatprep.subr.mxu0 0.0
          %557 = vmatpush1.xpose.msra.mxu0 0.0
          %558 = vmatprep.subr.mxu0 0.0
          %559 = vmatpush1.xpose.msra.mxu0 0.0
          %560 = vmatprep.subr.mxu0 0.0
          %561 = vmatpush1.xpose.msra.mxu0 0.0
          %562 = vmatprep.subr.mxu0 0.0
          %563 = vmatpush1.xpose.msra.mxu0 0.0
          %564 = vmatprep.subr.mxu0 0.0
          %565 = vmatpush1.xpose.msra.mxu0 0.0
          %566 = vmatprep.subr.mxu0 0.0
          %567 = vmatpush1.xpose.msra.mxu0 0.0
          %568 = vmatprep.subr.mxu0 0.0
          %569 = vmatpush1.xpose.msra.mxu0 0.0
          %570 = vmatprep.subr.mxu0 0.0
          %571 = vmatpush1.xpose.msra.mxu0 0.0
          %572 = vmatprep.subr.mxu0 0.0
          %573 = vmatpush1.xpose.msra.mxu0 0.0
          %574 = vmatprep.subr.mxu0 0.0
          %575 = vmatpush1.xpose.msra.mxu0 0.0
          %576 = vmatprep.subr.mxu0 0.0
          %577 = vmatpush1.xpose.msra.mxu0 0.0
          %578 = vmatprep.subr.mxu0 0.0
          %579 = vmatpush1.xpose.msra.mxu0 0.0
          %580 = vmatprep.subr.mxu0 0.0
          %581 = vmatpush1.xpose.msra.mxu0 0.0
          %582 = vmatprep.subr.mxu0 0.0
          %583 = vmatpush1.xpose.msra.mxu0 0.0
          %584 = vmatprep.subr.mxu0 0.0
          %585 = vmatpush1.xpose.msra.mxu0 0.0
          %586 = vmatprep.subr.mxu0 0.0
          %587 = vmatpush1.xpose.msra.mxu0 0.0
          %588 = vmatprep.subr.mxu0 0.0
          %589 = vmatpush1.xpose.msra.mxu0 0.0
          %590 = vmatprep.subr.mxu0 0.0
          %591 = vmatpush1.xpose.msra.mxu0 0.0
          %592 = vmatprep.subr.mxu0 0.0
          %593 = vmatpush1.xpose.msra.mxu0 0.0
          %594 = vmatprep.subr.mxu0 0.0
          %595 = vmatpush1.xpose.msra.mxu0 0.0
          %596 = vmatprep.subr.mxu0 0.0
          %597 = vmatpush1.xpose.msra.mxu0 0.0
          %598 = vmatprep.subr.mxu0 0.0
          %599 = vmatpush1.xpose.msra.mxu0 0.0
          %600 = vmatprep.subr.mxu0 0.0
          %601 = vmatpush1.xpose.msra.mxu0 0.0
          %602 = vmatprep.subr.mxu0 0.0
          %603 = vmatpush1.xpose.msra.mxu0 0.0
          %604 = vmatprep.subr.mxu0 0.0
          %605 = vmatpush1.xpose.msra.mxu0 0.0
          %606 = vmatprep.subr.mxu0 0.0
          %607 = vmatpush1.xpose.msra.mxu0 0.0
          %608 = vmatprep.mubr.f32.mxu0 0.0
          %609 = vmatmul.mubr.f32.gmra.mrb[0].mxu0 %v539
          %v610 = vpop.f32.mrb[0].mxu0
          %v611 = vadd.f32 0.0, %v610
          %v612 = vpop.f32.mrb[0].mxu0
          %613 = vdwg.mxu0
          %v614 = vmul.f32 %v534, 0.0625
          %v615 = vmul.f32 %v611, 0.03125
          %v616 = vlaneseq
          %v617 = vshrl.u32 %v616, 7
          %v618 = vsub.s32 0, %v617
          %v619 = vrot.slane %v615, %v618
          %v620 = vsub.f32 %v614, %v619
          %vm621 = vcmask 60416
          %622 = vst.msk [vmem:[#allocation3] sm:$0xf] %vm621, %v620
        $region64: #{tpu_custom_call.1} parent=59 // pred_fallthru
          _
        %vm623 = vcmask 261120
        %v625 = vsel %vm623, %v372, 0
        %v628 = vsel %vm623, %v369, 0
        %630 = vmatprep.subr.mxu0 0.0
        %631 = vmatpush1.xpose.msra.mxu0 %v628
        %632 = vmatprep.subr.mxu0 0.0
        %633 = vmatpush1.xpose.msra.mxu0 0.0
        %634 = vmatprep.subr.mxu0 0.0
        %635 = vmatpush1.xpose.msra.mxu0 0.0
        %636 = vmatprep.subr.mxu0 0.0
        %637 = vmatpush1.xpose.msra.mxu0 0.0
        %638 = vmatprep.subr.mxu0 0.0
        %639 = vmatpush1.xpose.msra.mxu0 0.0
        %640 = vmatprep.subr.mxu0 0.0
        %641 = vmatpush1.xpose.msra.mxu0 0.0
        %642 = vmatprep.subr.mxu0 0.0
        %643 = vmatpush1.xpose.msra.mxu0 0.0
        %644 = vmatprep.subr.mxu0 0.0
        %645 = vmatpush1.xpose.msra.mxu0 0.0
        %646 = vmatprep.subr.mxu0 0.0
        %647 = vmatpush1.xpose.msra.mxu0 0.0
        %648 = vmatprep.subr.mxu0 0.0
        %649 = vmatpush1.xpose.msra.mxu0 0.0
        %650 = vmatprep.subr.mxu0 0.0
        %651 = vmatpush1.xpose.msra.mxu0 0.0
        %652 = vmatprep.subr.mxu0 0.0
        %653 = vmatpush1.xpose.msra.mxu0 0.0
        %654 = vmatprep.subr.mxu0 0.0
        %655 = vmatpush1.xpose.msra.mxu0 0.0
        %656 = vmatprep.subr.mxu0 0.0
        %657 = vmatpush1.xpose.msra.mxu0 0.0
        %658 = vmatprep.subr.mxu0 0.0
        %659 = vmatpush1.xpose.msra.mxu0 0.0
        %660 = vmatprep.subr.mxu0 0.0
        %661 = vmatpush1.xpose.msra.mxu0 0.0
        %662 = vmatprep.subr.mxu0 0.0
        %663 = vmatpush1.xpose.msra.mxu0 0.0
        %664 = vmatprep.subr.mxu0 0.0
        %665 = vmatpush1.xpose.msra.mxu0 0.0
        %666 = vmatprep.subr.mxu0 0.0
        %667 = vmatpush1.xpose.msra.mxu0 0.0
        %668 = vmatprep.subr.mxu0 0.0
        %669 = vmatpush1.xpose.msra.mxu0 0.0
        %670 = vmatprep.subr.mxu0 0.0
        %671 = vmatpush1.xpose.msra.mxu0 0.0
        %672 = vmatprep.subr.mxu0 0.0
        %673 = vmatpush1.xpose.msra.mxu0 0.0
        %674 = vmatprep.subr.mxu0 0.0
        %675 = vmatpush1.xpose.msra.mxu0 0.0
        %676 = vmatprep.subr.mxu0 0.0
        %677 = vmatpush1.xpose.msra.mxu0 0.0
        %678 = vmatprep.subr.mxu0 0.0
        %679 = vmatpush1.xpose.msra.mxu0 0.0
        %680 = vmatprep.subr.mxu0 0.0
        %681 = vmatpush1.xpose.msra.mxu0 0.0
        %682 = vmatprep.subr.mxu0 0.0
        %683 = vmatpush1.xpose.msra.mxu0 0.0
        %684 = vmatprep.subr.mxu0 0.0
        %685 = vmatpush1.xpose.msra.mxu0 0.0
        %686 = vmatprep.subr.mxu0 0.0
        %687 = vmatpush1.xpose.msra.mxu0 0.0
        %688 = vmatprep.subr.mxu0 0.0
        %689 = vmatpush1.xpose.msra.mxu0 0.0
        %690 = vmatprep.subr.mxu0 0.0
        %691 = vmatpush1.xpose.msra.mxu0 0.0
        %692 = vmatprep.subr.mxu0 0.0
        %693 = vmatpush1.xpose.msra.mxu0 0.0
        %694 = vmatprep.mubr.f32.mxu0 0.0
        %695 = vmatmul.mubr.f32.gmra.mrb[0].mxu0 %v625
        %v696 = vpop.f32.mrb[0].mxu0
        %v697 = vadd.f32 0.0, %v696
        %v698 = vpop.f32.mrb[0].mxu0
        %699 = vdwg.mxu0
        %v700 = vmul.f32 %v697, 0.0625
        %v701 = vld [vmem:[#allocation3] sm:$0xf]
        %v702 = vlaneseq
        %v703 = vshrl.u32 %v702, 7
        %v704 = vsub.s32 0, %v703
        %v705 = vrot.slane %v701, %v704
        %v706 = vadd.f32 %v700, %v705
        %vm707 = vcmask 64512
        %v708 = vsel %vm707, %v706, -inf
        %709 = vmax.xlane.f32.xlu0 %v708
        %v710 = vpop.xlane.xlu0 %709
        %v711 = vsub.f32 %v706, %v710
        %v712 = vmul.f32 %v711, 1.442695
        %v713 = vpow.pop %v712
        %v714 = vsel %vm707, %v713, 0.0
        %715 = vadd.xlane.f32.xlu0 %v714
        %v716 = vpop.xlane.xlu0 %715
        %v717 = vld [vmem:[#allocation2] sm:$0xff]
        %v719 = vsel %vm707, %v713, 0
        %721 = vmatprep.subr.mxu0 0.0
        %722 = vmatpush1.msra.mxu0 %v717
        %723 = vmatprep.subr.mxu0 0.0
        %724 = vmatpush1.msra.mxu0 0.0
        %725 = vmatprep.subr.mxu0 0.0
        %726 = vmatpush1.msra.mxu0 0.0
        %727 = vmatprep.subr.mxu0 0.0
        %728 = vmatpush1.msra.mxu0 0.0
        %729 = vmatprep.subr.mxu0 0.0
        %730 = vmatpush1.msra.mxu0 0.0
        %731 = vmatprep.subr.mxu0 0.0
        %732 = vmatpush1.msra.mxu0 0.0
        %733 = vmatprep.subr.mxu0 0.0
        %734 = vmatpush1.msra.mxu0 0.0
        %735 = vmatprep.subr.mxu0 0.0
        %736 = vmatpush1.msra.mxu0 0.0
        %737 = vmatprep.subr.mxu0 0.0
        %738 = vmatpush1.msra.mxu0 0.0
        %739 = vmatprep.subr.mxu0 0.0
        %740 = vmatpush1.msra.mxu0 0.0
        %741 = vmatprep.subr.mxu0 0.0
        %742 = vmatpush1.msra.mxu0 0.0
        %743 = vmatprep.subr.mxu0 0.0
        %744 = vmatpush1.msra.mxu0 0.0
        %745 = vmatprep.subr.mxu0 0.0
        %746 = vmatpush1.msra.mxu0 0.0
        %747 = vmatprep.subr.mxu0 0.0
        %748 = vmatpush1.msra.mxu0 0.0
        %749 = vmatprep.subr.mxu0 0.0
        %750 = vmatpush1.msra.mxu0 0.0
        %751 = vmatprep.subr.mxu0 0.0
        %752 = vmatpush1.msra.mxu0 0.0
        %753 = vmatprep.subr.mxu0 0.0
        %754 = vmatpush1.msra.mxu0 0.0
        %755 = vmatprep.subr.mxu0 0.0
        %756 = vmatpush1.msra.mxu0 0.0
        %757 = vmatprep.subr.mxu0 0.0
        %758 = vmatpush1.msra.mxu0 0.0
        %759 = vmatprep.subr.mxu0 0.0
        %760 = vmatpush1.msra.mxu0 0.0
        %761 = vmatprep.subr.mxu0 0.0
        %762 = vmatpush1.msra.mxu0 0.0
        %763 = vmatprep.subr.mxu0 0.0
        %764 = vmatpush1.msra.mxu0 0.0
        %765 = vmatprep.subr.mxu0 0.0
        %766 = vmatpush1.msra.mxu0 0.0
        %767 = vmatprep.subr.mxu0 0.0
        %768 = vmatpush1.msra.mxu0 0.0
        %769 = vmatprep.subr.mxu0 0.0
        %770 = vmatpush1.msra.mxu0 0.0
        %771 = vmatprep.subr.mxu0 0.0
        %772 = vmatpush1.msra.mxu0 0.0
        %773 = vmatprep.subr.mxu0 0.0
        %774 = vmatpush1.msra.mxu0 0.0
        %775 = vmatprep.subr.mxu0 0.0
        %776 = vmatpush1.msra.mxu0 0.0
        %777 = vmatprep.subr.mxu0 0.0
        %778 = vmatpush1.msra.mxu0 0.0
        %779 = vmatprep.subr.mxu0 0.0
        %780 = vmatpush1.msra.mxu0 0.0
        %781 = vmatprep.subr.mxu0 0.0
        %782 = vmatpush1.msra.mxu0 0.0
        %783 = vmatprep.subr.mxu0 0.0
        %784 = vmatpush1.msra.mxu0 0.0
        %785 = vmatprep.mubr.f32.mxu0 0.0
        %786 = vmatmul.mubr.f32.gmra.mrb[0].mxu0 %v719
        %v787 = vpop.f32.mrb[0].mxu0
        %v788 = vadd.f32 0.0, %v787
        %v789 = vpop.f32.mrb[0].mxu0
        %790 = vdwg.mxu0
        %v791 = vrcp.pop %v716
        %v792 = vmul.f32 %v716, %v791
        %v793 = vsub.f32 2.0, %v792
        %v794 = vmul.f32 %v791, %v793
        %v795 = vmul.f32 %v788, %v794
        %v796 = vlaneseq
        %v797 = vshrl.u32 %v796, 7
        %v798 = vsub.s32 1, %v797
        %v799 = vrot.slane %v701, %v798
        %v800 = vadd.f32 %v700, %v799
        %v801 = vsel %vm707, %v800, -inf
        %802 = vmax.xlane.f32.xlu0 %v801
        %v803 = vpop.xlane.xlu0 %802
        %v804 = vsub.f32 %v800, %v803
        %v805 = vmul.f32 %v804, 1.442695
        %v806 = vpow.pop %v805
        %v807 = vsel %vm707, %v806, 0.0
        %808 = vadd.xlane.f32.xlu0 %v807
        %v809 = vpop.xlane.xlu0 %808
        %811 = vrot.lane.b32.xlu0 %v717, 120
        %v812 = vpop.permute.xlu0 %811
        %v815 = vsel %vm707, %v806, 0
        %817 = vmatprep.subr.mxu0 0.0
        %818 = vmatpush1.msra.mxu0 %v812
        %819 = vmatprep.subr.mxu0 0.0
        %820 = vmatpush1.msra.mxu0 0.0
        %821 = vmatprep.subr.mxu0 0.0
        %822 = vmatpush1.msra.mxu0 0.0
        %823 = vmatprep.subr.mxu0 0.0
        %824 = vmatpush1.msra.mxu0 0.0
        %825 = vmatprep.subr.mxu0 0.0
        %826 = vmatpush1.msra.mxu0 0.0
        %827 = vmatprep.subr.mxu0 0.0
        %828 = vmatpush1.msra.mxu0 0.0
        %829 = vmatprep.subr.mxu0 0.0
        %830 = vmatpush1.msra.mxu0 0.0
        %831 = vmatprep.subr.mxu0 0.0
        %832 = vmatpush1.msra.mxu0 0.0
        %833 = vmatprep.subr.mxu0 0.0
        %834 = vmatpush1.msra.mxu0 0.0
        %835 = vmatprep.subr.mxu0 0.0
        %836 = vmatpush1.msra.mxu0 0.0
        %837 = vmatprep.subr.mxu0 0.0
        %838 = vmatpush1.msra.mxu0 0.0
        %839 = vmatprep.subr.mxu0 0.0
        %840 = vmatpush1.msra.mxu0 0.0
        %841 = vmatprep.subr.mxu0 0.0
        %842 = vmatpush1.msra.mxu0 0.0
        %843 = vmatprep.subr.mxu0 0.0
        %844 = vmatpush1.msra.mxu0 0.0
        %845 = vmatprep.subr.mxu0 0.0
        %846 = vmatpush1.msra.mxu0 0.0
        %847 = vmatprep.subr.mxu0 0.0
        %848 = vmatpush1.msra.mxu0 0.0
        %849 = vmatprep.subr.mxu0 0.0
        %850 = vmatpush1.msra.mxu0 0.0
        %851 = vmatprep.subr.mxu0 0.0
        %852 = vmatpush1.msra.mxu0 0.0
        %853 = vmatprep.subr.mxu0 0.0
        %854 = vmatpush1.msra.mxu0 0.0
        %855 = vmatprep.subr.mxu0 0.0
        %856 = vmatpush1.msra.mxu0 0.0
        %857 = vmatprep.subr.mxu0 0.0
        %858 = vmatpush1.msra.mxu0 0.0
        %859 = vmatprep.subr.mxu0 0.0
        %860 = vmatpush1.msra.mxu0 0.0
        %861 = vmatprep.subr.mxu0 0.0
        %862 = vmatpush1.msra.mxu0 0.0
        %863 = vmatprep.subr.mxu0 0.0
        %864 = vmatpush1.msra.mxu0 0.0
        %865 = vmatprep.subr.mxu0 0.0
        %866 = vmatpush1.msra.mxu0 0.0
        %867 = vmatprep.subr.mxu0 0.0
        %868 = vmatpush1.msra.mxu0 0.0
        %869 = vmatprep.subr.mxu0 0.0
        %870 = vmatpush1.msra.mxu0 0.0
        %871 = vmatprep.subr.mxu0 0.0
        %872 = vmatpush1.msra.mxu0 0.0
        %873 = vmatprep.subr.mxu0 0.0
        %874 = vmatpush1.msra.mxu0 0.0
        %875 = vmatprep.subr.mxu0 0.0
        %876 = vmatpush1.msra.mxu0 0.0
        %877 = vmatprep.subr.mxu0 0.0
        %878 = vmatpush1.msra.mxu0 0.0
        %879 = vmatprep.subr.mxu0 0.0
        %880 = vmatpush1.msra.mxu0 0.0
        %881 = vmatprep.mubr.f32.mxu0 0.0
        %882 = vmatmul.mubr.f32.gmra.mrb[0].mxu0 %v815
        %v883 = vpop.f32.mrb[0].mxu0
        %v884 = vadd.f32 0.0, %v883
        %v885 = vpop.f32.mrb[0].mxu0
        %886 = vdwg.mxu0
        %v887 = vrcp.pop %v809
        %v888 = vmul.f32 %v809, %v887
        %v889 = vsub.f32 2.0, %v888
        %v890 = vmul.f32 %v887, %v889
        %v891 = vmul.f32 %v884, %v890
        %v892 = vlaneseq
        %v893 = vshrl.u32 %v892, 7
        %v894 = vsub.s32 2, %v893
        %v895 = vrot.slane %v701, %v894
        %v896 = vadd.f32 %v700, %v895
        %v897 = vsel %vm707, %v896, -inf
        %898 = vmax.xlane.f32.xlu0 %v897
        %v899 = vpop.xlane.xlu0 %898
        %v900 = vsub.f32 %v896, %v899
        %v901 = vmul.f32 %v900, 1.442695
        %v902 = vpow.pop %v901
        %v903 = vsel %vm707, %v902, 0.0
        %904 = vadd.xlane.f32.xlu0 %v903
        %v905 = vpop.xlane.xlu0 %904
        %906 = vrot.lane.b32.xlu0 %v717, 112
        %v907 = vpop.permute.xlu0 %906
        %v910 = vsel %vm707, %v902, 0
        %912 = vmatprep.subr.mxu0 0.0
        %913 = vmatpush1.msra.mxu0 %v907
        %914 = vmatprep.subr.mxu0 0.0
        %915 = vmatpush1.msra.mxu0 0.0
        %916 = vmatprep.subr.mxu0 0.0
        %917 = vmatpush1.msra.mxu0 0.0
        %918 = vmatprep.subr.mxu0 0.0
        %919 = vmatpush1.msra.mxu0 0.0
        %920 = vmatprep.subr.mxu0 0.0
        %921 = vmatpush1.msra.mxu0 0.0
        %922 = vmatprep.subr.mxu0 0.0
        %923 = vmatpush1.msra.mxu0 0.0
        %924 = vmatprep.subr.mxu0 0.0
        %925 = vmatpush1.msra.mxu0 0.0
        %926 = vmatprep.subr.mxu0 0.0
        %927 = vmatpush1.msra.mxu0 0.0
        %928 = vmatprep.subr.mxu0 0.0
        %929 = vmatpush1.msra.mxu0 0.0
        %930 = vmatprep.subr.mxu0 0.0
        %931 = vmatpush1.msra.mxu0 0.0
        %932 = vmatprep.subr.mxu0 0.0
        %933 = vmatpush1.msra.mxu0 0.0
        %934 = vmatprep.subr.mxu0 0.0
        %935 = vmatpush1.msra.mxu0 0.0
        %936 = vmatprep.subr.mxu0 0.0
        %937 = vmatpush1.msra.mxu0 0.0
        %938 = vmatprep.subr.mxu0 0.0
        %939 = vmatpush1.msra.mxu0 0.0
        %940 = vmatprep.subr.mxu0 0.0
        %941 = vmatpush1.msra.mxu0 0.0
        %942 = vmatprep.subr.mxu0 0.0
        %943 = vmatpush1.msra.mxu0 0.0
        %944 = vmatprep.subr.mxu0 0.0
        %945 = vmatpush1.msra.mxu0 0.0
        %946 = vmatprep.subr.mxu0 0.0
        %947 = vmatpush1.msra.mxu0 0.0
        %948 = vmatprep.subr.mxu0 0.0
        %949 = vmatpush1.msra.mxu0 0.0
        %950 = vmatprep.subr.mxu0 0.0
        %951 = vmatpush1.msra.mxu0 0.0
        %952 = vmatprep.subr.mxu0 0.0
        %953 = vmatpush1.msra.mxu0 0.0
        %954 = vmatprep.subr.mxu0 0.0
        %955 = vmatpush1.msra.mxu0 0.0
        %956 = vmatprep.subr.mxu0 0.0
        %957 = vmatpush1.msra.mxu0 0.0
        %958 = vmatprep.subr.mxu0 0.0
        %959 = vmatpush1.msra.mxu0 0.0
        %960 = vmatprep.subr.mxu0 0.0
        %961 = vmatpush1.msra.mxu0 0.0
        %962 = vmatprep.subr.mxu0 0.0
        %963 = vmatpush1.msra.mxu0 0.0
        %964 = vmatprep.subr.mxu0 0.0
        %965 = vmatpush1.msra.mxu0 0.0
        %966 = vmatprep.subr.mxu0 0.0
        %967 = vmatpush1.msra.mxu0 0.0
        %968 = vmatprep.subr.mxu0 0.0
        %969 = vmatpush1.msra.mxu0 0.0
        %970 = vmatprep.subr.mxu0 0.0
        %971 = vmatpush1.msra.mxu0 0.0
        %972 = vmatprep.subr.mxu0 0.0
        %973 = vmatpush1.msra.mxu0 0.0
        %974 = vmatprep.subr.mxu0 0.0
        %975 = vmatpush1.msra.mxu0 0.0
        %976 = vmatprep.mubr.f32.mxu0 0.0
        %977 = vmatmul.mubr.f32.gmra.mrb[0].mxu0 %v910
        %v978 = vpop.f32.mrb[0].mxu0
        %v979 = vadd.f32 0.0, %v978
        %v980 = vpop.f32.mrb[0].mxu0
        %981 = vdwg.mxu0
        %v982 = vrcp.pop %v905
        %v983 = vmul.f32 %v905, %v982
        %v984 = vsub.f32 2.0, %v983
        %v985 = vmul.f32 %v982, %v984
        %v986 = vmul.f32 %v979, %v985
        %v987 = vlaneseq
        %v988 = vshrl.u32 %v987, 7
        %v989 = vsub.s32 3, %v988
        %v990 = vrot.slane %v701, %v989
        %v991 = vadd.f32 %v700, %v990
        %v992 = vsel %vm707, %v991, -inf
        %993 = vmax.xlane.f32.xlu0 %v992
        %v994 = vpop.xlane.xlu0 %993
        %v995 = vsub.f32 %v991, %v994
        %v996 = vmul.f32 %v995, 1.442695
        %v997 = vpow.pop %v996
        %v998 = vsel %vm707, %v997, 0.0
        %999 = vadd.xlane.f32.xlu0 %v998
        %v1000 = vpop.xlane.xlu0 %999
        %1001 = vrot.lane.b32.xlu0 %v717, 104
        %v1002 = vpop.permute.xlu0 %1001
        %v1005 = vsel %vm707, %v997, 0
        %1007 = vmatprep.subr.mxu0 0.0
        %1008 = vmatpush1.msra.mxu0 %v1002
        %1009 = vmatprep.subr.mxu0 0.0
        %1010 = vmatpush1.msra.mxu0 0.0
        %1011 = vmatprep.subr.mxu0 0.0
        %1012 = vmatpush1.msra.mxu0 0.0
        %1013 = vmatprep.subr.mxu0 0.0
        %1014 = vmatpush1.msra.mxu0 0.0
        %1015 = vmatprep.subr.mxu0 0.0
        %1016 = vmatpush1.msra.mxu0 0.0
        %1017 = vmatprep.subr.mxu0 0.0
        %1018 = vmatpush1.msra.mxu0 0.0
        %1019 = vmatprep.subr.mxu0 0.0
        %1020 = vmatpush1.msra.mxu0 0.0
        %1021 = vmatprep.subr.mxu0 0.0
        %1022 = vmatpush1.msra.mxu0 0.0
        %1023 = vmatprep.subr.mxu0 0.0
        %1024 = vmatpush1.msra.mxu0 0.0
        %1025 = vmatprep.subr.mxu0 0.0
        %1026 = vmatpush1.msra.mxu0 0.0
        %1027 = vmatprep.subr.mxu0 0.0
        %1028 = vmatpush1.msra.mxu0 0.0
        %1029 = vmatprep.subr.mxu0 0.0
        %1030 = vmatpush1.msra.mxu0 0.0
        %1031 = vmatprep.subr.mxu0 0.0
        %1032 = vmatpush1.msra.mxu0 0.0
        %1033 = vmatprep.subr.mxu0 0.0
        %1034 = vmatpush1.msra.mxu0 0.0
        %1035 = vmatprep.subr.mxu0 0.0
        %1036 = vmatpush1.msra.mxu0 0.0
        %1037 = vmatprep.subr.mxu0 0.0
        %1038 = vmatpush1.msra.mxu0 0.0
        %1039 = vmatprep.subr.mxu0 0.0
        %1040 = vmatpush1.msra.mxu0 0.0
        %1041 = vmatprep.subr.mxu0 0.0
        %1042 = vmatpush1.msra.mxu0 0.0
        %1043 = vmatprep.subr.mxu0 0.0
        %1044 = vmatpush1.msra.mxu0 0.0
        %1045 = vmatprep.subr.mxu0 0.0
        %1046 = vmatpush1.msra.mxu0 0.0
        %1047 = vmatprep.subr.mxu0 0.0
        %1048 = vmatpush1.msra.mxu0 0.0
        %1049 = vmatprep.subr.mxu0 0.0
        %1050 = vmatpush1.msra.mxu0 0.0
        %1051 = vmatprep.subr.mxu0 0.0
        %1052 = vmatpush1.msra.mxu0 0.0
        %1053 = vmatprep.subr.mxu0 0.0
        %1054 = vmatpush1.msra.mxu0 0.0
        %1055 = vmatprep.subr.mxu0 0.0
        %1056 = vmatpush1.msra.mxu0 0.0
        %1057 = vmatprep.subr.mxu0 0.0
        %1058 = vmatpush1.msra.mxu0 0.0
        %1059 = vmatprep.subr.mxu0 0.0
        %1060 = vmatpush1.msra.mxu0 0.0
        %1061 = vmatprep.subr.mxu0 0.0
        %1062 = vmatpush1.msra.mxu0 0.0
        %1063 = vmatprep.subr.mxu0 0.0
        %1064 = vmatpush1.msra.mxu0 0.0
        %1065 = vmatprep.subr.mxu0 0.0
        %1066 = vmatpush1.msra.mxu0 0.0
        %1067 = vmatprep.subr.mxu0 0.0
        %1068 = vmatpush1.msra.mxu0 0.0
        %1069 = vmatprep.subr.mxu0 0.0
        %1070 = vmatpush1.msra.mxu0 0.0
        %1071 = vmatprep.mubr.f32.mxu0 0.0
        %1072 = vmatmul.mubr.f32.gmra.mrb[0].mxu0 %v1005
        %v1073 = vpop.f32.mrb[0].mxu0
        %v1074 = vadd.f32 0.0, %v1073
        %v1075 = vpop.f32.mrb[0].mxu0
        %1076 = vdwg.mxu0
        %v1077 = vrcp.pop %v1000
        %v1078 = vmul.f32 %v1000, %v1077
        %v1079 = vsub.f32 2.0, %v1078
        %v1080 = vmul.f32 %v1077, %v1079
        %v1081 = vmul.f32 %v1074, %v1080
        %1083 = vrot.lane.b32.xlu0 %v891, 8
        %v1084 = vpop.permute.xlu0 %1083
        %1087 = vrot.lane.b32.xlu0 %v986, 16
        %v1088 = vpop.permute.xlu0 %1087
        %1091 = vrot.lane.b32.xlu0 %v1081, 24
        %v1092 = vpop.permute.xlu0 %1091
        %v1094 = vsel %vm707, %v795, %v1084
        %vm1095 = vcmask 130048
        %v1096 = vsel %vm1095, %v1094, %v1088
        %vm1097 = vcmask 195584
        %v1098 = vsel %vm1097, %v1096, %v1092
        %v1099 = vadd.f32 %v372, %v1098
        %v1100 = vld [vmem:[%s4] sm:$0xff]
        %v1101 = vld [vmem:[%s4 + $0x8] sm:$0xff]
        %v1102 = vld [vmem:[%s4 + $0x10] sm:$0xff]
        %v1103 = vld [vmem:[%s4 + $0x18] sm:$0xff]
        %v1104 = vld [vmem:[%s5] sm:$0x1]
        %v1106 = vlaneseq
        %v1107 = vshrl.u32 %v1106, 7
        %v1108 = vsub.s32 0, %v1107
        %v1109 = vrot.slane %v1104, %v1108
        %v1112 = vsel %vm623, %v1099, 0
        %1114 = vmatprep.subr.mxu0 0.0
        %1115 = vmatpush1.msra.mxu0 %v1100
        %1116 = vmatprep.subr.mxu0 0.0
        %1117 = vmatpush1.msra.mxu0 %v1101
        %1118 = vmatprep.subr.mxu0 0.0
        %1119 = vmatpush1.msra.mxu0 %v1102
        %1120 = vmatprep.subr.mxu0 0.0
        %1121 = vmatpush1.msra.mxu0 %v1103
        %1122 = vmatprep.subr.mxu0 0.0
        %1123 = vmatpush1.msra.mxu0 0.0
        %1124 = vmatprep.subr.mxu0 0.0
        %1125 = vmatpush1.msra.mxu0 0.0
        %1126 = vmatprep.subr.mxu0 0.0
        %1127 = vmatpush1.msra.mxu0 0.0
        %1128 = vmatprep.subr.mxu0 0.0
        %1129 = vmatpush1.msra.mxu0 0.0
        %1130 = vmatprep.subr.mxu0 0.0
        %1131 = vmatpush1.msra.mxu0 0.0
        %1132 = vmatprep.subr.mxu0 0.0
        %1133 = vmatpush1.msra.mxu0 0.0
        %1134 = vmatprep.subr.mxu0 0.0
        %1135 = vmatpush1.msra.mxu0 0.0
        %1136 = vmatprep.subr.mxu0 0.0
        %1137 = vmatpush1.msra.mxu0 0.0
        %1138 = vmatprep.subr.mxu0 0.0
        %1139 = vmatpush1.msra.mxu0 0.0
        %1140 = vmatprep.subr.mxu0 0.0
        %1141 = vmatpush1.msra.mxu0 0.0
        %1142 = vmatprep.subr.mxu0 0.0
        %1143 = vmatpush1.msra.mxu0 0.0
        %1144 = vmatprep.subr.mxu0 0.0
        %1145 = vmatpush1.msra.mxu0 0.0
        %1146 = vmatprep.subr.mxu0 0.0
        %1147 = vmatpush1.msra.mxu0 0.0
        %1148 = vmatprep.subr.mxu0 0.0
        %1149 = vmatpush1.msra.mxu0 0.0
        %1150 = vmatprep.subr.mxu0 0.0
        %1151 = vmatpush1.msra.mxu0 0.0
        %1152 = vmatprep.subr.mxu0 0.0
        %1153 = vmatpush1.msra.mxu0 0.0
        %1154 = vmatprep.subr.mxu0 0.0
        %1155 = vmatpush1.msra.mxu0 0.0
        %1156 = vmatprep.subr.mxu0 0.0
        %1157 = vmatpush1.msra.mxu0 0.0
        %1158 = vmatprep.subr.mxu0 0.0
        %1159 = vmatpush1.msra.mxu0 0.0
        %1160 = vmatprep.subr.mxu0 0.0
        %1161 = vmatpush1.msra.mxu0 0.0
        %1162 = vmatprep.subr.mxu0 0.0
        %1163 = vmatpush1.msra.mxu0 0.0
        %1164 = vmatprep.subr.mxu0 0.0
        %1165 = vmatpush1.msra.mxu0 0.0
        %1166 = vmatprep.subr.mxu0 0.0
        %1167 = vmatpush1.msra.mxu0 0.0
        %1168 = vmatprep.subr.mxu0 0.0
        %1169 = vmatpush1.msra.mxu0 0.0
        %1170 = vmatprep.subr.mxu0 0.0
        %1171 = vmatpush1.msra.mxu0 0.0
        %1172 = vmatprep.subr.mxu0 0.0
        %1173 = vmatpush1.msra.mxu0 0.0
        %1174 = vmatprep.subr.mxu0 0.0
        %1175 = vmatpush1.msra.mxu0 0.0
        %1176 = vmatprep.subr.mxu0 0.0
        %1177 = vmatpush1.msra.mxu0 0.0
        %1178 = vmatprep.mubr.f32.mxu0 0.0
        %1179 = vmatmul.mubr.f32.gmra.mrb[0].mxu0 %v1112
        %v1180 = vpop.f32.mrb[0].mxu0
        %v1181 = vadd.f32 %v1109, %v1180
        %v1182 = vpop.f32.mrb[0].mxu0
        %1183 = vdwg.mxu0
        %v1184 = vmul.f32 %v1181, 0.5
        %v1185 = vmul.f32 %v1181, 0.70710677
        %vm1186 = vcmp.ge.f32.partialorder %v1185, 0.0
        %v1187 = vsel %vm1186, 1.0, -1.0
        %v1188 = vand.u32 2147483647, %v1185
        %v1189 = vmul.f32 %v1188, 0.3275911
        %v1190 = vadd.f32 %v1189, 1.0
        %v1191 = vrcp.pop %v1190
        %v1192 = vmul.f32 %v1190, %v1191
        %v1193 = vsub.f32 2.0, %v1192
        %v1194 = vmul.f32 %v1191, %v1193
        %v1195 = vmul.f32 %v1194, 1.0614054
        %v1196 = vadd.f32 %v1195, -1.4531521
        %v1197 = vmul.f32 %v1194, %v1196
        %v1198 = vadd.f32 %v1197, 1.4214138
        %v1199 = vmul.f32 %v1194, %v1198
        %v1200 = vadd.f32 %v1199, -0.28449672
        %v1201 = vmul.f32 %v1194, %v1200
        %v1202 = vadd.f32 %v1201, 0.2548296
        %v1203 = vmul.f32 %v1194, %v1202
        %v1204 = vsub.f32 0.0, %v1188
        %v1205 = vmul.f32 %v1204, %v1188
        %v1206 = vmul.f32 %v1205, 1.442695
        %v1207 = vpow.pop %v1206
        %v1208 = vmul.f32 %v1203, %v1207
        %v1209 = vsub.f32 1.0, %v1208
        %v1210 = vmul.f32 %v1187, %v1209
        %v1211 = vadd.f32 %v1210, 1.0
        %v1212 = vmul.f32 %v1184, %v1211
        %v1213 = vld [vmem:[%s6] sm:$0xff]
        %v1214 = vld [vmem:[%s6 + $0x8] sm:$0xff]
        %v1215 = vld [vmem:[%s6 + $0x10] sm:$0xff]
        %v1216 = vld [vmem:[%s6 + $0x18] sm:$0xff]
        %v1217 = vld [vmem:[%s6 + $0x20] sm:$0xff]
        %v1218 = vld [vmem:[%s6 + $0x28] sm:$0xff]
        %v1219 = vld [vmem:[%s6 + $0x30] sm:$0xff]
        %v1220 = vld [vmem:[%s6 + $0x38] sm:$0xff]
        %v1221 = vld [vmem:[%s7] sm:$0x1]
        %v1223 = vlaneseq
        %v1224 = vshrl.u32 %v1223, 7
        %v1225 = vsub.s32 0, %v1224
        %v1226 = vrot.slane %v1221, %v1225
        %vm1228 = vcmask 523264
        %v1230 = vsel %vm1228, %v1212, 0
        %1232 = vmatprep.subr.mxu0 0.0
        %1233 = vmatpush1.msra.mxu0 %v1213
        %1234 = vmatprep.subr.mxu0 0.0
        %1235 = vmatpush1.msra.mxu0 %v1214
        %1236 = vmatprep.subr.mxu0 0.0
        %1237 = vmatpush1.msra.mxu0 %v1215
        %1238 = vmatprep.subr.mxu0 0.0
        %1239 = vmatpush1.msra.mxu0 %v1216
        %1240 = vmatprep.subr.mxu0 0.0
        %1241 = vmatpush1.msra.mxu0 %v1217
        %1242 = vmatprep.subr.mxu0 0.0
        %1243 = vmatpush1.msra.mxu0 %v1218
        %1244 = vmatprep.subr.mxu0 0.0
        %1245 = vmatpush1.msra.mxu0 %v1219
        %1246 = vmatprep.subr.mxu0 0.0
        %1247 = vmatpush1.msra.mxu0 %v1220
        %1248 = vmatprep.subr.mxu0 0.0
        %1249 = vmatpush1.msra.mxu0 0.0
        %1250 = vmatprep.subr.mxu0 0.0
        %1251 = vmatpush1.msra.mxu0 0.0
        %1252 = vmatprep.subr.mxu0 0.0
        %1253 = vmatpush1.msra.mxu0 0.0
        %1254 = vmatprep.subr.mxu0 0.0
        %1255 = vmatpush1.msra.mxu0 0.0
        %1256 = vmatprep.subr.mxu0 0.0
        %1257 = vmatpush1.msra.mxu0 0.0
        %1258 = vmatprep.subr.mxu0 0.0
        %1259 = vmatpush1.msra.mxu0 0.0
        %1260 = vmatprep.subr.mxu0 0.0
        %1261 = vmatpush1.msra.mxu0 0.0
        %1262 = vmatprep.subr.mxu0 0.0
        %1263 = vmatpush1.msra.mxu0 0.0
        %1264 = vmatprep.subr.mxu0 0.0
        %1265 = vmatpush1.msra.mxu0 0.0
        %1266 = vmatprep.subr.mxu0 0.0
        %1267 = vmatpush1.msra.mxu0 0.0
        %1268 = vmatprep.subr.mxu0 0.0
        %1269 = vmatpush1.msra.mxu0 0.0
        %1270 = vmatprep.subr.mxu0 0.0
        %1271 = vmatpush1.msra.mxu0 0.0
        %1272 = vmatprep.subr.mxu0 0.0
        %1273 = vmatpush1.msra.mxu0 0.0
        %1274 = vmatprep.subr.mxu0 0.0
        %1275 = vmatpush1.msra.mxu0 0.0
        %1276 = vmatprep.subr.mxu0 0.0
        %1277 = vmatpush1.msra.mxu0 0.0
        %1278 = vmatprep.subr.mxu0 0.0
        %1279 = vmatpush1.msra.mxu0 0.0
        %1280 = vmatprep.subr.mxu0 0.0
        %1281 = vmatpush1.msra.mxu0 0.0
        %1282 = vmatprep.subr.mxu0 0.0
        %1283 = vmatpush1.msra.mxu0 0.0
        %1284 = vmatprep.subr.mxu0 0.0
        %1285 = vmatpush1.msra.mxu0 0.0
        %1286 = vmatprep.subr.mxu0 0.0
        %1287 = vmatpush1.msra.mxu0 0.0
        %1288 = vmatprep.subr.mxu0 0.0
        %1289 = vmatpush1.msra.mxu0 0.0
        %1290 = vmatprep.subr.mxu0 0.0
        %1291 = vmatpush1.msra.mxu0 0.0
        %1292 = vmatprep.subr.mxu0 0.0
        %1293 = vmatpush1.msra.mxu0 0.0
        %1294 = vmatprep.subr.mxu0 0.0
        %1295 = vmatpush1.msra.mxu0 0.0
        %1296 = vmatprep.mubr.f32.mxu0 0.0
        %1297 = vmatmul.mubr.f32.gmra.mrb[0].mxu0 %v1230
        %v1298 = vpop.f32.mrb[0].mxu0
        %v1299 = vadd.f32 %v1226, %v1298
        %v1300 = vpop.f32.mrb[0].mxu0
        %1301 = vdwg.mxu0
        %v1302 = vadd.f32 %v1299, %v1099
        %v1303 = vsel %vm623, %v1302, 0.0
        %1304 = vadd.xlane.f32.xlu0 %v1303
        %v1305 = vpop.xlane.xlu0 %1304
        %v1306 = vrcp.pop 32.0
        %v1307 = vmul.f32 %v1305, %v1306
        %v1308 = vsub.f32 %v1302, %v1307
        %v1309 = vmul.f32 %v1308, %v1308
        %v1310 = vsel %vm623, %v1309, 0.0
        %1311 = vadd.xlane.f32.xlu0 %v1310
        %v1312 = vpop.xlane.xlu0 %1311
        %v1313 = vmul.f32 %v1312, %v1306
        %v1314 = vadd.f32 %v1313, 1e-12
        %v1315 = vrsqrt.pop %v1314
        %v1316 = vmul.f32 %v1308, %v1315
        %v1317 = vld [vmem:[%s8] sm:$0x1]
        %v1319 = vlaneseq
        %v1320 = vshrl.u32 %v1319, 7
        %v1321 = vsub.s32 0, %v1320
        %v1322 = vrot.slane %v1317, %v1321
        %v1324 = vmul.f32 %v1316, %v1322
        %v1325 = vld [vmem:[%s9] sm:$0x1]
        %v1327 = vlaneseq
        %v1328 = vshrl.u32 %v1327, 7
        %v1329 = vsub.s32 0, %v1328
        %v1330 = vrot.slane %v1325, %v1329
        %v1332 = vadd.f32 %v1324, %v1330
        %1333 = vst.msk [vmem:[%s364] sm:$0xff] %vm623, %v1332
        %s1334 = sand.u32 %s261, 1
        %s1335 = scalar_lea.sflag [#allocation5], %s1334
        %s1336 = sand.u32 %s261, 1
        %s1337 = smul.addr %s1336, 8
        %s1338 = scalar_lea.vmem [#allocation4], %s1337
        // Predicated region
        $region65: #{tpu_custom_call.1} parent=59 // pred_check
          %p1339 = pneg %p271
        $region66: #{tpu_custom_call.1} parent=59 // pred_check_branch
          %1341 = sbr.rel (%p1339) target = $region68
        $region67: #{tpu_custom_call.1} parent=59 // pred_region
          %s1343 = ssub.s32 128, 128
          %1344 = vsyncadd %s1335, %s1343
          %s1345 = sadd.s32 %s29, %s28
          %s1346 = smul.addr %s1345, 128
          %s1347 = scalar_lea.hbm %s10, %s1346
          %s1349 = sshll.u32 %s1338, 4
          %s1350 = int_to_ptr.vmem [resolvable:$true] %s1349
          %1352 = dma.vmem_to_hbm [thread:$0]  %s1350, 128, %s1347, %s1335
        $region68: #{tpu_custom_call.1} parent=59 // pred_fallthru
          _
      $region60: #{tpu_custom_call.1} parent=5 // pred_fallthru
        _
      %p1353 = scmp.le.s32.totalorder 2, %s19
      // Predicated region
      $region69: #{tpu_custom_call.1} parent=5 // pred_check
        %p1354 = pneg %p1353
      $region70: #{tpu_custom_call.1} parent=5 // pred_check_branch
        %1356 = sbr.rel (%p1354) target = $region72
      $region71: #{tpu_custom_call.1} parent=5 // pred_region
        %s1357 = ssub.s32 %s19, 2
        // Predicated region
        $region73: #{tpu_custom_call.1} parent=71 // pred_check
          %p1358 = pneg %p277
        $region74: #{tpu_custom_call.1} parent=71 // pred_check_branch
          %1360 = sbr.rel (%p1358) target = $region76
        $region75: #{tpu_custom_call.1} parent=71 // pred_region
          %s1361 = sand.u32 %s262, 1
          %s1362 = scalar_lea.sflag [#allocation5], %s1361
          %s1363 = sand.u32 %s262, 1
          %s1364 = smul.addr %s1363, 8
          %s1365 = scalar_lea.vmem [#allocation4], %s1364
          %1366 = dma.done %s1362, 128
        $region76: #{tpu_custom_call.1} parent=71 // pred_fallthru
          _
      $region72: #{tpu_custom_call.1} parent=5 // pred_fallthru
        _
    $region6: #{tpu_custom_call.1} parent=1 // loop_footer
      %s23 = sadd.s32 1, %s19
    $region7: #{tpu_custom_call.1} parent=1 // loop_footer_branch
      %18 = sbr.rel target = $region3
    $region8: #{tpu_custom_call.1} parent=1 // loop_exit
      _
    %1367 = vsyncpa [#allocation5], 1
    %s1368 = scalar_lea.sflag [#allocation5], 1
    %1369 = vsyncpa %s1368, 1

// kernel: tpu_custom_call.1
$region0: #{tpu_custom_call.1}
  #allocation0 [shape = 'u32[]', space=smem, size = 0x4, offset = 0x4, fixed_abs, tag = 'smem constant byte address 0x4 - core index']
  #allocation1 [shape = 'u32[144,128]{1,0:T(1,128)}', space=vmem, size = 0x12000, scoped, tag = 'internal scratch']
  #allocation2 [shape = 'f32[8,32]{1,0:T(8,128)}', space=vmem, size = 0x1000, scoped, tag = 'scratch operand']
  #allocation3 [shape = 'f32[4,8]{1,0:T(4,128)}', space=vmem, size = 0x800, scoped, tag = 'scratch operand']
  %s0 = inlined_call_operand.vmem [shape: f32[2,8,32], index: 0, kind: input, shape index: {}]
  %s1 = inlined_call_operand.vmem [shape: f32[4,32], index: 1, kind: input, shape index: {}]
  %s2 = inlined_call_operand.vmem [shape: f32[32,32], index: 2, kind: input, shape index: {}]
  %s3 = inlined_call_operand.vmem [shape: f32[1,32], index: 3, kind: input, shape index: {}]
  %s4 = inlined_call_operand.vmem [shape: f32[32,64], index: 4, kind: input, shape index: {}]
  %s5 = inlined_call_operand.vmem [shape: f32[1,64], index: 5, kind: input, shape index: {}]
  %s6 = inlined_call_operand.vmem [shape: f32[64,32], index: 6, kind: input, shape index: {}]
  %s7 = inlined_call_operand.vmem [shape: f32[1,32], index: 7, kind: input, shape index: {}]
  %s8 = inlined_call_operand.vmem [shape: f32[1,32], index: 8, kind: input, shape index: {}]
  %s9 = inlined_call_operand.vmem [shape: f32[1,32], index: 9, kind: input, shape index: {}]
  %s10 = inlined_call_operand.hbm [shape: f32[2,8,32], index: 10, kind: output, shape index: {}]
  %s11 = sld [smem:[#allocation0]]
  $region77: #{tpu_custom_call.1} parent=0
    _
  %s13 = ssub.s32 1, %s11
  %s14 = scalar_select 0, %s13, %s11
  $region1: #{tpu_custom_call.1} parent=0
    #allocation4 [shape = 'u8[8192]{0}', space=vmem, size = 0x2000, scoped, tag = 'output window, operand 0']
    #allocation5 [shape = 's32[2]{0}', space=sflag, size = 0x8, scoped, tag = 'scoped memory for tpu_custom_call.1']
    %15 = vsyncpa [#allocation5], 0
    %s16 = scalar_lea.sflag [#allocation5], 1
    %17 = vsyncpa %s16, 0
    loop: start=0, step=1, limit=4
    $region2: #{tpu_custom_call.1} parent=1 // loop_pre_header
      _
    $region3: #{tpu_custom_call.1} parent=1 // loop_header
      %s19 = sphi 0, %s23
      %p20 = scmp.ge.s32.totalorder %s19, 4
      %s26 = sphi 0, %s38
      %s27 = sphi 0, %s34
      %s28 = sphi 0, %s26
      %s29 = sphi 0, %s27
      %s30 = sphi 0, %s28
      %s31 = sphi 0, %s29
      %s41 = sphi 0, %s43
      %s44 = sphi 0, %s41
      %s45 = sphi 0, %s44
      %s61 = sphi 0, %s45
      %s65 = sphi 0, %s65
      %s67 = sphi 0, %s65
      %s68 = sphi 0, %s67
      %s82 = sphi 0, %s68
      %s86 = sphi 0, %s86
      %s88 = sphi 0, %s86
      %s89 = sphi 0, %s88
      %s103 = sphi 0, %s89
      %s107 = sphi 0, %s107
      %s109 = sphi 0, %s107
      %s110 = sphi 0, %s109
      %s124 = sphi 0, %s110
      %s128 = sphi 0, %s128
      %s130 = sphi 0, %s128
      %s131 = sphi 0, %s130
      %s145 = sphi 0, %s131
      %s149 = sphi 0, %s149
      %s151 = sphi 0, %s149
      %s152 = sphi 0, %s151
      %s166 = sphi 0, %s152
      %s170 = sphi 0, %s170
      %s172 = sphi 0, %s170
      %s173 = sphi 0, %s172
      %s187 = sphi 0, %s173
      %s191 = sphi 0, %s191
      %s193 = sphi 0, %s191
      %s194 = sphi 0, %s193
      %s208 = sphi 0, %s194
      %s212 = sphi 0, %s212
      %s214 = sphi 0, %s212
      %s215 = sphi 0, %s214
      %s229 = sphi 0, %s215
      %s233 = sphi 0, %s233
      %s235 = sphi 0, %s233
      %s236 = sphi 0, %s235
      %s250 = sphi 0, %s236
      %s258 = sphi 0, %s260
      %s261 = sphi 0, %s258
      %s262 = sphi 0, %s261
      %s278 = sphi 0, %s262
    $region4: #{tpu_custom_call.1} parent=1 // loop_header_branch
      %22 = sbr.rel (%p20) target = $region8
    $region5: #{tpu_custom_call.1} parent=1 // loop_body
      %s24 = ssub.s32 %s19, 1
      %s25 = ssub.s32 %s19, 2
      %s32 = sadd.s32 1, %s27
      %p33 = scmp.ge.s32.totalorder %s32, 1
      %s34 = scalar_select %p33, 0, %s32
      %s35 = sadd.s32 1, %s26
      %s36 = scalar_select %p33, %s35, %s26
      %p37 = scmp.ge.s32.totalorder %s36, 2
      %s38 = scalar_select %p37, 0, %s36
      %s39 = ssub.s32 %s26, %s38
      %p40 = scmp.eq.s32.totalorder %s39, 0
      %s42 = sadd.s32 %s41, 1
      %s43 = scalar_select %p40, %s41, %s42
      %p46 = pneg %p40
      %p47 = scmp.eq.s32.totalorder %s19, 1
      %p48 = por %p46, %p47
      %p49 = scmp.ne.s32.totalorder %s41, %s44
      %p50 = scmp.eq.s32.totalorder %s19, 0
      %p51 = por %p49, %p50
      %p52 = scmp.ne.s32.totalorder %s41, %s44
      %p53 = scmp.eq.s32.totalorder %s24, 1
      %p54 = por %p52, %p53
      %p55 = scmp.ne.s32.totalorder %s44, %s45
      %p56 = scmp.eq.s32.totalorder %s24, 0
      %p57 = por %p55, %p56
      %p58 = scmp.ne.s32.totalorder %s44, %s45
      %p59 = scmp.eq.s32.totalorder %s25, 1
      %p60 = por %p58, %p59
      %p62 = scmp.ne.s32.totalorder %s45, %s61
      %p63 = scmp.eq.s32.totalorder %s25, 0
      %p64 = por %p62, %p63
      %s66 = sadd.s32 %s65, 1
      %p69 = scmp.eq.s32.totalorder %s19, 1
      %p70 = scmp.ne.s32.totalorder %s65, %s67
      %p71 = scmp.eq.s32.totalorder %s19, 0
      %p72 = por %p70, %p71
      %p73 = scmp.ne.s32.totalorder %s65, %s67
      %p74 = scmp.eq.s32.totalorder %s24, 1
      %p75 = por %p73, %p74
      %p76 = scmp.ne.s32.totalorder %s67, %s68
      %p77 = scmp.eq.s32.totalorder %s24, 0
      %p78 = por %p76, %p77
      %p79 = scmp.ne.s32.totalorder %s67, %s68
      %p80 = scmp.eq.s32.totalorder %s25, 1
      %p81 = por %p79, %p80
      %p83 = scmp.ne.s32.totalorder %s68, %s82
      %p84 = scmp.eq.s32.totalorder %s25, 0
      %p85 = por %p83, %p84
      %s87 = sadd.s32 %s86, 1
      %p90 = scmp.eq.s32.totalorder %s19, 1
      %p91 = scmp.ne.s32.totalorder %s86, %s88
      %p92 = scmp.eq.s32.totalorder %s19, 0
      %p93 = por %p91, %p92
      %p94 = scmp.ne.s32.totalorder %s86, %s88
      %p95 = scmp.eq.s32.totalorder %s24, 1
      %p96 = por %p94, %p95
      %p97 = scmp.ne.s32.totalorder %s88, %s89
      %p98 = scmp.eq.s32.totalorder %s24, 0
      %p99 = por %p97, %p98
      %p100 = scmp.ne.s32.totalorder %s88, %s89
      %p101 = scmp.eq.s32.totalorder %s25, 1
      %p102 = por %p100, %p101
      %p104 = scmp.ne.s32.totalorder %s89, %s103
      %p105 = scmp.eq.s32.totalorder %s25, 0
      %p106 = por %p104, %p105
      %s108 = sadd.s32 %s107, 1
      %p111 = scmp.eq.s32.totalorder %s19, 1
      %p112 = scmp.ne.s32.totalorder %s107, %s109
      %p113 = scmp.eq.s32.totalorder %s19, 0
      %p114 = por %p112, %p113
      %p115 = scmp.ne.s32.totalorder %s107, %s109
      %p116 = scmp.eq.s32.totalorder %s24, 1
      %p117 = por %p115, %p116
      %p118 = scmp.ne.s32.totalorder %s109, %s110
      %p119 = scmp.eq.s32.totalorder %s24, 0
      %p120 = por %p118, %p119
      %p121 = scmp.ne.s32.totalorder %s109, %s110
      %p122 = scmp.eq.s32.totalorder %s25, 1
      %p123 = por %p121, %p122
      %p125 = scmp.ne.s32.totalorder %s110, %s124
      %p126 = scmp.eq.s32.totalorder %s25, 0
      %p127 = por %p125, %p126
      %s129 = sadd.s32 %s128, 1
      %p132 = scmp.eq.s32.totalorder %s19, 1
      %p133 = scmp.ne.s32.totalorder %s128, %s130
      %p134 = scmp.eq.s32.totalorder %s19, 0
      %p135 = por %p133, %p134
      %p136 = scmp.ne.s32.totalorder %s128, %s130
      %p137 = scmp.eq.s32.totalorder %s24, 1
      %p138 = por %p136, %p137
      %p139 = scmp.ne.s32.totalorder %s130, %s131
      %p140 = scmp.eq.s32.totalorder %s24, 0
      %p141 = por %p139, %p140
      %p142 = scmp.ne.s32.totalorder %s130, %s131
      %p143 = scmp.eq.s32.totalorder %s25, 1
      %p144 = por %p142, %p143
      %p146 = scmp.ne.s32.totalorder %s131, %s145
      %p147 = scmp.eq.s32.totalorder %s25, 0
      %p148 = por %p146, %p147
      %s150 = sadd.s32 %s149, 1
      %p153 = scmp.eq.s32.totalorder %s19, 1
      %p154 = scmp.ne.s32.totalorder %s149, %s151
      %p155 = scmp.eq.s32.totalorder %s19, 0
      %p156 = por %p154, %p155
      %p157 = scmp.ne.s32.totalorder %s149, %s151
      %p158 = scmp.eq.s32.totalorder %s24, 1
      %p159 = por %p157, %p158
      %p160 = scmp.ne.s32.totalorder %s151, %s152
      %p161 = scmp.eq.s32.totalorder %s24, 0
      %p162 = por %p160, %p161
      %p163 = scmp.ne.s32.totalorder %s151, %s152
      %p164 = scmp.eq.s32.totalorder %s25, 1
      %p165 = por %p163, %p164
      %p167 = scmp.ne.s32.totalorder %s152, %s166
      %p168 = scmp.eq.s32.totalorder %s25, 0
      %p169 = por %p167, %p168
      %s171 = sadd.s32 %s170, 1
      %p174 = scmp.eq.s32.totalorder %s19, 1
      %p175 = scmp.ne.s32.totalorder %s170, %s172
      %p176 = scmp.eq.s32.totalorder %s19, 0
      %p177 = por %p175, %p176
      %p178 = scmp.ne.s32.totalorder %s170, %s172
      %p179 = scmp.eq.s32.totalorder %s24, 1
      %p180 = por %p178, %p179
      %p181 = scmp.ne.s32.totalorder %s172, %s173
      %p182 = scmp.eq.s32.totalorder %s24, 0
      %p183 = por %p181, %p182
      %p184 = scmp.ne.s32.totalorder %s172, %s173
      %p185 = scmp.eq.s32.totalorder %s25, 1
      %p186 = por %p184, %p185
      %p188 = scmp.ne.s32.totalorder %s173, %s187
      %p189 = scmp.eq.s32.totalorder %s25, 0
      %p190 = por %p188, %p189
      %s192 = sadd.s32 %s191, 1
      %p195 = scmp.eq.s32.totalorder %s19, 1
      %p196 = scmp.ne.s32.totalorder %s191, %s193
      %p197 = scmp.eq.s32.totalorder %s19, 0
      %p198 = por %p196, %p197
      %p199 = scmp.ne.s32.totalorder %s191, %s193
      %p200 = scmp.eq.s32.totalorder %s24, 1
      %p201 = por %p199, %p200
      %p202 = scmp.ne.s32.totalorder %s193, %s194
      %p203 = scmp.eq.s32.totalorder %s24, 0
      %p204 = por %p202, %p203
      %p205 = scmp.ne.s32.totalorder %s193, %s194
      %p206 = scmp.eq.s32.totalorder %s25, 1
      %p207 = por %p205, %p206
      %p209 = scmp.ne.s32.totalorder %s194, %s208
      %p210 = scmp.eq.s32.totalorder %s25, 0
      %p211 = por %p209, %p210
      %s213 = sadd.s32 %s212, 1
      %p216 = scmp.eq.s32.totalorder %s19, 1
      %p217 = scmp.ne.s32.totalorder %s212, %s214
      %p218 = scmp.eq.s32.totalorder %s19, 0
      %p219 = por %p217, %p218
      %p220 = scmp.ne.s32.totalorder %s212, %s214
      %p221 = scmp.eq.s32.totalorder %s24, 1
      %p222 = por %p220, %p221
      %p223 = scmp.ne.s32.totalorder %s214, %s215
      %p224 = scmp.eq.s32.totalorder %s24, 0
      %p225 = por %p223, %p224
      %p226 = scmp.ne.s32.totalorder %s214, %s215
      %p227 = scmp.eq.s32.totalorder %s25, 1
      %p228 = por %p226, %p227
      %p230 = scmp.ne.s32.totalorder %s215, %s229
      %p231 = scmp.eq.s32.totalorder %s25, 0
      %p232 = por %p230, %p231
      %s234 = sadd.s32 %s233, 1
      %p237 = scmp.eq.s32.totalorder %s19, 1
      %p238 = scmp.ne.s32.totalorder %s233, %s235
      %p239 = scmp.eq.s32.totalorder %s19, 0
      %p240 = por %p238, %p239
      %p241 = scmp.ne.s32.totalorder %s233, %s235
      %p242 = scmp.eq.s32.totalorder %s24, 1
      %p243 = por %p241, %p242
      %p244 = scmp.ne.s32.totalorder %s235, %s236
      %p245 = scmp.eq.s32.totalorder %s24, 0
      %p246 = por %p244, %p245
      %p247 = scmp.ne.s32.totalorder %s235, %s236
      %p248 = scmp.eq.s32.totalorder %s25, 1
      %p249 = por %p247, %p248
      %p251 = scmp.ne.s32.totalorder %s236, %s250
      %p252 = scmp.eq.s32.totalorder %s25, 0
      %p253 = por %p251, %p252
      %s254 = ssub.s32 %s26, %s38
      %s255 = ssub.s32 %s27, %s34
      %s256 = sor.u32 %s254, %s255
      %p257 = scmp.eq.s32.totalorder %s256, 0
      %s259 = sadd.s32 %s258, 1
      %s260 = scalar_select %p257, %s258, %s259
      %p263 = pneg %p257
      %p264 = scmp.eq.s32.totalorder %s19, 1
      %p265 = por %p263, %p264
      %p266 = scmp.ne.s32.totalorder %s258, %s261
      %p267 = scmp.eq.s32.totalorder %s19, 0
      %p268 = por %p266, %p267
      %p269 = scmp.ne.s32.totalorder %s258, %s261
      %p270 = scmp.eq.s32.totalorder %s24, 1
      %p271 = por %p269, %p270
      %p272 = scmp.ne.s32.totalorder %s261, %s262
      %p273 = scmp.eq.s32.totalorder %s24, 0
      %p274 = por %p272, %p273
      %p275 = scmp.ne.s32.totalorder %s261, %s262
      %p276 = scmp.eq.s32.totalorder %s25, 1
      %p277 = por %p275, %p276
      %p279 = scmp.ne.s32.totalorder %s262, %s278
      %p280 = scmp.eq.s32.totalorder %s25, 0
      %p281 = por %p279, %p280
      %p282 = scmp.le.s32.totalorder 1, %s19
      %p283 = scmp.lt.s32.totalorder %s19, 3
      %p284 = pnand %p282, %p283
      %p285 = pneg %p284
      // Predicated region
      $region9: #{tpu_custom_call.1} parent=5 // pred_check
        _
      $region10: #{tpu_custom_call.1} parent=5 // pred_check_branch
        %287 = sbr.rel (%p284) target = $region12
      $region11: #{tpu_custom_call.1} parent=5 // pred_region
        %s288 = ssub.s32 %s19, 1
        // Predicated region
        $region13: #{tpu_custom_call.1} parent=11 // pred_check
          %p289 = pneg %p78
        $region14: #{tpu_custom_call.1} parent=11 // pred_check_branch
          %291 = sbr.rel (%p289) target = $region16
        $region15: #{tpu_custom_call.1} parent=11 // pred_region
          _
        $region16: #{tpu_custom_call.1} parent=11 // pred_fallthru
          _
        // Predicated region
        $region17: #{tpu_custom_call.1} parent=11 // pred_check
          %p292 = pneg %p99
        $region18: #{tpu_custom_call.1} parent=11 // pred_check_branch
          %294 = sbr.rel (%p292) target = $region20
        $region19: #{tpu_custom_call.1} parent=11 // pred_region
          _
        $region20: #{tpu_custom_call.1} parent=11 // pred_fallthru
          _
        // Predicated region
        $region21: #{tpu_custom_call.1} parent=11 // pred_check
          %p295 = pneg %p120
        $region22: #{tpu_custom_call.1} parent=11 // pred_check_branch
          %297 = sbr.rel (%p295) target = $region24
        $region23: #{tpu_custom_call.1} parent=11 // pred_region
          _
        $region24: #{tpu_custom_call.1} parent=11 // pred_fallthru
          _
        // Predicated region
        $region25: #{tpu_custom_call.1} parent=11 // pred_check
          %p298 = pneg %p141
        $region26: #{tpu_custom_call.1} parent=11 // pred_check_branch
          %300 = sbr.rel (%p298) target = $region28
        $region27: #{tpu_custom_call.1} parent=11 // pred_region
          _
        $region28: #{tpu_custom_call.1} parent=11 // pred_fallthru
          _
        // Predicated region
        $region29: #{tpu_custom_call.1} parent=11 // pred_check
          %p301 = pneg %p162
        $region30: #{tpu_custom_call.1} parent=11 // pred_check_branch
          %303 = sbr.rel (%p301) target = $region32
        $region31: #{tpu_custom_call.1} parent=11 // pred_region
          _
        $region32: #{tpu_custom_call.1} parent=11 // pred_fallthru
          _
        // Predicated region
        $region33: #{tpu_custom_call.1} parent=11 // pred_check
          %p304 = pneg %p183
        $region34: #{tpu_custom_call.1} parent=11 // pred_check_branch
          %306 = sbr.rel (%p304) target = $region36
        $region35: #{tpu_custom_call.1} parent=11 // pred_region
          _
        $region36: #{tpu_custom_call.1} parent=11 // pred_fallthru
          _
        // Predicated region
        $region37: #{tpu_custom_call.1} parent=11 // pred_check
          %p307 = pneg %p204
        $region38: #{tpu_custom_call.1} parent=11 // pred_check_branch
          %309 = sbr.rel (%p307) target = $region40
        $region39: #{tpu_custom_call.1} parent=11 // pred_region
          _
        $region40: #{tpu_custom_call.1} parent=11 // pred_fallthru
          _
        // Predicated region
        $region41: #{tpu_custom_call.1} parent=11 // pred_check
          %p310 = pneg %p225
        $region42: #{tpu_custom_call.1} parent=11 // pred_check_branch
          %312 = sbr.rel (%p310) target = $region44
        $region43: #{tpu_custom_call.1} parent=11 // pred_region
          _
        $region44: #{tpu_custom_call.1} parent=11 // pred_fallthru
          _
        // Predicated region
        $region45: #{tpu_custom_call.1} parent=11 // pred_check
          %p313 = pneg %p246
        $region46: #{tpu_custom_call.1} parent=11 // pred_check_branch
          %315 = sbr.rel (%p313) target = $region48
        $region47: #{tpu_custom_call.1} parent=11 // pred_region
          _
        $region48: #{tpu_custom_call.1} parent=11 // pred_fallthru
          _
      $region12: #{tpu_custom_call.1} parent=5 // pred_fallthru
        _
      %p316 = scmp.lt.s32.totalorder %s19, 2
      // Predicated region
      $region49: #{tpu_custom_call.1} parent=5 // pred_check
        %p317 = pneg %p316
      $region50: #{tpu_custom_call.1} parent=5 // pred_check_branch
        %319 = sbr.rel (%p317) target = $region52
      $region51: #{tpu_custom_call.1} parent=5 // pred_region
        // Predicated region
        $region53: #{tpu_custom_call.1} parent=51 // pred_check
          %p320 = pneg %p51
        $region54: #{tpu_custom_call.1} parent=51 // pred_check_branch
          %322 = sbr.rel (%p320) target = $region56
        $region55: #{tpu_custom_call.1} parent=51 // pred_region
          %p323 = scmp.lt.s32.totalorder %s26, 1
          %s324 = scalar_select %p323, %s26, 1
          %s325 = smul.addr %s324, 8
          %s326 = scalar_lea.vmem %s0, %s325
        $region56: #{tpu_custom_call.1} parent=51 // pred_fallthru
          _
      $region52: #{tpu_custom_call.1} parent=5 // pred_fallthru
        _
      %p327 = scmp.le.s32.totalorder 1, %s19
      %p328 = scmp.lt.s32.totalorder %s19, 3
      %p329 = pnand %p327, %p328
      %p330 = pneg %p329
      // Predicated region
      $region57: #{tpu_custom_call.1} parent=5 // pred_check
        _
      $region58: #{tpu_custom_call.1} parent=5 // pred_check_branch
        %332 = sbr.rel (%p329) target = $region60
      $region59: #{tpu_custom_call.1} parent=5 // pred_region
        %s333 = ssub.s32 %s19, 1
        %p334 = scmp.lt.s32.totalorder %s28, 1
        %s335 = scalar_select %p334, %s28, 1
        %s336 = smul.addr %s335, 8
        %s337 = scalar_lea.vmem %s0, %s336
        %p338 = pneg %p57
        %p339 = pneg %p54
        %p340 = pneg %p78
        %p341 = pneg %p75
        %p342 = pneg %p99
        %p343 = pneg %p96
        %p344 = pneg %p120
        %p345 = pneg %p117
        %p346 = pneg %p141
        %p347 = pneg %p138
        %p348 = pneg %p162
        %p349 = pneg %p159
        %p350 = pneg %p183
        %p351 = pneg %p180
        %p352 = pneg %p204
        %p353 = pneg %p201
        %p354 = pneg %p225
        %p355 = pneg %p222
        %p356 = pneg %p246
        %p357 = pneg %p243
        %p358 = pneg %p274
        %p359 = pneg %p271
        %s360 = sand.u32 %s261, 1
        %s361 = scalar_lea.sflag [#allocation5], %s360
        %s362 = sand.u32 %s261, 1
        %s363 = smul.addr %s362, 8
        %s364 = scalar_lea.vmem [#allocation4], %s363
        %p365 = scmp.lt.s32.totalorder %s28, 1
        %s366 = scalar_select %p365, %s28, 1
        %s367 = smul.addr %s366, 8
        %s368 = scalar_lea.vmem %s0, %s367
        %v369 = vld [vmem:[%s368] sm:$0xff]
        %s370 = smul.u32 %s29, 8
        %s371 = scalar_lea.vmem %s368, %s370
        %v372 = vld [vmem:[%s371] sm:$0xff]
        %p373 = scmp.eq.s32.totalorder %s29, 0
        // Predicated region
        $region61: #{tpu_custom_call.1} parent=59 // pred_check
          %p374 = pneg %p373
        $region62: #{tpu_custom_call.1} parent=59 // pred_check_branch
          %376 = sbr.rel (%p374) target = $region64
        $region63: #{tpu_custom_call.1} parent=59 // pred_region
          %v377 = vld [vmem:[%s2] sm:$0xff]
          %v378 = vld [vmem:[%s2 + $0x8] sm:$0xff]
          %v379 = vld [vmem:[%s2 + $0x10] sm:$0xff]
          %v380 = vld [vmem:[%s2 + $0x18] sm:$0xff]
          %v381 = vld [vmem:[%s3] sm:$0x1]
          %v383 = vlaneseq
          %v384 = vshrl.u32 %v383, 7
          %v385 = vsub.s32 0, %v384
          %v386 = vrot.slane %v381, %v385
          %vm388 = vcmask 261120
          %v390 = vsel %vm388, %v369, 0
          %392 = vmatprep.subr.mxu0 0.0
          %393 = vmatpush1.msra.mxu0 %v377
          %394 = vmatprep.subr.mxu0 0.0
          %395 = vmatpush1.msra.mxu0 %v378
          %396 = vmatprep.subr.mxu0 0.0
          %397 = vmatpush1.msra.mxu0 %v379
          %398 = vmatprep.subr.mxu0 0.0
          %399 = vmatpush1.msra.mxu0 %v380
          %400 = vmatprep.subr.mxu0 0.0
          %401 = vmatpush1.msra.mxu0 0.0
          %402 = vmatprep.subr.mxu0 0.0
          %403 = vmatpush1.msra.mxu0 0.0
          %404 = vmatprep.subr.mxu0 0.0
          %405 = vmatpush1.msra.mxu0 0.0
          %406 = vmatprep.subr.mxu0 0.0
          %407 = vmatpush1.msra.mxu0 0.0
          %408 = vmatprep.subr.mxu0 0.0
          %409 = vmatpush1.msra.mxu0 0.0
          %410 = vmatprep.subr.mxu0 0.0
          %411 = vmatpush1.msra.mxu0 0.0
          %412 = vmatprep.subr.mxu0 0.0
          %413 = vmatpush1.msra.mxu0 0.0
          %414 = vmatprep.subr.mxu0 0.0
          %415 = vmatpush1.msra.mxu0 0.0
          %416 = vmatprep.subr.mxu0 0.0
          %417 = vmatpush1.msra.mxu0 0.0
          %418 = vmatprep.subr.mxu0 0.0
          %419 = vmatpush1.msra.mxu0 0.0
          %420 = vmatprep.subr.mxu0 0.0
          %421 = vmatpush1.msra.mxu0 0.0
          %422 = vmatprep.subr.mxu0 0.0
          %423 = vmatpush1.msra.mxu0 0.0
          %424 = vmatprep.subr.mxu0 0.0
          %425 = vmatpush1.msra.mxu0 0.0
          %426 = vmatprep.subr.mxu0 0.0
          %427 = vmatpush1.msra.mxu0 0.0
          %428 = vmatprep.subr.mxu0 0.0
          %429 = vmatpush1.msra.mxu0 0.0
          %430 = vmatprep.subr.mxu0 0.0
          %431 = vmatpush1.msra.mxu0 0.0
          %432 = vmatprep.subr.mxu0 0.0
          %433 = vmatpush1.msra.mxu0 0.0
          %434 = vmatprep.subr.mxu0 0.0
          %435 = vmatpush1.msra.mxu0 0.0
          %436 = vmatprep.subr.mxu0 0.0
          %437 = vmatpush1.msra.mxu0 0.0
          %438 = vmatprep.subr.mxu0 0.0
          %439 = vmatpush1.msra.mxu0 0.0
          %440 = vmatprep.subr.mxu0 0.0
          %441 = vmatpush1.msra.mxu0 0.0
          %442 = vmatprep.subr.mxu0 0.0
          %443 = vmatpush1.msra.mxu0 0.0
          %444 = vmatprep.subr.mxu0 0.0
          %445 = vmatpush1.msra.mxu0 0.0
          %446 = vmatprep.subr.mxu0 0.0
          %447 = vmatpush1.msra.mxu0 0.0
          %448 = vmatprep.subr.mxu0 0.0
          %449 = vmatpush1.msra.mxu0 0.0
          %450 = vmatprep.subr.mxu0 0.0
          %451 = vmatpush1.msra.mxu0 0.0
          %452 = vmatprep.subr.mxu0 0.0
          %453 = vmatpush1.msra.mxu0 0.0
          %454 = vmatprep.subr.mxu0 0.0
          %455 = vmatpush1.msra.mxu0 0.0
          %456 = vmatprep.mubr.f32.mxu0 0.0
          %457 = vmatmul.mubr.f32.gmra.mrb[0].mxu0 %v390
          %v458 = vpop.f32.mrb[0].mxu0
          %v459 = vadd.f32 %v386, %v458
          %v460 = vpop.f32.mrb[0].mxu0
          %461 = vdwg.mxu0
          %462 = vst.msk [vmem:[#allocation2] sm:$0xff] %vm388, %v459
          %v463 = vld [vmem:[%s1] sm:$0xf]
          %v465 = vsel %vm388, %v463, 0
          %467 = vmatprep.subr.mxu0 0.0
          %468 = vmatpush1.xpose.msra.mxu0 %v390
          %469 = vmatprep.subr.mxu0 0.0
          %470 = vmatpush1.xpose.msra.mxu0 0.0
          %471 = vmatprep.subr.mxu0 0.0
          %472 = vmatpush1.xpose.msra.mxu0 0.0
          %473 = vmatprep.subr.mxu0 0.0
          %474 = vmatpush1.xpose.msra.mxu0 0.0
          %475 = vmatprep.subr.mxu0 0.0
          %476 = vmatpush1.xpose.msra.mxu0 0.0
          %477 = vmatprep.subr.mxu0 0.0
          %478 = vmatpush1.xpose.msra.mxu0 0.0
          %479 = vmatprep.subr.mxu0 0.0
          %480 = vmatpush1.xpose.msra.mxu0 0.0
          %481 = vmatprep.subr.mxu0 0.0
          %482 = vmatpush1.xpose.msra.mxu0 0.0
          %483 = vmatprep.subr.mxu0 0.0
          %484 = vmatpush1.xpose.msra.mxu0 0.0
          %485 = vmatprep.subr.mxu0 0.0
          %486 = vmatpush1.xpose.msra.mxu0 0.0
          %487 = vmatprep.subr.mxu0 0.0
          %488 = vmatpush1.xpose.msra.mxu0 0.0
          %489 = vmatprep.subr.mxu0 0.0
          %490 = vmatpush1.xpose.msra.mxu0 0.0
          %491 = vmatprep.subr.mxu0 0.0
          %492 = vmatpush1.xpose.msra.mxu0 0.0
          %493 = vmatprep.subr.mxu0 0.0
          %494 = vmatpush1.xpose.msra.mxu0 0.0
          %495 = vmatprep.subr.mxu0 0.0
          %496 = vmatpush1.xpose.msra.mxu0 0.0
          %497 = vmatprep.subr.mxu0 0.0
          %498 = vmatpush1.xpose.msra.mxu0 0.0
          %499 = vmatprep.subr.mxu0 0.0
          %500 = vmatpush1.xpose.msra.mxu0 0.0
          %501 = vmatprep.subr.mxu0 0.0
          %502 = vmatpush1.xpose.msra.mxu0 0.0
          %503 = vmatprep.subr.mxu0 0.0
          %504 = vmatpush1.xpose.msra.mxu0 0.0
          %505 = vmatprep.subr.mxu0 0.0
          %506 = vmatpush1.xpose.msra.mxu0 0.0
          %507 = vmatprep.subr.mxu0 0.0
          %508 = vmatpush1.xpose.msra.mxu0 0.0
          %509 = vmatprep.subr.mxu0 0.0
          %510 = vmatpush1.xpose.msra.mxu0 0.0
          %511 = vmatprep.subr.mxu0 0.0
          %512 = vmatpush1.xpose.msra.mxu0 0.0
          %513 = vmatprep.subr.mxu0 0.0
          %514 = vmatpush1.xpose.msra.mxu0 0.0
          %515 = vmatprep.subr.mxu0 0.0
          %516 = vmatpush1.xpose.msra.mxu0 0.0
          %517 = vmatprep.subr.mxu0 0.0
          %518 = vmatpush1.xpose.msra.mxu0 0.0
          %519 = vmatprep.subr.mxu0 0.0
          %520 = vmatpush1.xpose.msra.mxu0 0.0
          %521 = vmatprep.subr.mxu0 0.0
          %522 = vmatpush1.xpose.msra.mxu0 0.0
          %523 = vmatprep.subr.mxu0 0.0
          %524 = vmatpush1.xpose.msra.mxu0 0.0
          %525 = vmatprep.subr.mxu0 0.0
          %526 = vmatpush1.xpose.msra.mxu0 0.0
          %527 = vmatprep.subr.mxu0 0.0
          %528 = vmatpush1.xpose.msra.mxu0 0.0
          %529 = vmatprep.subr.mxu0 0.0
          %530 = vmatpush1.xpose.msra.mxu0 0.0
          %531 = vmatprep.mubr.f32.mxu0 0.0
          %532 = vmatmul.mubr.f32.gmra.mrb[0].mxu0 %v465
          %v533 = vpop.f32.mrb[0].mxu0
          %v534 = vadd.f32 0.0, %v533
          %v535 = vpop.f32.mrb[0].mxu0
          %536 = vdwg.mxu0
          %v537 = vmul.f32 %v369, %v369
          %v539 = vsel %vm388, 1.0, 0
          %v542 = vsel %vm388, %v537, 0
          %544 = vmatprep.subr.mxu0 0.0
          %545 = vmatpush1.xpose.msra.mxu0 %v542
          %546 = vmatprep.subr.mxu0 0.0
          %547 = vmatpush1.xpose.msra.mxu0 0.0
          %548 = vmatprep.subr.mxu0 0.0
          %549 = vmatpush1.xpose.msra.mxu0 0.0
          %550 = vmatprep.subr.mxu0 0.0
          %551 = vmatpush1.xpose.msra.mxu0 0.0
          %552 = vmatprep.subr.mxu0 0.0
          %553 = vmatpush1.xpose.msra.mxu0 0.0
          %554 = vmatprep.subr.mxu0 0.0
          %555 = vmatpush1.xpose.msra.mxu0 0.0
          %556 = vmatprep.subr.mxu0 0.0
          %557 = vmatpush1.xpose.msra.mxu0 0.0
          %558 = vmatprep.subr.mxu0 0.0
          %559 = vmatpush1.xpose.msra.mxu0 0.0
          %560 = vmatprep.subr.mxu0 0.0
          %561 = vmatpush1.xpose.msra.mxu0 0.0
          %562 = vmatprep.subr.mxu0 0.0
          %563 = vmatpush1.xpose.msra.mxu0 0.0
          %564 = vmatprep.subr.mxu0 0.0
          %565 = vmatpush1.xpose.msra.mxu0 0.0
          %566 = vmatprep.subr.mxu0 0.0
          %567 = vmatpush1.xpose.msra.mxu0 0.0
          %568 = vmatprep.subr.mxu0 0.0
          %569 = vmatpush1.xpose.msra.mxu0 0.0
          %570 = vmatprep.subr.mxu0 0.0
          %571 = vmatpush1.xpose.msra.mxu0 0.0
          %572 = vmatprep.subr.mxu0 0.0
          %573 = vmatpush1.xpose.msra.mxu0 0.0
          %574 = vmatprep.subr.mxu0 0.0
          %575 = vmatpush1.xpose.msra.mxu0 0.0
          %576 = vmatprep.subr.mxu0 0.0
          %577 = vmatpush1.xpose.msra.mxu0 0.0
          %578 = vmatprep.subr.mxu0 0.0
          %579 = vmatpush1.xpose.msra.mxu0 0.0
          %580 = vmatprep.subr.mxu0 0.0
          %581 = vmatpush1.xpose.msra.mxu0 0.0
          %582 = vmatprep.subr.mxu0 0.0
          %583 = vmatpush1.xpose.msra.mxu0 0.0
          %584 = vmatprep.subr.mxu0 0.0
          %585 = vmatpush1.xpose.msra.mxu0 0.0
          %586 = vmatprep.subr.mxu0 0.0
          %587 = vmatpush1.xpose.msra.mxu0 0.0
          %588 = vmatprep.subr.mxu0 0.0
          %589 = vmatpush1.xpose.msra.mxu0 0.0
          %590 = vmatprep.subr.mxu0 0.0
          %591 = vmatpush1.xpose.msra.mxu0 0.0
          %592 = vmatprep.subr.mxu0 0.0
          %593 = vmatpush1.xpose.msra.mxu0 0.0
          %594 = vmatprep.subr.mxu0 0.0
          %595 = vmatpush1.xpose.msra.mxu0 0.0
          %596 = vmatprep.subr.mxu0 0.0
          %597 = vmatpush1.xpose.msra.mxu0 0.0
          %598 = vmatprep.subr.mxu0 0.0
          %599 = vmatpush1.xpose.msra.mxu0 0.0
          %600 = vmatprep.subr.mxu0 0.0
          %601 = vmatpush1.xpose.msra.mxu0 0.0
          %602 = vmatprep.subr.mxu0 0.0
          %603 = vmatpush1.xpose.msra.mxu0 0.0
          %604 = vmatprep.subr.mxu0 0.0
          %605 = vmatpush1.xpose.msra.mxu0 0.0
          %606 = vmatprep.subr.mxu0 0.0
          %607 = vmatpush1.xpose.msra.mxu0 0.0
          %608 = vmatprep.mubr.f32.mxu0 0.0
          %609 = vmatmul.mubr.f32.gmra.mrb[0].mxu0 %v539
          %v610 = vpop.f32.mrb[0].mxu0
          %v611 = vadd.f32 0.0, %v610
          %v612 = vpop.f32.mrb[0].mxu0
          %613 = vdwg.mxu0
          %v614 = vmul.f32 %v534, 0.0625
          %v615 = vmul.f32 %v611, 0.03125
          %v616 = vlaneseq
          %v617 = vshrl.u32 %v616, 7
          %v618 = vsub.s32 0, %v617
          %v619 = vrot.slane %v615, %v618
          %v620 = vsub.f32 %v614, %v619
          %vm621 = vcmask 60416
          %622 = vst.msk [vmem:[#allocation3] sm:$0xf] %vm621, %v620
        $region64: #{tpu_custom_call.1} parent=59 // pred_fallthru
          _
        %vm623 = vcmask 261120
        %v625 = vsel %vm623, %v372, 0
        %v628 = vsel %vm623, %v369, 0
        %630 = vmatprep.subr.mxu0 0.0
        %631 = vmatpush1.xpose.msra.mxu0 %v628
        %632 = vmatprep.subr.mxu0 0.0
        %633 = vmatpush1.xpose.msra.mxu0 0.0
        %634 = vmatprep.subr.mxu0 0.0
        %635 = vmatpush1.xpose.msra.mxu0 0.0
        %636 = vmatprep.subr.mxu0 0.0
        %637 = vmatpush1.xpose.msra.mxu0 0.0
        %638 = vmatprep.subr.mxu0 0.0
        %639 = vmatpush1.xpose.msra.mxu0 0.0
        %640 = vmatprep.subr.mxu0 0.0
        %641 = vmatpush1.xpose.msra.mxu0 0.0
        %642 = vmatprep.subr.mxu0 0.0
        %643 = vmatpush1.xpose.msra.mxu0 0.0
        %644 = vmatprep.subr.mxu0 0.0
        %645 = vmatpush1.xpose.msra.mxu0 0.0
        %646 = vmatprep.subr.mxu0 0.0
        %647 = vmatpush1.xpose.msra.mxu0 0.0
        %648 = vmatprep.subr.mxu0 0.0
        %649 = vmatpush1.xpose.msra.mxu0 0.0
        %650 = vmatprep.subr.mxu0 0.0
        %651 = vmatpush1.xpose.msra.mxu0 0.0
        %652 = vmatprep.subr.mxu0 0.0
        %653 = vmatpush1.xpose.msra.mxu0 0.0
        %654 = vmatprep.subr.mxu0 0.0
        %655 = vmatpush1.xpose.msra.mxu0 0.0
        %656 = vmatprep.subr.mxu0 0.0
        %657 = vmatpush1.xpose.msra.mxu0 0.0
        %658 = vmatprep.subr.mxu0 0.0
        %659 = vmatpush1.xpose.msra.mxu0 0.0
        %660 = vmatprep.subr.mxu0 0.0
        %661 = vmatpush1.xpose.msra.mxu0 0.0
        %662 = vmatprep.subr.mxu0 0.0
        %663 = vmatpush1.xpose.msra.mxu0 0.0
        %664 = vmatprep.subr.mxu0 0.0
        %665 = vmatpush1.xpose.msra.mxu0 0.0
        %666 = vmatprep.subr.mxu0 0.0
        %667 = vmatpush1.xpose.msra.mxu0 0.0
        %668 = vmatprep.subr.mxu0 0.0
        %669 = vmatpush1.xpose.msra.mxu0 0.0
        %670 = vmatprep.subr.mxu0 0.0
        %671 = vmatpush1.xpose.msra.mxu0 0.0
        %672 = vmatprep.subr.mxu0 0.0
        %673 = vmatpush1.xpose.msra.mxu0 0.0
        %674 = vmatprep.subr.mxu0 0.0
        %675 = vmatpush1.xpose.msra.mxu0 0.0
        %676 = vmatprep.subr.mxu0 0.0
        %677 = vmatpush1.xpose.msra.mxu0 0.0
        %678 = vmatprep.subr.mxu0 0.0
        %679 = vmatpush1.xpose.msra.mxu0 0.0
        %680 = vmatprep.subr.mxu0 0.0
        %681 = vmatpush1.xpose.msra.mxu0 0.0
        %682 = vmatprep.subr.mxu0 0.0
        %683 = vmatpush1.xpose.msra.mxu0 0.0
        %684 = vmatprep.subr.mxu0 0.0
        %685 = vmatpush1.xpose.msra.mxu0 0.0
        %686 = vmatprep.subr.mxu0 0.0
        %687 = vmatpush1.xpose.msra.mxu0 0.0
        %688 = vmatprep.subr.mxu0 0.0
        %689 = vmatpush1.xpose.msra.mxu0 0.0
        %690 = vmatprep.subr.mxu0 0.0
        %691 = vmatpush1.xpose.msra.mxu0 0.0
        %692 = vmatprep.subr.mxu0 0.0
        %693 = vmatpush1.xpose.msra.mxu0 0.0
        %694 = vmatprep.mubr.f32.mxu0 0.0
        %695 = vmatmul.mubr.f32.gmra.mrb[0].mxu0 %v625
        %v696 = vpop.f32.mrb[0].mxu0
        %v697 = vadd.f32 0.0, %v696
        %v698 = vpop.f32.mrb[0].mxu0
        %699 = vdwg.mxu0
        %v700 = vmul.f32 %v697, 0.0625
        %v701 = vld [vmem:[#allocation3] sm:$0xf]
        %v702 = vlaneseq
        %v703 = vshrl.u32 %v702, 7
        %v704 = vsub.s32 0, %v703
        %v705 = vrot.slane %v701, %v704
        %v706 = vadd.f32 %v700, %v705
        %vm707 = vcmask 64512
        %v708 = vsel %vm707, %v706, -inf
        %709 = vmax.xlane.f32.xlu0 %v708
        %v710 = vpop.xlane.xlu0 %709
        %v711 = vsub.f32 %v706, %v710
        %v712 = vmul.f32 %v711, 1.442695
        %v713 = vpow.pop %v712
        %v714 = vsel %vm707, %v713, 0.0
        %715 = vadd.xlane.f32.xlu0 %v714
        %v716 = vpop.xlane.xlu0 %715
        %v717 = vld [vmem:[#allocation2] sm:$0xff]
        %v719 = vsel %vm707, %v713, 0
        %721 = vmatprep.subr.mxu0 0.0
        %722 = vmatpush1.msra.mxu0 %v717
        %723 = vmatprep.subr.mxu0 0.0
        %724 = vmatpush1.msra.mxu0 0.0
        %725 = vmatprep.subr.mxu0 0.0
        %726 = vmatpush1.msra.mxu0 0.0
        %727 = vmatprep.subr.mxu0 0.0
        %728 = vmatpush1.msra.mxu0 0.0
        %729 = vmatprep.subr.mxu0 0.0
        %730 = vmatpush1.msra.mxu0 0.0
        %731 = vmatprep.subr.mxu0 0.0
        %732 = vmatpush1.msra.mxu0 0.0
        %733 = vmatprep.subr.mxu0 0.0
        %734 = vmatpush1.msra.mxu0 0.0
        %735 = vmatprep.subr.mxu0 0.0
        %736 = vmatpush1.msra.mxu0 0.0
        %737 = vmatprep.subr.mxu0 0.0
        %738 = vmatpush1.msra.mxu0 0.0
        %739 = vmatprep.subr.mxu0 0.0
        %740 = vmatpush1.msra.mxu0 0.0
        %741 = vmatprep.subr.mxu0 0.0
        %742 = vmatpush1.msra.mxu0 0.0
        %743 = vmatprep.subr.mxu0 0.0
        %744 = vmatpush1.msra.mxu0 0.0
        %745 = vmatprep.subr.mxu0 0.0
        %746 = vmatpush1.msra.mxu0 0.0
        %747 = vmatprep.subr.mxu0 0.0
        %748 = vmatpush1.msra.mxu0 0.0
        %749 = vmatprep.subr.mxu0 0.0
        %750 = vmatpush1.msra.mxu0 0.0
        %751 = vmatprep.subr.mxu0 0.0
        %752 = vmatpush1.msra.mxu0 0.0
        %753 = vmatprep.subr.mxu0 0.0
        %754 = vmatpush1.msra.mxu0 0.0
        %755 = vmatprep.subr.mxu0 0.0
        %756 = vmatpush1.msra.mxu0 0.0
        %757 = vmatprep.subr.mxu0 0.0
        %758 = vmatpush1.msra.mxu0 0.0
        %759 = vmatprep.subr.mxu0 0.0
        %760 = vmatpush1.msra.mxu0 0.0
        %761 = vmatprep.subr.mxu0 0.0
        %762 = vmatpush1.msra.mxu0 0.0
        %763 = vmatprep.subr.mxu0 0.0
        %764 = vmatpush1.msra.mxu0 0.0
        %765 = vmatprep.subr.mxu0 0.0
        %766 = vmatpush1.msra.mxu0 0.0
        %767 = vmatprep.subr.mxu0 0.0
        %768 = vmatpush1.msra.mxu0 0.0
        %769 = vmatprep.subr.mxu0 0.0
        %770 = vmatpush1.msra.mxu0 0.0
        %771 = vmatprep.subr.mxu0 0.0
        %772 = vmatpush1.msra.mxu0 0.0
        %773 = vmatprep.subr.mxu0 0.0
        %774 = vmatpush1.msra.mxu0 0.0
        %775 = vmatprep.subr.mxu0 0.0
        %776 = vmatpush1.msra.mxu0 0.0
        %777 = vmatprep.subr.mxu0 0.0
        %778 = vmatpush1.msra.mxu0 0.0
        %779 = vmatprep.subr.mxu0 0.0
        %780 = vmatpush1.msra.mxu0 0.0
        %781 = vmatprep.subr.mxu0 0.0
        %782 = vmatpush1.msra.mxu0 0.0
        %783 = vmatprep.subr.mxu0 0.0
        %784 = vmatpush1.msra.mxu0 0.0
        %785 = vmatprep.mubr.f32.mxu0 0.0
        %786 = vmatmul.mubr.f32.gmra.mrb[0].mxu0 %v719
        %v787 = vpop.f32.mrb[0].mxu0
        %v788 = vadd.f32 0.0, %v787
        %v789 = vpop.f32.mrb[0].mxu0
        %790 = vdwg.mxu0
        %v791 = vrcp.pop %v716
        %v792 = vmul.f32 %v716, %v791
        %v793 = vsub.f32 2.0, %v792
        %v794 = vmul.f32 %v791, %v793
        %v795 = vmul.f32 %v788, %v794
        %v796 = vlaneseq
        %v797 = vshrl.u32 %v796, 7
        %v798 = vsub.s32 1, %v797
        %v799 = vrot.slane %v701, %v798
        %v800 = vadd.f32 %v700, %v799
        %v801 = vsel %vm707, %v800, -inf
        %802 = vmax.xlane.f32.xlu0 %v801
        %v803 = vpop.xlane.xlu0 %802
        %v804 = vsub.f32 %v800, %v803
        %v805 = vmul.f32 %v804, 1.442695
        %v806 = vpow.pop %v805
        %v807 = vsel %vm707, %v806, 0.0
        %808 = vadd.xlane.f32.xlu0 %v807
        %v809 = vpop.xlane.xlu0 %808
        %811 = vrot.lane.b32.xlu0 %v717, 120
        %v812 = vpop.permute.xlu0 %811
        %v815 = vsel %vm707, %v806, 0
        %817 = vmatprep.subr.mxu0 0.0
        %818 = vmatpush1.msra.mxu0 %v812
        %819 = vmatprep.subr.mxu0 0.0
        %820 = vmatpush1.msra.mxu0 0.0
        %821 = vmatprep.subr.mxu0 0.0
        %822 = vmatpush1.msra.mxu0 0.0
        %823 = vmatprep.subr.mxu0 0.0
        %824 = vmatpush1.msra.mxu0 0.0
        %825 = vmatprep.subr.mxu0 0.0
        %826 = vmatpush1.msra.mxu0 0.0
        %827 = vmatprep.subr.mxu0 0.0
        %828 = vmatpush1.msra.mxu0 0.0
        %829 = vmatprep.subr.mxu0 0.0
        %830 = vmatpush1.msra.mxu0 0.0
        %831 = vmatprep.subr.mxu0 0.0
        %832 = vmatpush1.msra.mxu0 0.0
        %833 = vmatprep.subr.mxu0 0.0
        %834 = vmatpush1.msra.mxu0 0.0
        %835 = vmatprep.subr.mxu0 0.0
        %836 = vmatpush1.msra.mxu0 0.0
        %837 = vmatprep.subr.mxu0 0.0
        %838 = vmatpush1.msra.mxu0 0.0
        %839 = vmatprep.subr.mxu0 0.0
        %840 = vmatpush1.msra.mxu0 0.0
        %841 = vmatprep.subr.mxu0 0.0
        %842 = vmatpush1.msra.mxu0 0.0
        %843 = vmatprep.subr.mxu0 0.0
        %844 = vmatpush1.msra.mxu0 0.0
        %845 = vmatprep.subr.mxu0 0.0
        %846 = vmatpush1.msra.mxu0 0.0
        %847 = vmatprep.subr.mxu0 0.0
        %848 = vmatpush1.msra.mxu0 0.0
        %849 = vmatprep.subr.mxu0 0.0
        %850 = vmatpush1.msra.mxu0 0.0
        %851 = vmatprep.subr.mxu0 0.0
        %852 = vmatpush1.msra.mxu0 0.0
        %853 = vmatprep.subr.mxu0 0.0
        %854 = vmatpush1.msra.mxu0 0.0
        %855 = vmatprep.subr.mxu0 0.0
        %856 = vmatpush1.msra.mxu0 0.0
        %857 = vmatprep.subr.mxu0 0.0
        %858 = vmatpush1.msra.mxu0 0.0
        %859 = vmatprep.subr.mxu0 0.0
        %860 = vmatpush1.msra.mxu0 0.0
        %861 = vmatprep.subr.mxu0 0.0
        %862 = vmatpush1.msra.mxu0 0.0
        %863 = vmatprep.subr.mxu0 0.0
        %864 = vmatpush1.msra.mxu0 0.0
        %865 = vmatprep.subr.mxu0 0.0
        %866 = vmatpush1.msra.mxu0 0.0
        %867 = vmatprep.subr.mxu0 0.0
        %868 = vmatpush1.msra.mxu0 0.0
        %869 = vmatprep.subr.mxu0 0.0
        %870 = vmatpush1.msra.mxu0 0.0
        %871 = vmatprep.subr.mxu0 0.0
        %872 = vmatpush1.msra.mxu0 0.0
        %873 = vmatprep.subr.mxu0 0.0
        %874 = vmatpush1.msra.mxu0 0.0
        %875 = vmatprep.subr.mxu0 0.0
        %876 = vmatpush1.msra.mxu0 0.0
        %877 = vmatprep.subr.mxu0 0.0
        %878 = vmatpush1.msra.mxu0 0.0
        %879 = vmatprep.subr.mxu0 0.0
        %880 = vmatpush1.msra.mxu0 0.0
        %881 = vmatprep.mubr.f32.mxu0 0.0
        %882 = vmatmul.mubr.f32.gmra.mrb[0].mxu0 %v815
        %v883 = vpop.f32.mrb[0].mxu0
        %v884 = vadd.f32 0.0, %v883
        %v885 = vpop.f32.mrb[0].mxu0
        %886 = vdwg.mxu0
        %v887 = vrcp.pop %v809
        %v888 = vmul.f32 %v809, %v887
        %v889 = vsub.f32 2.0, %v888
        %v890 = vmul.f32 %v887, %v889
        %v891 = vmul.f32 %v884, %v890
        %v892 = vlaneseq
        %v893 = vshrl.u32 %v892, 7
        %v894 = vsub.s32 2, %v893
        %v895 = vrot.slane %v701, %v894
        %v896 = vadd.f32 %v700, %v895
        %v897 = vsel %vm707, %v896, -inf
        %898 = vmax.xlane.f32.xlu0 %v897
        %v899 = vpop.xlane.xlu0 %898
        %v900 = vsub.f32 %v896, %v899
        %v901 = vmul.f32 %v900, 1.442695
        %v902 = vpow.pop %v901
        %v903 = vsel %vm707, %v902, 0.0
        %904 = vadd.xlane.f32.xlu0 %v903
        %v905 = vpop.xlane.xlu0 %904
        %906 = vrot.lane.b32.xlu0 %v717, 112
        %v907 = vpop.permute.xlu0 %906
        %v910 = vsel %vm707, %v902, 0
        %912 = vmatprep.subr.mxu0 0.0
        %913 = vmatpush1.msra.mxu0 %v907
        %914 = vmatprep.subr.mxu0 0.0
        %915 = vmatpush1.msra.mxu0 0.0
        %916 = vmatprep.subr.mxu0 0.0
        %917 = vmatpush1.msra.mxu0 0.0
        %918 = vmatprep.subr.mxu0 0.0
        %919 = vmatpush1.msra.mxu0 0.0
        %920 = vmatprep.subr.mxu0 0.0
        %921 = vmatpush1.msra.mxu0 0.0
        %922 = vmatprep.subr.mxu0 0.0
        %923 = vmatpush1.msra.mxu0 0.0
        %924 = vmatprep.subr.mxu0 0.0
        %925 = vmatpush1.msra.mxu0 0.0
        %926 = vmatprep.subr.mxu0 0.0
        %927 = vmatpush1.msra.mxu0 0.0
        %928 = vmatprep.subr.mxu0 0.0
        %929 = vmatpush1.msra.mxu0 0.0
        %930 = vmatprep.subr.mxu0 0.0
        %931 = vmatpush1.msra.mxu0 0.0
        %932 = vmatprep.subr.mxu0 0.0
        %933 = vmatpush1.msra.mxu0 0.0
        %934 = vmatprep.subr.mxu0 0.0
        %935 = vmatpush1.msra.mxu0 0.0
        %936 = vmatprep.subr.mxu0 0.0
        %937 = vmatpush1.msra.mxu0 0.0
        %938 = vmatprep.subr.mxu0 0.0
        %939 = vmatpush1.msra.mxu0 0.0
        %940 = vmatprep.subr.mxu0 0.0
        %941 = vmatpush1.msra.mxu0 0.0
        %942 = vmatprep.subr.mxu0 0.0
        %943 = vmatpush1.msra.mxu0 0.0
        %944 = vmatprep.subr.mxu0 0.0
        %945 = vmatpush1.msra.mxu0 0.0
        %946 = vmatprep.subr.mxu0 0.0
        %947 = vmatpush1.msra.mxu0 0.0
        %948 = vmatprep.subr.mxu0 0.0
        %949 = vmatpush1.msra.mxu0 0.0
        %950 = vmatprep.subr.mxu0 0.0
        %951 = vmatpush1.msra.mxu0 0.0
        %952 = vmatprep.subr.mxu0 0.0
        %953 = vmatpush1.msra.mxu0 0.0
        %954 = vmatprep.subr.mxu0 0.0
        %955 = vmatpush1.msra.mxu0 0.0
        %956 = vmatprep.subr.mxu0 0.0
        %957 = vmatpush1.msra.mxu0 0.0
        %958 = vmatprep.subr.mxu0 0.0
        %959 = vmatpush1.msra.mxu0 0.0
        %960 = vmatprep.subr.mxu0 0.0
        %961 = vmatpush1.msra.mxu0 0.0
        %962 = vmatprep.subr.mxu0 0.0
        %963 = vmatpush1.msra.mxu0 0.0
        %964 = vmatprep.subr.mxu0 0.0
        %965 = vmatpush1.msra.mxu0 0.0
        %966 = vmatprep.subr.mxu0 0.0
        %967 = vmatpush1.msra.mxu0 0.0
        %968 = vmatprep.subr.mxu0 0.0
        %969 = vmatpush1.msra.mxu0 0.0
        %970 = vmatprep.subr.mxu0 0.0
        %971 = vmatpush1.msra.mxu0 0.0
        %972 = vmatprep.subr.mxu0 0.0
        %973 = vmatpush1.msra.mxu0 0.0
        %974 = vmatprep.subr.mxu0 0.0
        %975 = vmatpush1.msra.mxu0 0.0
        %976 = vmatprep.mubr.f32.mxu0 0.0
        %977 = vmatmul.mubr.f32.gmra.mrb[0].mxu0 %v910
        %v978 = vpop.f32.mrb[0].mxu0
        %v979 = vadd.f32 0.0, %v978
        %v980 = vpop.f32.mrb[0].mxu0
        %981 = vdwg.mxu0
        %v982 = vrcp.pop %v905
        %v983 = vmul.f32 %v905, %v982
        %v984 = vsub.f32 2.0, %v983
        %v985 = vmul.f32 %v982, %v984
        %v986 = vmul.f32 %v979, %v985
        %v987 = vlaneseq
        %v988 = vshrl.u32 %v987, 7
        %v989 = vsub.s32 3, %v988
        %v990 = vrot.slane %v701, %v989
        %v991 = vadd.f32 %v700, %v990
        %v992 = vsel %vm707, %v991, -inf
        %993 = vmax.xlane.f32.xlu0 %v992
        %v994 = vpop.xlane.xlu0 %993
        %v995 = vsub.f32 %v991, %v994
        %v996 = vmul.f32 %v995, 1.442695
        %v997 = vpow.pop %v996
        %v998 = vsel %vm707, %v997, 0.0
        %999 = vadd.xlane.f32.xlu0 %v998
        %v1000 = vpop.xlane.xlu0 %999
        %1001 = vrot.lane.b32.xlu0 %v717, 104
        %v1002 = vpop.permute.xlu0 %1001
        %v1005 = vsel %vm707, %v997, 0
        %1007 = vmatprep.subr.mxu0 0.0
        %1008 = vmatpush1.msra.mxu0 %v1002
        %1009 = vmatprep.subr.mxu0 0.0
        %1010 = vmatpush1.msra.mxu0 0.0
        %1011 = vmatprep.subr.mxu0 0.0
        %1012 = vmatpush1.msra.mxu0 0.0
        %1013 = vmatprep.subr.mxu0 0.0
        %1014 = vmatpush1.msra.mxu0 0.0
        %1015 = vmatprep.subr.mxu0 0.0
        %1016 = vmatpush1.msra.mxu0 0.0
        %1017 = vmatprep.subr.mxu0 0.0
        %1018 = vmatpush1.msra.mxu0 0.0
        %1019 = vmatprep.subr.mxu0 0.0
        %1020 = vmatpush1.msra.mxu0 0.0
        %1021 = vmatprep.subr.mxu0 0.0
        %1022 = vmatpush1.msra.mxu0 0.0
        %1023 = vmatprep.subr.mxu0 0.0
        %1024 = vmatpush1.msra.mxu0 0.0
        %1025 = vmatprep.subr.mxu0 0.0
        %1026 = vmatpush1.msra.mxu0 0.0
        %1027 = vmatprep.subr.mxu0 0.0
        %1028 = vmatpush1.msra.mxu0 0.0
        %1029 = vmatprep.subr.mxu0 0.0
        %1030 = vmatpush1.msra.mxu0 0.0
        %1031 = vmatprep.subr.mxu0 0.0
        %1032 = vmatpush1.msra.mxu0 0.0
        %1033 = vmatprep.subr.mxu0 0.0
        %1034 = vmatpush1.msra.mxu0 0.0
        %1035 = vmatprep.subr.mxu0 0.0
        %1036 = vmatpush1.msra.mxu0 0.0
        %1037 = vmatprep.subr.mxu0 0.0
        %1038 = vmatpush1.msra.mxu0 0.0
        %1039 = vmatprep.subr.mxu0 0.0
        %1040 = vmatpush1.msra.mxu0 0.0
        %1041 = vmatprep.subr.mxu0 0.0
        %1042 = vmatpush1.msra.mxu0 0.0
        %1043 = vmatprep.subr.mxu0 0.0
        %1044 = vmatpush1.msra.mxu0 0.0
        %1045 = vmatprep.subr.mxu0 0.0
        %1046 = vmatpush1.msra.mxu0 0.0
        %1047 = vmatprep.subr.mxu0 0.0
        %1048 = vmatpush1.msra.mxu0 0.0
        %1049 = vmatprep.subr.mxu0 0.0
        %1050 = vmatpush1.msra.mxu0 0.0
        %1051 = vmatprep.subr.mxu0 0.0
        %1052 = vmatpush1.msra.mxu0 0.0
        %1053 = vmatprep.subr.mxu0 0.0
        %1054 = vmatpush1.msra.mxu0 0.0
        %1055 = vmatprep.subr.mxu0 0.0
        %1056 = vmatpush1.msra.mxu0 0.0
        %1057 = vmatprep.subr.mxu0 0.0
        %1058 = vmatpush1.msra.mxu0 0.0
        %1059 = vmatprep.subr.mxu0 0.0
        %1060 = vmatpush1.msra.mxu0 0.0
        %1061 = vmatprep.subr.mxu0 0.0
        %1062 = vmatpush1.msra.mxu0 0.0
        %1063 = vmatprep.subr.mxu0 0.0
        %1064 = vmatpush1.msra.mxu0 0.0
        %1065 = vmatprep.subr.mxu0 0.0
        %1066 = vmatpush1.msra.mxu0 0.0
        %1067 = vmatprep.subr.mxu0 0.0
        %1068 = vmatpush1.msra.mxu0 0.0
        %1069 = vmatprep.subr.mxu0 0.0
        %1070 = vmatpush1.msra.mxu0 0.0
        %1071 = vmatprep.mubr.f32.mxu0 0.0
        %1072 = vmatmul.mubr.f32.gmra.mrb[0].mxu0 %v1005
        %v1073 = vpop.f32.mrb[0].mxu0
        %v1074 = vadd.f32 0.0, %v1073
        %v1075 = vpop.f32.mrb[0].mxu0
        %1076 = vdwg.mxu0
        %v1077 = vrcp.pop %v1000
        %v1078 = vmul.f32 %v1000, %v1077
        %v1079 = vsub.f32 2.0, %v1078
        %v1080 = vmul.f32 %v1077, %v1079
        %v1081 = vmul.f32 %v1074, %v1080
        %1083 = vrot.lane.b32.xlu0 %v891, 8
        %v1084 = vpop.permute.xlu0 %1083
        %1087 = vrot.lane.b32.xlu0 %v986, 16
        %v1088 = vpop.permute.xlu0 %1087
        %1091 = vrot.lane.b32.xlu0 %v1081, 24
        %v1092 = vpop.permute.xlu0 %1091
        %v1094 = vsel %vm707, %v795, %v1084
        %vm1095 = vcmask 130048
        %v1096 = vsel %vm1095, %v1094, %v1088
        %vm1097 = vcmask 195584
        %v1098 = vsel %vm1097, %v1096, %v1092
        %v1099 = vadd.f32 %v372, %v1098
        %v1100 = vld [vmem:[%s4] sm:$0xff]
        %v1101 = vld [vmem:[%s4 + $0x8] sm:$0xff]
        %v1102 = vld [vmem:[%s4 + $0x10] sm:$0xff]
        %v1103 = vld [vmem:[%s4 + $0x18] sm:$0xff]
        %v1104 = vld [vmem:[%s5] sm:$0x1]
        %v1106 = vlaneseq
        %v1107 = vshrl.u32 %v1106, 7
        %v1108 = vsub.s32 0, %v1107
        %v1109 = vrot.slane %v1104, %v1108
        %v1112 = vsel %vm623, %v1099, 0
        %1114 = vmatprep.subr.mxu0 0.0
        %1115 = vmatpush1.msra.mxu0 %v1100
        %1116 = vmatprep.subr.mxu0 0.0
        %1117 = vmatpush1.msra.mxu0 %v1101
        %1118 = vmatprep.subr.mxu0 0.0
        %1119 = vmatpush1.msra.mxu0 %v1102
        %1120 = vmatprep.subr.mxu0 0.0
        %1121 = vmatpush1.msra.mxu0 %v1103
        %1122 = vmatprep.subr.mxu0 0.0
        %1123 = vmatpush1.msra.mxu0 0.0
        %1124 = vmatprep.subr.mxu0 0.0
        %1125 = vmatpush1.msra.mxu0 0.0
        %1126 = vmatprep.subr.mxu0 0.0
        %1127 = vmatpush1.msra.mxu0 0.0
        %1128 = vmatprep.subr.mxu0 0.0
        %1129 = vmatpush1.msra.mxu0 0.0
        %1130 = vmatprep.subr.mxu0 0.0
        %1131 = vmatpush1.msra.mxu0 0.0
        %1132 = vmatprep.subr.mxu0 0.0
        %1133 = vmatpush1.msra.mxu0 0.0
        %1134 = vmatprep.subr.mxu0 0.0
        %1135 = vmatpush1.msra.mxu0 0.0
        %1136 = vmatprep.subr.mxu0 0.0
        %1137 = vmatpush1.msra.mxu0 0.0
        %1138 = vmatprep.subr.mxu0 0.0
        %1139 = vmatpush1.msra.mxu0 0.0
        %1140 = vmatprep.subr.mxu0 0.0
        %1141 = vmatpush1.msra.mxu0 0.0
        %1142 = vmatprep.subr.mxu0 0.0
        %1143 = vmatpush1.msra.mxu0 0.0
        %1144 = vmatprep.subr.mxu0 0.0
        %1145 = vmatpush1.msra.mxu0 0.0
        %1146 = vmatprep.subr.mxu0 0.0
        %1147 = vmatpush1.msra.mxu0 0.0
        %1148 = vmatprep.subr.mxu0 0.0
        %1149 = vmatpush1.msra.mxu0 0.0
        %1150 = vmatprep.subr.mxu0 0.0
        %1151 = vmatpush1.msra.mxu0 0.0
        %1152 = vmatprep.subr.mxu0 0.0
        %1153 = vmatpush1.msra.mxu0 0.0
        %1154 = vmatprep.subr.mxu0 0.0
        %1155 = vmatpush1.msra.mxu0 0.0
        %1156 = vmatprep.subr.mxu0 0.0
        %1157 = vmatpush1.msra.mxu0 0.0
        %1158 = vmatprep.subr.mxu0 0.0
        %1159 = vmatpush1.msra.mxu0 0.0
        %1160 = vmatprep.subr.mxu0 0.0
        %1161 = vmatpush1.msra.mxu0 0.0
        %1162 = vmatprep.subr.mxu0 0.0
        %1163 = vmatpush1.msra.mxu0 0.0
        %1164 = vmatprep.subr.mxu0 0.0
        %1165 = vmatpush1.msra.mxu0 0.0
        %1166 = vmatprep.subr.mxu0 0.0
        %1167 = vmatpush1.msra.mxu0 0.0
        %1168 = vmatprep.subr.mxu0 0.0
        %1169 = vmatpush1.msra.mxu0 0.0
        %1170 = vmatprep.subr.mxu0 0.0
        %1171 = vmatpush1.msra.mxu0 0.0
        %1172 = vmatprep.subr.mxu0 0.0
        %1173 = vmatpush1.msra.mxu0 0.0
        %1174 = vmatprep.subr.mxu0 0.0
        %1175 = vmatpush1.msra.mxu0 0.0
        %1176 = vmatprep.subr.mxu0 0.0
        %1177 = vmatpush1.msra.mxu0 0.0
        %1178 = vmatprep.mubr.f32.mxu0 0.0
        %1179 = vmatmul.mubr.f32.gmra.mrb[0].mxu0 %v1112
        %v1180 = vpop.f32.mrb[0].mxu0
        %v1181 = vadd.f32 %v1109, %v1180
        %v1182 = vpop.f32.mrb[0].mxu0
        %1183 = vdwg.mxu0
        %v1184 = vmul.f32 %v1181, 0.5
        %v1185 = vmul.f32 %v1181, 0.70710677
        %vm1186 = vcmp.ge.f32.partialorder %v1185, 0.0
        %v1187 = vsel %vm1186, 1.0, -1.0
        %v1188 = vand.u32 2147483647, %v1185
        %v1189 = vmul.f32 %v1188, 0.3275911
        %v1190 = vadd.f32 %v1189, 1.0
        %v1191 = vrcp.pop %v1190
        %v1192 = vmul.f32 %v1190, %v1191
        %v1193 = vsub.f32 2.0, %v1192
        %v1194 = vmul.f32 %v1191, %v1193
        %v1195 = vmul.f32 %v1194, 1.0614054
        %v1196 = vadd.f32 %v1195, -1.4531521
        %v1197 = vmul.f32 %v1194, %v1196
        %v1198 = vadd.f32 %v1197, 1.4214138
        %v1199 = vmul.f32 %v1194, %v1198
        %v1200 = vadd.f32 %v1199, -0.28449672
        %v1201 = vmul.f32 %v1194, %v1200
        %v1202 = vadd.f32 %v1201, 0.2548296
        %v1203 = vmul.f32 %v1194, %v1202
        %v1204 = vsub.f32 0.0, %v1188
        %v1205 = vmul.f32 %v1204, %v1188
        %v1206 = vmul.f32 %v1205, 1.442695
        %v1207 = vpow.pop %v1206
        %v1208 = vmul.f32 %v1203, %v1207
        %v1209 = vsub.f32 1.0, %v1208
        %v1210 = vmul.f32 %v1187, %v1209
        %v1211 = vadd.f32 %v1210, 1.0
        %v1212 = vmul.f32 %v1184, %v1211
        %v1213 = vld [vmem:[%s6] sm:$0xff]
        %v1214 = vld [vmem:[%s6 + $0x8] sm:$0xff]
        %v1215 = vld [vmem:[%s6 + $0x10] sm:$0xff]
        %v1216 = vld [vmem:[%s6 + $0x18] sm:$0xff]
        %v1217 = vld [vmem:[%s6 + $0x20] sm:$0xff]
        %v1218 = vld [vmem:[%s6 + $0x28] sm:$0xff]
        %v1219 = vld [vmem:[%s6 + $0x30] sm:$0xff]
        %v1220 = vld [vmem:[%s6 + $0x38] sm:$0xff]
        %v1221 = vld [vmem:[%s7] sm:$0x1]
        %v1223 = vlaneseq
        %v1224 = vshrl.u32 %v1223, 7
        %v1225 = vsub.s32 0, %v1224
        %v1226 = vrot.slane %v1221, %v1225
        %vm1228 = vcmask 523264
        %v1230 = vsel %vm1228, %v1212, 0
        %1232 = vmatprep.subr.mxu0 0.0
        %1233 = vmatpush1.msra.mxu0 %v1213
        %1234 = vmatprep.subr.mxu0 0.0
        %1235 = vmatpush1.msra.mxu0 %v1214
        %1236 = vmatprep.subr.mxu0 0.0
        %1237 = vmatpush1.msra.mxu0 %v1215
        %1238 = vmatprep.subr.mxu0 0.0
        %1239 = vmatpush1.msra.mxu0 %v1216
        %1240 = vmatprep.subr.mxu0 0.0
        %1241 = vmatpush1.msra.mxu0 %v1217
        %1242 = vmatprep.subr.mxu0 0.0
        %1243 = vmatpush1.msra.mxu0 %v1218
        %1244 = vmatprep.subr.mxu0 0.0
        %1245 = vmatpush1.msra.mxu0 %v1219
        %1246 = vmatprep.subr.mxu0 0.0
        %1247 = vmatpush1.msra.mxu0 %v1220
        %1248 = vmatprep.subr.mxu0 0.0
        %1249 = vmatpush1.msra.mxu0 0.0
        %1250 = vmatprep.subr.mxu0 0.0
        %1251 = vmatpush1.msra.mxu0 0.0
        %1252 = vmatprep.subr.mxu0 0.0
        %1253 = vmatpush1.msra.mxu0 0.0
        %1254 = vmatprep.subr.mxu0 0.0
        %1255 = vmatpush1.msra.mxu0 0.0
        %1256 = vmatprep.subr.mxu0 0.0
        %1257 = vmatpush1.msra.mxu0 0.0
        %1258 = vmatprep.subr.mxu0 0.0
        %1259 = vmatpush1.msra.mxu0 0.0
        %1260 = vmatprep.subr.mxu0 0.0
        %1261 = vmatpush1.msra.mxu0 0.0
        %1262 = vmatprep.subr.mxu0 0.0
        %1263 = vmatpush1.msra.mxu0 0.0
        %1264 = vmatprep.subr.mxu0 0.0
        %1265 = vmatpush1.msra.mxu0 0.0
        %1266 = vmatprep.subr.mxu0 0.0
        %1267 = vmatpush1.msra.mxu0 0.0
        %1268 = vmatprep.subr.mxu0 0.0
        %1269 = vmatpush1.msra.mxu0 0.0
        %1270 = vmatprep.subr.mxu0 0.0
        %1271 = vmatpush1.msra.mxu0 0.0
        %1272 = vmatprep.subr.mxu0 0.0
        %1273 = vmatpush1.msra.mxu0 0.0
        %1274 = vmatprep.subr.mxu0 0.0
        %1275 = vmatpush1.msra.mxu0 0.0
        %1276 = vmatprep.subr.mxu0 0.0
        %1277 = vmatpush1.msra.mxu0 0.0
        %1278 = vmatprep.subr.mxu0 0.0
        %1279 = vmatpush1.msra.mxu0 0.0
        %1280 = vmatprep.subr.mxu0 0.0
        %1281 = vmatpush1.msra.mxu0 0.0
        %1282 = vmatprep.subr.mxu0 0.0
        %1283 = vmatpush1.msra.mxu0 0.0
        %1284 = vmatprep.subr.mxu0 0.0
        %1285 = vmatpush1.msra.mxu0 0.0
        %1286 = vmatprep.subr.mxu0 0.0
        %1287 = vmatpush1.msra.mxu0 0.0
        %1288 = vmatprep.subr.mxu0 0.0
        %1289 = vmatpush1.msra.mxu0 0.0
        %1290 = vmatprep.subr.mxu0 0.0
        %1291 = vmatpush1.msra.mxu0 0.0
        %1292 = vmatprep.subr.mxu0 0.0
        %1293 = vmatpush1.msra.mxu0 0.0
        %1294 = vmatprep.subr.mxu0 0.0
        %1295 = vmatpush1.msra.mxu0 0.0
        %1296 = vmatprep.mubr.f32.mxu0 0.0
        %1297 = vmatmul.mubr.f32.gmra.mrb[0].mxu0 %v1230
        %v1298 = vpop.f32.mrb[0].mxu0
        %v1299 = vadd.f32 %v1226, %v1298
        %v1300 = vpop.f32.mrb[0].mxu0
        %1301 = vdwg.mxu0
        %v1302 = vadd.f32 %v1299, %v1099
        %v1303 = vsel %vm623, %v1302, 0.0
        %1304 = vadd.xlane.f32.xlu0 %v1303
        %v1305 = vpop.xlane.xlu0 %1304
        %v1306 = vrcp.pop 32.0
        %v1307 = vmul.f32 %v1305, %v1306
        %v1308 = vsub.f32 %v1302, %v1307
        %v1309 = vmul.f32 %v1308, %v1308
        %v1310 = vsel %vm623, %v1309, 0.0
        %1311 = vadd.xlane.f32.xlu0 %v1310
        %v1312 = vpop.xlane.xlu0 %1311
        %v1313 = vmul.f32 %v1312, %v1306
        %v1314 = vadd.f32 %v1313, 1e-12
        %v1315 = vrsqrt.pop %v1314
        %v1316 = vmul.f32 %v1308, %v1315
        %v1317 = vld [vmem:[%s8] sm:$0x1]
        %v1319 = vlaneseq
        %v1320 = vshrl.u32 %v1319, 7
        %v1321 = vsub.s32 0, %v1320
        %v1322 = vrot.slane %v1317, %v1321
        %v1324 = vmul.f32 %v1316, %v1322
        %v1325 = vld [vmem:[%s9] sm:$0x1]
        %v1327 = vlaneseq
        %v1328 = vshrl.u32 %v1327, 7
        %v1329 = vsub.s32 0, %v1328
        %v1330 = vrot.slane %v1325, %v1329
        %v1332 = vadd.f32 %v1324, %v1330
        %1333 = vst.msk [vmem:[%s364] sm:$0xff] %vm623, %v1332
        %s1334 = sand.u32 %s261, 1
        %s1335 = scalar_lea.sflag [#allocation5], %s1334
        %s1336 = sand.u32 %s261, 1
        %s1337 = smul.addr %s1336, 8
        %s1338 = scalar_lea.vmem [#allocation4], %s1337
        // Predicated region
        $region65: #{tpu_custom_call.1} parent=59 // pred_check
          %p1339 = pneg %p271
        $region66: #{tpu_custom_call.1} parent=59 // pred_check_branch
          %1341 = sbr.rel (%p1339) target = $region68
        $region67: #{tpu_custom_call.1} parent=59 // pred_region
          %s1343 = ssub.s32 128, 128
          %1344 = vsyncadd %s1335, %s1343
          %s1345 = sadd.s32 %s29, %s28
          %s1346 = smul.addr %s1345, 128
          %s1347 = scalar_lea.hbm %s10, %s1346
          %s1349 = sshll.u32 %s1338, 4
          %s1350 = int_to_ptr.vmem [resolvable:$true] %s1349
          %1352 = dma.vmem_to_hbm [thread:$0]  %s1350, 128, %s1347, %s1335
        $region68: #{tpu_custom_call.1} parent=59 // pred_fallthru
          _
      $region60: #{tpu_custom_call.1} parent=5 // pred_fallthru
        _
      %p1353 = scmp.le.s32.totalorder 2, %s19
      // Predicated region
      $region69: #{tpu_custom_call.1} parent=5 // pred_check
        %p1354 = pneg %p1353
      $region70: #{tpu_custom_call.1} parent=5 // pred_check_branch
        %1356 = sbr.rel (%p1354) target = $region72
      $region71: #{tpu_custom_call.1} parent=5 // pred_region
        %s1357 = ssub.s32 %s19, 2
        // Predicated region
        $region73: #{tpu_custom_call.1} parent=71 // pred_check
          %p1358 = pneg %p277
        $region74: #{tpu_custom_call.1} parent=71 // pred_check_branch
          %1360 = sbr.rel (%p1358) target = $region76
        $region75: #{tpu_custom_call.1} parent=71 // pred_region
          %s1361 = sand.u32 %s262, 1
          %s1362 = scalar_lea.sflag [#allocation5], %s1361
          %s1363 = sand.u32 %s262, 1
          %s1364 = smul.addr %s1363, 8
          %s1365 = scalar_lea.vmem [#allocation4], %s1364
          %1366 = dma.done %s1362, 128
        $region76: #{tpu_custom_call.1} parent=71 // pred_fallthru
          _
      $region72: #{tpu_custom_call.1} parent=5 // pred_fallthru
        _
    $region6: #{tpu_custom_call.1} parent=1 // loop_footer
      %s23 = sadd.s32 1, %s19
    $region7: #{tpu_custom_call.1} parent=1 // loop_footer_branch
      %18 = sbr.rel target = $region3
    $region8: #{tpu_custom_call.1} parent=1 // loop_exit
      _
    %1367 = vsyncpa [#allocation5], 1
    %s1368 = scalar_lea.sflag [#allocation5], 1
    %1369 = vsyncpa %s1368, 1

</llo_original>
